<compile_context>
chip_gen: v5e
topology: v5e:2x2
jax: 0.10.0
libtpu: 0.0.40
codegen_flags: <defaults>
</compile_context>

<pallas_src>
import math

import jax
import jax.numpy as jnp
from jax.experimental import pallas as pl
from jax.experimental.pallas import tpu as pltpu

# ----------------------------- model constants ------------------------------
IMG_H = IMG_W = 64             # input image spatial size
PATCH = 8                      # patch size -> 8x8 = 64 patch tokens
EMB_HW = IMG_H // PATCH        # embedding spatial size (8)
NTOK = EMB_HW * EMB_HW         # 64 tokens
D = 64                         # ViT hidden dim
MLP = 4 * D                    # 256
C = 32                         # SAM embedding channels (neck / decoder dim)
PATCH_DIM = 3 * PATCH * PATCH  # 192
NT = 4                         # decoder tokens: [iou, mask, box-corner0, box-corner1]
LN_EPS_VIT = 1e-5              # nn.LayerNorm default (ViT / decoder LNs)
LN_EPS_2D = 1e-6               # SAM LayerNorm2d (neck)

_F32 = jnp.float32
_BF16 = jnp.bfloat16
_TRANS_B = (((1,), (1,)), ((), ()))   # dot_general dims for a @ b.T (no transpose materialized)


# ------------------------------ kernel helpers --------------------------------
def _ln(x, g, b, eps):
    mu = jnp.mean(x, axis=-1, keepdims=True)
    var = jnp.mean(jnp.square(x - mu), axis=-1, keepdims=True)
    return (x - mu) * jax.lax.rsqrt(var + eps) * g + b


def _softmax_rows(s):
    s = s - jnp.max(s, axis=-1, keepdims=True)
    p = jnp.exp(s)
    return p * pl.reciprocal(jnp.sum(p, axis=-1, keepdims=True), approx=True)


def _mxdot(a, w):
    """MXU matmul with bf16 operands, f32 accumulation."""
    return jnp.dot(a.astype(_BF16), w.astype(_BF16), preferred_element_type=_F32)


def _mxdot_t(a, b):
    """a @ b.T on the MXU with bf16 operands, f32 accumulation."""
    return jax.lax.dot_general(a.astype(_BF16), b.astype(_BF16), _TRANS_B,
                               preferred_element_type=_F32)


# ------------------------- single fused forward kernel ------------------------
# vec_d rows: 0 ln1_g, 1 ln1_b, 2 ln2_g, 3 ln2_b, 4 b_o, 5 b_mlp2
# vec_c rows: 0 b_neck, 1 neck_ln_g, 2 neck_ln_b, 3 no_mask_embed,
#             4 b_dec_q (scaled), 5 b_dec_o, 6 dln_g, 7 dln_b,
#             8 b_hyp0, 9 b_hyp1, 10 b_iou1, 11 w_iou2, 12 iou2_b (bcast)
# dec_mats:   0 w_dec_q (scaled), 1 w_dec_o, 2 w_hyp0, 3 w_hyp1, 4 w_iou1
def _sam_fused_kernel(x_ref, tok_ref, wpe_ref, pos_ref, wqkv_ref, bqkv_ref,
                      wo_ref, wm1_ref, bm1_ref, wm2_ref, wnk_ref, vecd_ref,
                      wdkv_ref, kvadd_ref, dmats_ref, vecc_ref,
                      emb_ref, pack_ref):
    vd = vecd_ref[...]
    vc = vecc_ref[...]

    # ---------------- image encoder ----------------
    x = x_ref[0]                                              # (NTOK, PATCH_DIM)
    t = _mxdot(x, wpe_ref[...]) + pos_ref[...]                # pos_bpe includes b_pe

    # attention block (scale folded into the Q slice of w_qkv/b_qkv at init)
    h = _ln(t, vd[0:1], vd[1:2], LN_EPS_VIT)
    qkv = _mxdot(h, wqkv_ref[...]) + bqkv_ref[...]            # one wide (NTOK, 3D) matmul
    q = qkv[:, :D]
    k = qkv[:, D:2 * D]
    v = qkv[:, 2 * D:]
    p = _softmax_rows(_mxdot_t(q, k))                         # (NTOK, NTOK)
    a = _mxdot(p, v)
    t = t + _mxdot(a, wo_ref[...]) + vd[4:5]

    # MLP block
    h = _ln(t, vd[2:3], vd[3:4], LN_EPS_VIT)
    h = _mxdot(h, wm1_ref[...]) + bm1_ref[...]
    # TODO(synk): PyTorch nn.GELU default is exact (erf); tanh approximation kept.
    h = jax.nn.gelu(h, approximate=True)
    t = t + _mxdot(h, wm2_ref[...]) + vd[5:6]

    # neck: 1x1 conv (matmul) + LayerNorm2d
    e = _mxdot(t, wnk_ref[...]) + vc[0:1]
    e = _ln(e, vc[1:2], vc[2:3], LN_EPS_2D)
    emb_ref[0] = e

    # ---------------- mask decoder (fused; e still live in VMEM) ----------------
    tokens = tok_ref[0]                                       # (NT, C)
    src = e + vc[3:4]                                         # + dense no-mask embed
    dq = _mxdot(tokens, dmats_ref[0]) + vc[4:5]               # scale folded at init
    # fused K|V projection; pos@Wk + b_k | b_v precomputed into kv_add
    kv = _mxdot(src, wdkv_ref[...]) + kvadd_ref[...]          # (NTOK, 2C)
    kk = kv[:, :C]
    vv = kv[:, C:]
    pd = _softmax_rows(_mxdot_t(dq, kk))                      # (NT, NTOK)
    att = _mxdot(pd, vv)
    tokens = tokens + _mxdot(att, dmats_ref[1]) + vc[5:6]
    tokens = _ln(tokens, vc[6:7], vc[7:8], LN_EPS_VIT)

    # hypernetwork + IoU head on the full (NT, C) token matrix
    h1 = jnp.maximum(_mxdot(tokens, dmats_ref[2]) + vc[8:9], 0.0)
    hyp = _mxdot(h1, dmats_ref[3]) + vc[9:10]
    low_full = _mxdot_t(hyp, src)                             # (NT, NTOK)

    ih = jnp.maximum(_mxdot(tokens, dmats_ref[4]) + vc[10:11], 0.0)
    iou_full = jnp.sum(ih * vc[11:12], axis=-1, keepdims=True) + vc[12:13, 0:1]

    # select mask-token / iou-token rows only at the store; lane-dense 128 output
    low_row = low_full[1:2]                                   # (1, NTOK)
    iou_row = iou_full[0:1]                                   # (1, 1)
    pack_ref[0] = jnp.concatenate(
        [low_row, jnp.broadcast_to(iou_row, (1, NTOK))], axis=-1)   # (1, 128)


def _bc(shape):
    nd = len(shape)
    return pl.BlockSpec(shape, lambda b, nd=nd: (0,) * nd)


def sam_fused(params, x_patch, tokens):
    """x_patch: (B, NTOK, 3*P*P), tokens: (B, NT, C) ->
       (emb_tok (B,NTOK,C), packed (B,1,128) = [low-res mask | iou])."""
    B = x_patch.shape[0]
    in_specs = [
        pl.BlockSpec((1, NTOK, PATCH_DIM), lambda b: (b, 0, 0)),  # per-image patches
        pl.BlockSpec((1, NT, C), lambda b: (b, 0, 0)),            # per-image decoder tokens
        _bc((PATCH_DIM, D)),        # w_pe (bf16)
        _bc((NTOK, D)),             # pos_embed + b_pe
        _bc((D, 3 * D)),            # fused QKV weights (bf16)
        _bc((1, 3 * D)),            # fused QKV bias
        _bc((D, D)),                # w_o (bf16)
        _bc((D, MLP)),              # w_mlp1 (bf16)
        _bc((1, MLP)),              # b_mlp1
        _bc((MLP, D)),              # w_mlp2 (bf16)
        _bc((D, C)),                # w_neck (bf16)
        _bc((6, D)),                # encoder vec slab
        _bc((C, 2 * C)),            # fused decoder K|V weights (bf16)
        _bc((NTOK, 2 * C)),         # precomputed pos@Wk + biases
        _bc((5, C, C)),             # decoder (C,C) matrices slab (bf16)
        _bc((13, C)),               # decoder/neck vec slab
    ]
    out_shape = (jax.ShapeDtypeStruct((B, NTOK, C), _F32),
                 jax.ShapeDtypeStruct((B, 1, 128), _F32))
    out_specs = (pl.BlockSpec((1, NTOK, C), lambda b: (b, 0, 0)),
                 pl.BlockSpec((1, 1, 128), lambda b: (b, 0, 0)))
    return pl.pallas_call(
        _sam_fused_kernel,
        out_shape=out_shape,
        grid=(B,),
        in_specs=in_specs,
        out_specs=out_specs,
        compiler_params=pltpu.CompilerParams(dimension_semantics=("parallel",)),
    )(x_patch, tokens, params["w_pe"], params["pos_bpe"], params["w_qkv"],
      params["b_qkv"], params["w_o"], params["w_mlp1"], params["b_mlp1"],
      params["w_mlp2"], params["w_neck"], params["vec_d"], params["w_dec_kv"],
      params["kv_add"], params["dec_mats"], params["vec_c"])


# --------------------------- parameter construction --------------------------
def bilinear_matrix(n_out, n_in):
    # matches F.interpolate(mode='bilinear', align_corners=False)
    i = jnp.arange(n_out, dtype=_F32)
    src = jnp.clip((i + 0.5) * (n_in / n_out) - 0.5, 0.0, n_in - 1.0)
    lo = jnp.floor(src).astype(jnp.int32)
    hi = jnp.minimum(lo + 1, n_in - 1)
    w_hi = src - lo.astype(_F32)
    w_lo = 1.0 - w_hi
    m = jnp.zeros((n_out, n_in), _F32)
    m = m.at[jnp.arange(n_out), lo].add(w_lo)
    m = m.at[jnp.arange(n_out), hi].add(w_hi)
    return m


def _dense_pe_tokens(pe_gauss):
    ys = (jnp.arange(EMB_HW, dtype=_F32) + 0.5) / EMB_HW
    xs = (jnp.arange(EMB_HW, dtype=_F32) + 0.5) / EMB_HW
    gy, gx = jnp.meshgrid(ys, xs, indexing="ij")
    coords = 2.0 * jnp.stack([gx, gy], axis=-1).reshape(NTOK, 2) - 1.0
    pe = 2.0 * jnp.pi * (coords @ pe_gauss)
    return jnp.concatenate([jnp.sin(pe), jnp.cos(pe)], axis=-1)       # (NTOK, C)


def init_params(key):
    ks = iter(jax.random.split(key, 64))

    def nrm(shape, scale=0.02):
        return (scale * jax.random.normal(next(ks), shape)).astype(_F32)

    zeros = lambda s: jnp.zeros(s, _F32)
    ones = lambda s: jnp.ones(s, _F32)

    p = {}
    # --- image encoder ---
    w_pe, b_pe = nrm((PATCH_DIM, D)), zeros((1, D))
    pos_embed = nrm((NTOK, D))
    p["w_pe"] = w_pe.astype(_BF16)
    p["pos_bpe"] = pos_embed + b_pe                                   # fold b_pe

    ln1_g, ln1_b = ones((1, D)), zeros((1, D))
    ln2_g, ln2_b = ones((1, D)), zeros((1, D))
    wq, wk, wv = nrm((D, D)), nrm((D, D)), nrm((D, D))
    bq, bk, bv = zeros((1, D)), zeros((1, D)), zeros((1, D))
    scale = 1.0 / math.sqrt(D)                        # fold attention scale into Q
    p["w_qkv"] = jnp.concatenate([wq * scale, wk, wv], axis=1).astype(_BF16)   # (D, 3D)
    p["b_qkv"] = jnp.concatenate([bq * scale, bk, bv], axis=1)                 # (1, 3D)
    w_o, b_o = nrm((D, D)), zeros((1, D))
    p["w_o"] = w_o.astype(_BF16)
    w_mlp1, b_mlp1 = nrm((D, MLP)), zeros((1, MLP))
    w_mlp2, b_mlp2 = nrm((MLP, D)), zeros((1, D))
    p["w_mlp1"] = w_mlp1.astype(_BF16)
    p["b_mlp1"] = b_mlp1
    p["w_mlp2"] = w_mlp2.astype(_BF16)
    w_neck, b_neck = nrm((D, C)), zeros((1, C))
    neck_g, neck_b = ones((1, C)), zeros((1, C))
    p["w_neck"] = w_neck.astype(_BF16)
    p["vec_d"] = jnp.concatenate([ln1_g, ln1_b, ln2_g, ln2_b, b_o, b_mlp2], axis=0)

    # --- prompt encoder ---
    p["pe_gauss"] = nrm((2, C // 2), scale=1.0)
    p["corner_embed"] = nrm((2, C))
    no_mask = nrm((C,))

    # --- mask decoder ---
    p["iou_token"] = nrm((C,))
    p["mask_token"] = nrm((C,))
    dq_w, dk_w, dv_w, do_w = nrm((C, C)), nrm((C, C)), nrm((C, C)), nrm((C, C))
    b_dq, b_dk, b_dv, b_do = zeros((1, C)), zeros((1, C)), zeros((1, C)), zeros((1, C))
    dscale = 1.0 / math.sqrt(C)                       # fold attention scale into Q
    dln_g, dln_b = ones((1, C)), zeros((1, C))
    w_hyp0, w_hyp1 = nrm((C, C)), nrm((C, C))
    b_hyp0, b_hyp1 = zeros((1, C)), zeros((1, C))
    iou1_w, iou1_b = nrm((C, C)), zeros((1, C))
    iou2_w, iou2_b = nrm((1, C)), zeros((1, 1))

    p["dec_mats"] = jnp.stack(
        [dq_w * dscale, do_w, w_hyp0, w_hyp1, iou1_w], axis=0).astype(_BF16)   # (5,C,C)
    p["w_dec_kv"] = jnp.concatenate([dk_w, dv_w], axis=1).astype(_BF16)        # (C,2C)

    pos = _dense_pe_tokens(p["pe_gauss"])                                      # (NTOK, C)
    p["kv_add"] = jnp.concatenate(
        [pos @ dk_w + b_dk, jnp.broadcast_to(b_dv, (NTOK, C))], axis=1)        # (NTOK,2C)

    p["vec_c"] = jnp.concatenate(
        [b_neck, neck_g, neck_b, no_mask.reshape(1, C),
         b_dq * dscale, b_do, dln_g, dln_b, b_hyp0, b_hyp1,
         iou1_b, iou2_w, jnp.broadcast_to(iou2_b, (1, C))], axis=0)            # (13, C)

    # precomputed bilinear-resize operators (constant; built once, not per call)
    p["up_h"] = bilinear_matrix(IMG_H, EMB_HW)
    p["up_w"] = bilinear_matrix(IMG_W, EMB_HW)
    return p


# -------------------------------- jitted glue ---------------------------------
def _patchify(images):
    B = images.shape[0]
    x = images.reshape(B, 3, EMB_HW, PATCH, EMB_HW, PATCH)
    return x.transpose(0, 2, 4, 1, 3, 5).reshape(B, NTOK, PATCH_DIM)


def _encode_box_prompts(params, boxes):
    """boxes: (B, 4) -> sparse corner embeddings (B, 2, C)."""
    B = boxes.shape[0]
    corners = boxes.reshape(B * 2, 2).astype(_F32) + 0.5
    coords = 2.0 * (corners / jnp.array([IMG_W, IMG_H], _F32)) - 1.0
    pe = 2.0 * jnp.pi * (coords @ params["pe_gauss"])
    sparse = jnp.concatenate([jnp.sin(pe), jnp.cos(pe)], axis=-1)
    return sparse.reshape(B, 2, C) + params["corner_embed"][None]


@jax.jit
def _forward_batched(params, images, boxes):
    B = images.shape[0]

    # tiny prompt-side work (independent of image embeddings) stays in jnp
    x_patch = _patchify(images)
    sparse = _encode_box_prompts(params, boxes)
    tokens = jnp.concatenate(
        [jnp.broadcast_to(params["iou_token"].reshape(1, 1, C), (B, 1, C)),
         jnp.broadcast_to(params["mask_token"].reshape(1, 1, C), (B, 1, C)),
         sparse], axis=1)                                             # (B, NT, C)

    # --- encoder + decoder: ONE fused Pallas kernel, batch on a "parallel" grid ---
    emb_tok, packed = sam_fused(params, x_patch, tokens)
    image_embeddings = emb_tok.reshape(B, EMB_HW, EMB_HW, C).transpose(0, 3, 1, 2)

    low = packed[:, :, :NTOK]                                         # (B, 1, NTOK)
    iou = packed[:, :, NTOK:NTOK + 1]                                 # (B, 1, 1)
    res_masks = low.reshape(B, 1, 1, EMB_HW, EMB_HW)

    # bilinear upsample as two tiny precomputed matmuls (plain jnp)
    low_hw = low.reshape(B, EMB_HW, EMB_HW)
    masks = jnp.einsum("Hh,bhw,Ww->bHW", params["up_h"], low_hw, params["up_w"])
    pred_masks = masks[:, None]                                       # (B, 1, H, W)

    return image_embeddings, pred_masks, iou, res_masks


def forward(params, images, prompts):
    """Matches Model.forward: returns (image_embeddings, pred_masks, ious, res_masks)
    with the latter three as per-image lists."""
    # TODO(synk): assumes one box prompt per image (as in the reference test setup).
    boxes = jnp.concatenate([p.reshape(1, 4) for p in prompts], axis=0)
    emb, pred, iou, res = _forward_batched(params, images, boxes)
    B = images.shape[0]
    pred_masks = [pred[b] for b in range(B)]       # each (1, H, W)   (masks.squeeze(1))
    ious = [iou[b] for b in range(B)]              # each (1, 1)
    res_masks = [res[b] for b in range(B)]         # each (1, 1, h, w)
    return emb, pred_masks, ious, res_masks


# ------------------------------------ main -------------------------------------
if __name__ == "__main__":
    key = jax.random.PRNGKey(0)
    k_param, k_img = jax.random.split(key)
    params = init_params(k_param)

    images = jax.random.normal(k_img, (2, 3, IMG_H, IMG_W), dtype=jnp.float32)  # NCHW
    prompts = [jnp.array([[8.0, 8.0, 40.0, 48.0]], jnp.float32),   # one box per image
               jnp.array([[4.0, 12.0, 60.0, 32.0]], jnp.float32)]

    out = forward(params, images, prompts)
    out = jax.block_until_ready(out)

    emb, pred_masks, ious, res_masks = out
    assert emb.shape == (2, C, EMB_HW, EMB_HW)
    assert pred_masks[0].shape == (1, IMG_H, IMG_W)
    assert ious[0].shape == (1, 1)
    assert res_masks[0].shape == (1, 1, EMB_HW, EMB_HW)
    print("KERNEL_OK")
</pallas_src>

<mosaic_0001>
module attributes {stable_mosaic.version = 11 : i64} {
  func.func @_sam_fused_kernel(%arg0: i32, %arg1: memref<1x64x192xf32, #tpu.memory_space<vmem>>, %arg2: memref<1x4x32xf32, #tpu.memory_space<vmem>>, %arg3: memref<192x64xbf16, #tpu.memory_space<vmem>>, %arg4: memref<64x64xf32, #tpu.memory_space<vmem>>, %arg5: memref<64x192xbf16, #tpu.memory_space<vmem>>, %arg6: memref<1x192xf32, #tpu.memory_space<vmem>>, %arg7: memref<64x64xbf16, #tpu.memory_space<vmem>>, %arg8: memref<64x256xbf16, #tpu.memory_space<vmem>>, %arg9: memref<1x256xf32, #tpu.memory_space<vmem>>, %arg10: memref<256x64xbf16, #tpu.memory_space<vmem>>, %arg11: memref<64x32xbf16, #tpu.memory_space<vmem>>, %arg12: memref<6x64xf32, #tpu.memory_space<vmem>>, %arg13: memref<32x64xbf16, #tpu.memory_space<vmem>>, %arg14: memref<64x64xf32, #tpu.memory_space<vmem>>, %arg15: memref<5x32x32xbf16, #tpu.memory_space<vmem>>, %arg16: memref<13x32xf32, #tpu.memory_space<vmem>>, %arg17: memref<1x64x32xf32, #tpu.memory_space<vmem>>, %arg18: memref<1x1x128xf32, #tpu.memory_space<vmem>>) attributes {dimension_semantics = [#tpu.dimension_semantics<parallel>], iteration_bounds = array<i64: 2>, scalar_prefetch = 0 : i64, scratch_operands = 0 : i64, tpu.core_type = #tpu.core_type<tc>, window_params = [{transform_indices = @transform_0, window_bounds = array<i64: 1, 64, 192>}, {transform_indices = @transform_1, window_bounds = array<i64: 1, 4, 32>}, {pipeline_mode = #tpu.pipeline_mode<synchronous>, transform_indices = @transform_2, window_bounds = array<i64: 192, 64>}, {pipeline_mode = #tpu.pipeline_mode<synchronous>, transform_indices = @transform_3, window_bounds = array<i64: 64, 64>}, {pipeline_mode = #tpu.pipeline_mode<synchronous>, transform_indices = @transform_4, window_bounds = array<i64: 64, 192>}, {pipeline_mode = #tpu.pipeline_mode<synchronous>, transform_indices = @transform_5, window_bounds = array<i64: 1, 192>}, {pipeline_mode = #tpu.pipeline_mode<synchronous>, transform_indices = @transform_6, window_bounds = array<i64: 64, 64>}, {pipeline_mode = #tpu.pipeline_mode<synchronous>, transform_indices = @transform_7, window_bounds = array<i64: 64, 256>}, {pipeline_mode = #tpu.pipeline_mode<synchronous>, transform_indices = @transform_8, window_bounds = array<i64: 1, 256>}, {pipeline_mode = #tpu.pipeline_mode<synchronous>, transform_indices = @transform_9, window_bounds = array<i64: 256, 64>}, {pipeline_mode = #tpu.pipeline_mode<synchronous>, transform_indices = @transform_10, window_bounds = array<i64: 64, 32>}, {pipeline_mode = #tpu.pipeline_mode<synchronous>, transform_indices = @transform_11, window_bounds = array<i64: 6, 64>}, {pipeline_mode = #tpu.pipeline_mode<synchronous>, transform_indices = @transform_12, window_bounds = array<i64: 32, 64>}, {pipeline_mode = #tpu.pipeline_mode<synchronous>, transform_indices = @transform_13, window_bounds = array<i64: 64, 64>}, {pipeline_mode = #tpu.pipeline_mode<synchronous>, transform_indices = @transform_14, window_bounds = array<i64: 5, 32, 32>}, {pipeline_mode = #tpu.pipeline_mode<synchronous>, transform_indices = @transform_15, window_bounds = array<i64: 13, 32>}, {transform_indices = @transform_16, window_bounds = array<i64: 1, 64, 32>}, {transform_indices = @transform_17, window_bounds = array<i64: 1, 1, 128>}]} {
    %c0 = arith.constant 0 : index
    %c0_0 = arith.constant 0 : index
    %0 = vector.load %arg12[%c0, %c0_0] : memref<6x64xf32, #tpu.memory_space<vmem>>, vector<6x64xf32>
    %c0_1 = arith.constant 0 : index
    %c0_2 = arith.constant 0 : index
    %1 = vector.load %arg16[%c0_1, %c0_2] : memref<13x32xf32, #tpu.memory_space<vmem>>, vector<13x32xf32>
    %c0_3 = arith.constant 0 : index
    %c0_4 = arith.constant 0 : index
    %c0_5 = arith.constant 0 : index
    %2 = vector.load %arg1[%c0_3, %c0_4, %c0_5] : memref<1x64x192xf32, #tpu.memory_space<vmem>>, vector<1x64x192xf32>
    %3 = vector.shape_cast %2 : vector<1x64x192xf32> to vector<64x192xf32>
    %c0_6 = arith.constant 0 : index
    %c0_7 = arith.constant 0 : index
    %4 = vector.load %arg3[%c0_6, %c0_7] : memref<192x64xbf16, #tpu.memory_space<vmem>>, vector<192x64xbf16>
    %5 = arith.truncf %3 : vector<64x192xf32> to vector<64x192xbf16>
    %cst = arith.constant dense<0.000000e+00> : vector<64x64xf32>
    %6 = tpu.matmul %5, %4, %cst {dimension_numbers = #tpu.dot_dimension_numbers<[1], [0], [0], [1], [0, 0, 1, 1], [], []>} : vector<64x192xbf16>, vector<192x64xbf16>, vector<64x64xf32> -> vector<64x64xf32>
    %c0_8 = arith.constant 0 : index
    %c0_9 = arith.constant 0 : index
    %7 = vector.load %arg4[%c0_8, %c0_9] : memref<64x64xf32, #tpu.memory_space<vmem>>, vector<64x64xf32>
    %8 = arith.addf %6, %7 : vector<64x64xf32>
    %9 = vector.extract_strided_slice %0 {offsets = [0, 0], sizes = [1, 64], strides = [1, 1]} : vector<6x64xf32> to vector<1x64xf32>
    %10 = vector.extract_strided_slice %0 {offsets = [1, 0], sizes = [1, 64], strides = [1, 1]} : vector<6x64xf32> to vector<1x64xf32>
    %cst_10 = arith.constant dense<0.000000e+00> : vector<64xf32>
    %11 = vector.multi_reduction <add>, %8, %cst_10 [1] : vector<64x64xf32> to vector<64xf32>
    %12 = vector.shape_cast %11 : vector<64xf32> to vector<64x1xf32>
    %cst_11 = arith.constant 6.400000e+01 : f32
    %13 = vector.broadcast %cst_11 : f32 to vector<64x1xf32>
    %14 = arith.divf %12, %13 : vector<64x1xf32>
    %15 = vector.broadcast %14 : vector<64x1xf32> to vector<64x64xf32>
    %16 = arith.subf %8, %15 : vector<64x64xf32>
    %17 = arith.mulf %16, %16 : vector<64x64xf32>
    %cst_12 = arith.constant dense<0.000000e+00> : vector<64xf32>
    %18 = vector.multi_reduction <add>, %17, %cst_12 [1] : vector<64x64xf32> to vector<64xf32>
    %19 = vector.shape_cast %18 : vector<64xf32> to vector<64x1xf32>
    %cst_13 = arith.constant 6.400000e+01 : f32
    %20 = vector.broadcast %cst_13 : f32 to vector<64x1xf32>
    %21 = arith.divf %19, %20 : vector<64x1xf32>
    %22 = vector.broadcast %14 : vector<64x1xf32> to vector<64x64xf32>
    %23 = arith.subf %8, %22 : vector<64x64xf32>
    %cst_14 = arith.constant 9.99999974E-6 : f32
    %24 = vector.broadcast %cst_14 : f32 to vector<64x1xf32>
    %25 = arith.addf %21, %24 : vector<64x1xf32>
    %26 = math.rsqrt %25 : vector<64x1xf32>
    %27 = vector.broadcast %26 : vector<64x1xf32> to vector<64x64xf32>
    %28 = arith.mulf %23, %27 : vector<64x64xf32>
    %29 = vector.broadcast %9 : vector<1x64xf32> to vector<64x64xf32>
    %30 = arith.mulf %28, %29 : vector<64x64xf32>
    %31 = vector.broadcast %10 : vector<1x64xf32> to vector<64x64xf32>
    %32 = arith.addf %30, %31 : vector<64x64xf32>
    %c0_15 = arith.constant 0 : index
    %c0_16 = arith.constant 0 : index
    %33 = vector.load %arg5[%c0_15, %c0_16] : memref<64x192xbf16, #tpu.memory_space<vmem>>, vector<64x192xbf16>
    %34 = arith.truncf %32 : vector<64x64xf32> to vector<64x64xbf16>
    %cst_17 = arith.constant dense<0.000000e+00> : vector<64x192xf32>
    %35 = tpu.matmul %34, %33, %cst_17 {dimension_numbers = #tpu.dot_dimension_numbers<[1], [0], [0], [1], [0, 0, 1, 1], [], []>} : vector<64x64xbf16>, vector<64x192xbf16>, vector<64x192xf32> -> vector<64x192xf32>
    %c0_18 = arith.constant 0 : index
    %c0_19 = arith.constant 0 : index
    %36 = vector.load %arg6[%c0_18, %c0_19] : memref<1x192xf32, #tpu.memory_space<vmem>>, vector<1x192xf32>
    %37 = vector.broadcast %36 : vector<1x192xf32> to vector<64x192xf32>
    %38 = arith.addf %35, %37 : vector<64x192xf32>
    %39 = vector.extract_strided_slice %38 {offsets = [0, 0], sizes = [64, 64], strides = [1, 1]} : vector<64x192xf32> to vector<64x64xf32>
    %40 = vector.extract_strided_slice %38 {offsets = [0, 64], sizes = [64, 64], strides = [1, 1]} : vector<64x192xf32> to vector<64x64xf32>
    %41 = vector.extract_strided_slice %38 {offsets = [0, 128], sizes = [64, 64], strides = [1, 1]} : vector<64x192xf32> to vector<64x64xf32>
    %42 = arith.truncf %39 : vector<64x64xf32> to vector<64x64xbf16>
    %43 = arith.truncf %40 : vector<64x64xf32> to vector<64x64xbf16>
    %cst_20 = arith.constant dense<0.000000e+00> : vector<64x64xf32>
    %44 = tpu.matmul %42, %43, %cst_20 {dimension_numbers = #tpu.dot_dimension_numbers<[1], [1], [0], [0], [0, 0, 1, 0], [], []>} : vector<64x64xbf16>, vector<64x64xbf16>, vector<64x64xf32> -> vector<64x64xf32>
    %cst_21 = arith.constant dense<0xFF800000> : vector<64xf32>
    %45 = vector.multi_reduction <maximumf>, %44, %cst_21 [1] : vector<64x64xf32> to vector<64xf32>
    %46 = vector.shape_cast %45 : vector<64xf32> to vector<64x1xf32>
    %47 = vector.broadcast %46 : vector<64x1xf32> to vector<64x64xf32>
    %48 = arith.subf %44, %47 : vector<64x64xf32>
    %49 = math.exp %48 : vector<64x64xf32>
    %cst_22 = arith.constant dense<0.000000e+00> : vector<64xf32>
    %50 = vector.multi_reduction <add>, %49, %cst_22 [1] : vector<64x64xf32> to vector<64xf32>
    %51 = vector.shape_cast %50 : vector<64xf32> to vector<64x1xf32>
    %52 = tpu.reciprocal %51 {approx = true} : vector<64x1xf32> -> vector<64x1xf32>
    %53 = vector.broadcast %52 : vector<64x1xf32> to vector<64x64xf32>
    %54 = arith.mulf %49, %53 : vector<64x64xf32>
    %55 = arith.truncf %54 : vector<64x64xf32> to vector<64x64xbf16>
    %56 = arith.truncf %41 : vector<64x64xf32> to vector<64x64xbf16>
    %cst_23 = arith.constant dense<0.000000e+00> : vector<64x64xf32>
    %57 = tpu.matmul %55, %56, %cst_23 {dimension_numbers = #tpu.dot_dimension_numbers<[1], [0], [0], [1], [0, 0, 1, 1], [], []>} : vector<64x64xbf16>, vector<64x64xbf16>, vector<64x64xf32> -> vector<64x64xf32>
    %c0_24 = arith.constant 0 : index
    %c0_25 = arith.constant 0 : index
    %58 = vector.load %arg7[%c0_24, %c0_25] : memref<64x64xbf16, #tpu.memory_space<vmem>>, vector<64x64xbf16>
    %59 = arith.truncf %57 : vector<64x64xf32> to vector<64x64xbf16>
    %cst_26 = arith.constant dense<0.000000e+00> : vector<64x64xf32>
    %60 = tpu.matmul %59, %58, %cst_26 {dimension_numbers = #tpu.dot_dimension_numbers<[1], [0], [0], [1], [0, 0, 1, 1], [], []>} : vector<64x64xbf16>, vector<64x64xbf16>, vector<64x64xf32> -> vector<64x64xf32>
    %61 = arith.addf %8, %60 : vector<64x64xf32>
    %62 = vector.extract_strided_slice %0 {offsets = [4, 0], sizes = [1, 64], strides = [1, 1]} : vector<6x64xf32> to vector<1x64xf32>
    %63 = vector.broadcast %62 : vector<1x64xf32> to vector<64x64xf32>
    %64 = arith.addf %61, %63 : vector<64x64xf32>
    %65 = vector.extract_strided_slice %0 {offsets = [2, 0], sizes = [1, 64], strides = [1, 1]} : vector<6x64xf32> to vector<1x64xf32>
    %66 = vector.extract_strided_slice %0 {offsets = [3, 0], sizes = [1, 64], strides = [1, 1]} : vector<6x64xf32> to vector<1x64xf32>
    %cst_27 = arith.constant dense<0.000000e+00> : vector<64xf32>
    %67 = vector.multi_reduction <add>, %64, %cst_27 [1] : vector<64x64xf32> to vector<64xf32>
    %68 = vector.shape_cast %67 : vector<64xf32> to vector<64x1xf32>
    %cst_28 = arith.constant 6.400000e+01 : f32
    %69 = vector.broadcast %cst_28 : f32 to vector<64x1xf32>
    %70 = arith.divf %68, %69 : vector<64x1xf32>
    %71 = vector.broadcast %70 : vector<64x1xf32> to vector<64x64xf32>
    %72 = arith.subf %64, %71 : vector<64x64xf32>
    %73 = arith.mulf %72, %72 : vector<64x64xf32>
    %cst_29 = arith.constant dense<0.000000e+00> : vector<64xf32>
    %74 = vector.multi_reduction <add>, %73, %cst_29 [1] : vector<64x64xf32> to vector<64xf32>
    %75 = vector.shape_cast %74 : vector<64xf32> to vector<64x1xf32>
    %cst_30 = arith.constant 6.400000e+01 : f32
    %76 = vector.broadcast %cst_30 : f32 to vector<64x1xf32>
    %77 = arith.divf %75, %76 : vector<64x1xf32>
    %78 = vector.broadcast %70 : vector<64x1xf32> to vector<64x64xf32>
    %79 = arith.subf %64, %78 : vector<64x64xf32>
    %cst_31 = arith.constant 9.99999974E-6 : f32
    %80 = vector.broadcast %cst_31 : f32 to vector<64x1xf32>
    %81 = arith.addf %77, %80 : vector<64x1xf32>
    %82 = math.rsqrt %81 : vector<64x1xf32>
    %83 = vector.broadcast %82 : vector<64x1xf32> to vector<64x64xf32>
    %84 = arith.mulf %79, %83 : vector<64x64xf32>
    %85 = vector.broadcast %65 : vector<1x64xf32> to vector<64x64xf32>
    %86 = arith.mulf %84, %85 : vector<64x64xf32>
    %87 = vector.broadcast %66 : vector<1x64xf32> to vector<64x64xf32>
    %88 = arith.addf %86, %87 : vector<64x64xf32>
    %c0_32 = arith.constant 0 : index
    %c0_33 = arith.constant 0 : index
    %89 = vector.load %arg8[%c0_32, %c0_33] : memref<64x256xbf16, #tpu.memory_space<vmem>>, vector<64x256xbf16>
    %90 = arith.truncf %88 : vector<64x64xf32> to vector<64x64xbf16>
    %cst_34 = arith.constant dense<0.000000e+00> : vector<64x256xf32>
    %91 = tpu.matmul %90, %89, %cst_34 {dimension_numbers = #tpu.dot_dimension_numbers<[1], [0], [0], [1], [0, 0, 1, 1], [], []>} : vector<64x64xbf16>, vector<64x256xbf16>, vector<64x256xf32> -> vector<64x256xf32>
    %c0_35 = arith.constant 0 : index
    %c0_36 = arith.constant 0 : index
    %92 = vector.load %arg9[%c0_35, %c0_36] : memref<1x256xf32, #tpu.memory_space<vmem>>, vector<1x256xf32>
    %93 = vector.broadcast %92 : vector<1x256xf32> to vector<64x256xf32>
    %94 = arith.addf %91, %93 : vector<64x256xf32>
    %95 = arith.mulf %94, %94 : vector<64x256xf32>
    %96 = arith.mulf %94, %95 : vector<64x256xf32>
    %cst_37 = arith.constant 4.471500e-02 : f32
    %97 = vector.broadcast %cst_37 : f32 to vector<64x256xf32>
    %98 = arith.mulf %97, %96 : vector<64x256xf32>
    %99 = arith.addf %94, %98 : vector<64x256xf32>
    %cst_38 = arith.constant 0.797884583 : f32
    %100 = vector.broadcast %cst_38 : f32 to vector<64x256xf32>
    %101 = arith.mulf %100, %99 : vector<64x256xf32>
    %102 = math.tanh %101 : vector<64x256xf32>
    %cst_39 = arith.constant 1.000000e+00 : f32
    %103 = vector.broadcast %cst_39 : f32 to vector<64x256xf32>
    %104 = arith.addf %103, %102 : vector<64x256xf32>
    %cst_40 = arith.constant 5.000000e-01 : f32
    %105 = vector.broadcast %cst_40 : f32 to vector<64x256xf32>
    %106 = arith.mulf %105, %104 : vector<64x256xf32>
    %107 = arith.mulf %94, %106 : vector<64x256xf32>
    %c0_41 = arith.constant 0 : index
    %c0_42 = arith.constant 0 : index
    %108 = vector.load %arg10[%c0_41, %c0_42] : memref<256x64xbf16, #tpu.memory_space<vmem>>, vector<256x64xbf16>
    %109 = arith.truncf %107 : vector<64x256xf32> to vector<64x256xbf16>
    %cst_43 = arith.constant dense<0.000000e+00> : vector<64x64xf32>
    %110 = tpu.matmul %109, %108, %cst_43 {dimension_numbers = #tpu.dot_dimension_numbers<[1], [0], [0], [1], [0, 0, 1, 1], [], []>} : vector<64x256xbf16>, vector<256x64xbf16>, vector<64x64xf32> -> vector<64x64xf32>
    %111 = arith.addf %64, %110 : vector<64x64xf32>
    %112 = vector.extract_strided_slice %0 {offsets = [5, 0], sizes = [1, 64], strides = [1, 1]} : vector<6x64xf32> to vector<1x64xf32>
    %113 = vector.broadcast %112 : vector<1x64xf32> to vector<64x64xf32>
    %114 = arith.addf %111, %113 : vector<64x64xf32>
    %c0_44 = arith.constant 0 : index
    %c0_45 = arith.constant 0 : index
    %115 = vector.load %arg11[%c0_44, %c0_45] : memref<64x32xbf16, #tpu.memory_space<vmem>>, vector<64x32xbf16>
    %116 = arith.truncf %114 : vector<64x64xf32> to vector<64x64xbf16>
    %cst_46 = arith.constant dense<0.000000e+00> : vector<64x32xf32>
    %117 = tpu.matmul %116, %115, %cst_46 {dimension_numbers = #tpu.dot_dimension_numbers<[1], [0], [0], [1], [0, 0, 1, 1], [], []>} : vector<64x64xbf16>, vector<64x32xbf16>, vector<64x32xf32> -> vector<64x32xf32>
    %118 = vector.extract_strided_slice %1 {offsets = [0, 0], sizes = [1, 32], strides = [1, 1]} : vector<13x32xf32> to vector<1x32xf32>
    %119 = vector.broadcast %118 : vector<1x32xf32> to vector<64x32xf32>
    %120 = arith.addf %117, %119 : vector<64x32xf32>
    %121 = vector.extract_strided_slice %1 {offsets = [1, 0], sizes = [1, 32], strides = [1, 1]} : vector<13x32xf32> to vector<1x32xf32>
    %122 = vector.extract_strided_slice %1 {offsets = [2, 0], sizes = [1, 32], strides = [1, 1]} : vector<13x32xf32> to vector<1x32xf32>
    %cst_47 = arith.constant dense<0.000000e+00> : vector<64xf32>
    %123 = vector.multi_reduction <add>, %120, %cst_47 [1] : vector<64x32xf32> to vector<64xf32>
    %124 = vector.shape_cast %123 : vector<64xf32> to vector<64x1xf32>
    %cst_48 = arith.constant 3.200000e+01 : f32
    %125 = vector.broadcast %cst_48 : f32 to vector<64x1xf32>
    %126 = arith.divf %124, %125 : vector<64x1xf32>
    %127 = vector.broadcast %126 : vector<64x1xf32> to vector<64x32xf32>
    %128 = arith.subf %120, %127 : vector<64x32xf32>
    %129 = arith.mulf %128, %128 : vector<64x32xf32>
    %cst_49 = arith.constant dense<0.000000e+00> : vector<64xf32>
    %130 = vector.multi_reduction <add>, %129, %cst_49 [1] : vector<64x32xf32> to vector<64xf32>
    %131 = vector.shape_cast %130 : vector<64xf32> to vector<64x1xf32>
    %cst_50 = arith.constant 3.200000e+01 : f32
    %132 = vector.broadcast %cst_50 : f32 to vector<64x1xf32>
    %133 = arith.divf %131, %132 : vector<64x1xf32>
    %134 = vector.broadcast %126 : vector<64x1xf32> to vector<64x32xf32>
    %135 = arith.subf %120, %134 : vector<64x32xf32>
    %cst_51 = arith.constant 9.99999997E-7 : f32
    %136 = vector.broadcast %cst_51 : f32 to vector<64x1xf32>
    %137 = arith.addf %133, %136 : vector<64x1xf32>
    %138 = math.rsqrt %137 : vector<64x1xf32>
    %139 = vector.broadcast %138 : vector<64x1xf32> to vector<64x32xf32>
    %140 = arith.mulf %135, %139 : vector<64x32xf32>
    %141 = vector.broadcast %121 : vector<1x32xf32> to vector<64x32xf32>
    %142 = arith.mulf %140, %141 : vector<64x32xf32>
    %143 = vector.broadcast %122 : vector<1x32xf32> to vector<64x32xf32>
    %144 = arith.addf %142, %143 : vector<64x32xf32>
    %c0_52 = arith.constant 0 : index
    %c0_53 = arith.constant 0 : index
    %c0_54 = arith.constant 0 : index
    %145 = vector.load %arg17[%c0_52, %c0_53, %c0_54] : memref<1x64x32xf32, #tpu.memory_space<vmem>>, vector<1x64x32xf32>
    %146 = vector.shape_cast %145 : vector<1x64x32xf32> to vector<64x32xf32>
    %147 = vector.shape_cast %144 : vector<64x32xf32> to vector<1x64x32xf32>
    tpu.vector_store %arg17[%c0_52, %c0_53, %c0_54], %147 {strides = array<i32>} : memref<1x64x32xf32, #tpu.memory_space<vmem>>, vector<1x64x32xf32>,
    %c0_55 = arith.constant 0 : index
    %c0_56 = arith.constant 0 : index
    %c0_57 = arith.constant 0 : index
    %148 = vector.load %arg2[%c0_55, %c0_56, %c0_57] : memref<1x4x32xf32, #tpu.memory_space<vmem>>, vector<1x4x32xf32>
    %149 = vector.shape_cast %148 : vector<1x4x32xf32> to vector<4x32xf32>
    %150 = vector.extract_strided_slice %1 {offsets = [3, 0], sizes = [1, 32], strides = [1, 1]} : vector<13x32xf32> to vector<1x32xf32>
    %151 = vector.broadcast %150 : vector<1x32xf32> to vector<64x32xf32>
    %152 = arith.addf %144, %151 : vector<64x32xf32>
    %c0_58 = arith.constant 0 : index
    %c0_59 = arith.constant 0 : index
    %c0_60 = arith.constant 0 : index
    %153 = vector.load %arg15[%c0_58, %c0_59, %c0_60] : memref<5x32x32xbf16, #tpu.memory_space<vmem>>, vector<1x32x32xbf16>
    %154 = vector.shape_cast %153 : vector<1x32x32xbf16> to vector<32x32xbf16>
    %155 = arith.truncf %149 : vector<4x32xf32> to vector<4x32xbf16>
    %cst_61 = arith.constant dense<0.000000e+00> : vector<4x32xf32>
    %156 = tpu.matmul %155, %154, %cst_61 {dimension_numbers = #tpu.dot_dimension_numbers<[1], [0], [0], [1], [0, 0, 1, 1], [], []>} : vector<4x32xbf16>, vector<32x32xbf16>, vector<4x32xf32> -> vector<4x32xf32>
    %157 = vector.extract_strided_slice %1 {offsets = [4, 0], sizes = [1, 32], strides = [1, 1]} : vector<13x32xf32> to vector<1x32xf32>
    %158 = vector.broadcast %157 : vector<1x32xf32> to vector<4x32xf32>
    %159 = arith.addf %156, %158 : vector<4x32xf32>
    %c0_62 = arith.constant 0 : index
    %c0_63 = arith.constant 0 : index
    %160 = vector.load %arg13[%c0_62, %c0_63] : memref<32x64xbf16, #tpu.memory_space<vmem>>, vector<32x64xbf16>
    %161 = arith.truncf %152 : vector<64x32xf32> to vector<64x32xbf16>
    %cst_64 = arith.constant dense<0.000000e+00> : vector<64x64xf32>
    %162 = tpu.matmul %161, %160, %cst_64 {dimension_numbers = #tpu.dot_dimension_numbers<[1], [0], [0], [1], [0, 0, 1, 1], [], []>} : vector<64x32xbf16>, vector<32x64xbf16>, vector<64x64xf32> -> vector<64x64xf32>
    %c0_65 = arith.constant 0 : index
    %c0_66 = arith.constant 0 : index
    %163 = vector.load %arg14[%c0_65, %c0_66] : memref<64x64xf32, #tpu.memory_space<vmem>>, vector<64x64xf32>
    %164 = arith.addf %162, %163 : vector<64x64xf32>
    %165 = vector.extract_strided_slice %164 {offsets = [0, 0], sizes = [64, 32], strides = [1, 1]} : vector<64x64xf32> to vector<64x32xf32>
    %166 = vector.extract_strided_slice %164 {offsets = [0, 32], sizes = [64, 32], strides = [1, 1]} : vector<64x64xf32> to vector<64x32xf32>
    %167 = arith.truncf %159 : vector<4x32xf32> to vector<4x32xbf16>
    %168 = arith.truncf %165 : vector<64x32xf32> to vector<64x32xbf16>
    %cst_67 = arith.constant dense<0.000000e+00> : vector<4x64xf32>
    %169 = tpu.matmul %167, %168, %cst_67 {dimension_numbers = #tpu.dot_dimension_numbers<[1], [1], [0], [0], [0, 0, 1, 0], [], []>} : vector<4x32xbf16>, vector<64x32xbf16>, vector<4x64xf32> -> vector<4x64xf32>
    %cst_68 = arith.constant dense<0xFF800000> : vector<4xf32>
    %170 = vector.multi_reduction <maximumf>, %169, %cst_68 [1] : vector<4x64xf32> to vector<4xf32>
    %171 = vector.shape_cast %170 : vector<4xf32> to vector<4x1xf32>
    %172 = vector.broadcast %171 : vector<4x1xf32> to vector<4x64xf32>
    %173 = arith.subf %169, %172 : vector<4x64xf32>
    %174 = math.exp %173 : vector<4x64xf32>
    %cst_69 = arith.constant dense<0.000000e+00> : vector<4xf32>
    %175 = vector.multi_reduction <add>, %174, %cst_69 [1] : vector<4x64xf32> to vector<4xf32>
    %176 = vector.shape_cast %175 : vector<4xf32> to vector<4x1xf32>
    %177 = tpu.reciprocal %176 {approx = true} : vector<4x1xf32> -> vector<4x1xf32>
    %178 = vector.broadcast %177 : vector<4x1xf32> to vector<4x64xf32>
    %179 = arith.mulf %174, %178 : vector<4x64xf32>
    %180 = arith.truncf %179 : vector<4x64xf32> to vector<4x64xbf16>
    %181 = arith.truncf %166 : vector<64x32xf32> to vector<64x32xbf16>
    %cst_70 = arith.constant dense<0.000000e+00> : vector<4x32xf32>
    %182 = tpu.matmul %180, %181, %cst_70 {dimension_numbers = #tpu.dot_dimension_numbers<[1], [0], [0], [1], [0, 0, 1, 1], [], []>} : vector<4x64xbf16>, vector<64x32xbf16>, vector<4x32xf32> -> vector<4x32xf32>
    %c1 = arith.constant 1 : index
    %c0_71 = arith.constant 0 : index
    %c0_72 = arith.constant 0 : index
    %183 = vector.load %arg15[%c1, %c0_71, %c0_72] : memref<5x32x32xbf16, #tpu.memory_space<vmem>>, vector<1x32x32xbf16>
    %184 = vector.shape_cast %183 : vector<1x32x32xbf16> to vector<32x32xbf16>
    %185 = arith.truncf %182 : vector<4x32xf32> to vector<4x32xbf16>
    %cst_73 = arith.constant dense<0.000000e+00> : vector<4x32xf32>
    %186 = tpu.matmul %185, %184, %cst_73 {dimension_numbers = #tpu.dot_dimension_numbers<[1], [0], [0], [1], [0, 0, 1, 1], [], []>} : vector<4x32xbf16>, vector<32x32xbf16>, vector<4x32xf32> -> vector<4x32xf32>
    %187 = arith.addf %149, %186 : vector<4x32xf32>
    %188 = vector.extract_strided_slice %1 {offsets = [5, 0], sizes = [1, 32], strides = [1, 1]} : vector<13x32xf32> to vector<1x32xf32>
    %189 = vector.broadcast %188 : vector<1x32xf32> to vector<4x32xf32>
    %190 = arith.addf %187, %189 : vector<4x32xf32>
    %191 = vector.extract_strided_slice %1 {offsets = [6, 0], sizes = [1, 32], strides = [1, 1]} : vector<13x32xf32> to vector<1x32xf32>
    %192 = vector.extract_strided_slice %1 {offsets = [7, 0], sizes = [1, 32], strides = [1, 1]} : vector<13x32xf32> to vector<1x32xf32>
    %cst_74 = arith.constant dense<0.000000e+00> : vector<4xf32>
    %193 = vector.multi_reduction <add>, %190, %cst_74 [1] : vector<4x32xf32> to vector<4xf32>
    %194 = vector.shape_cast %193 : vector<4xf32> to vector<4x1xf32>
    %cst_75 = arith.constant 3.200000e+01 : f32
    %195 = vector.broadcast %cst_75 : f32 to vector<4x1xf32>
    %196 = arith.divf %194, %195 : vector<4x1xf32>
    %197 = vector.broadcast %196 : vector<4x1xf32> to vector<4x32xf32>
    %198 = arith.subf %190, %197 : vector<4x32xf32>
    %199 = arith.mulf %198, %198 : vector<4x32xf32>
    %cst_76 = arith.constant dense<0.000000e+00> : vector<4xf32>
    %200 = vector.multi_reduction <add>, %199, %cst_76 [1] : vector<4x32xf32> to vector<4xf32>
    %201 = vector.shape_cast %200 : vector<4xf32> to vector<4x1xf32>
    %cst_77 = arith.constant 3.200000e+01 : f32
    %202 = vector.broadcast %cst_77 : f32 to vector<4x1xf32>
    %203 = arith.divf %201, %202 : vector<4x1xf32>
    %204 = vector.broadcast %196 : vector<4x1xf32> to vector<4x32xf32>
    %205 = arith.subf %190, %204 : vector<4x32xf32>
    %cst_78 = arith.constant 9.99999974E-6 : f32
    %206 = vector.broadcast %cst_78 : f32 to vector<4x1xf32>
    %207 = arith.addf %203, %206 : vector<4x1xf32>
    %208 = math.rsqrt %207 : vector<4x1xf32>
    %209 = vector.broadcast %208 : vector<4x1xf32> to vector<4x32xf32>
    %210 = arith.mulf %205, %209 : vector<4x32xf32>
    %211 = vector.broadcast %191 : vector<1x32xf32> to vector<4x32xf32>
    %212 = arith.mulf %210, %211 : vector<4x32xf32>
    %213 = vector.broadcast %192 : vector<1x32xf32> to vector<4x32xf32>
    %214 = arith.addf %212, %213 : vector<4x32xf32>
    %c2 = arith.constant 2 : index
    %c0_79 = arith.constant 0 : index
    %c0_80 = arith.constant 0 : index
    %215 = vector.load %arg15[%c2, %c0_79, %c0_80] : memref<5x32x32xbf16, #tpu.memory_space<vmem>>, vector<1x32x32xbf16>
    %216 = vector.shape_cast %215 : vector<1x32x32xbf16> to vector<32x32xbf16>
    %217 = arith.truncf %214 : vector<4x32xf32> to vector<4x32xbf16>
    %cst_81 = arith.constant dense<0.000000e+00> : vector<4x32xf32>
    %218 = tpu.matmul %217, %216, %cst_81 {dimension_numbers = #tpu.dot_dimension_numbers<[1], [0], [0], [1], [0, 0, 1, 1], [], []>} : vector<4x32xbf16>, vector<32x32xbf16>, vector<4x32xf32> -> vector<4x32xf32>
    %219 = vector.extract_strided_slice %1 {offsets = [8, 0], sizes = [1, 32], strides = [1, 1]} : vector<13x32xf32> to vector<1x32xf32>
    %220 = vector.broadcast %219 : vector<1x32xf32> to vector<4x32xf32>
    %221 = arith.addf %218, %220 : vector<4x32xf32>
    %cst_82 = arith.constant 0.000000e+00 : f32
    %222 = vector.broadcast %cst_82 : f32 to vector<4x32xf32>
    %223 = arith.maximumf %221, %222 : vector<4x32xf32>
    %c3 = arith.constant 3 : index
    %c0_83 = arith.constant 0 : index
    %c0_84 = arith.constant 0 : index
    %224 = vector.load %arg15[%c3, %c0_83, %c0_84] : memref<5x32x32xbf16, #tpu.memory_space<vmem>>, vector<1x32x32xbf16>
    %225 = vector.shape_cast %224 : vector<1x32x32xbf16> to vector<32x32xbf16>
    %226 = arith.truncf %223 : vector<4x32xf32> to vector<4x32xbf16>
    %cst_85 = arith.constant dense<0.000000e+00> : vector<4x32xf32>
    %227 = tpu.matmul %226, %225, %cst_85 {dimension_numbers = #tpu.dot_dimension_numbers<[1], [0], [0], [1], [0, 0, 1, 1], [], []>} : vector<4x32xbf16>, vector<32x32xbf16>, vector<4x32xf32> -> vector<4x32xf32>
    %228 = vector.extract_strided_slice %1 {offsets = [9, 0], sizes = [1, 32], strides = [1, 1]} : vector<13x32xf32> to vector<1x32xf32>
    %229 = vector.broadcast %228 : vector<1x32xf32> to vector<4x32xf32>
    %230 = arith.addf %227, %229 : vector<4x32xf32>
    %231 = arith.truncf %230 : vector<4x32xf32> to vector<4x32xbf16>
    %232 = arith.truncf %152 : vector<64x32xf32> to vector<64x32xbf16>
    %cst_86 = arith.constant dense<0.000000e+00> : vector<4x64xf32>
    %233 = tpu.matmul %231, %232, %cst_86 {dimension_numbers = #tpu.dot_dimension_numbers<[1], [1], [0], [0], [0, 0, 1, 0], [], []>} : vector<4x32xbf16>, vector<64x32xbf16>, vector<4x64xf32> -> vector<4x64xf32>
    %c4 = arith.constant 4 : index
    %c0_87 = arith.constant 0 : index
    %c0_88 = arith.constant 0 : index
    %234 = vector.load %arg15[%c4, %c0_87, %c0_88] : memref<5x32x32xbf16, #tpu.memory_space<vmem>>, vector<1x32x32xbf16>
    %235 = vector.shape_cast %234 : vector<1x32x32xbf16> to vector<32x32xbf16>
    %236 = arith.truncf %214 : vector<4x32xf32> to vector<4x32xbf16>
    %cst_89 = arith.constant dense<0.000000e+00> : vector<4x32xf32>
    %237 = tpu.matmul %236, %235, %cst_89 {dimension_numbers = #tpu.dot_dimension_numbers<[1], [0], [0], [1], [0, 0, 1, 1], [], []>} : vector<4x32xbf16>, vector<32x32xbf16>, vector<4x32xf32> -> vector<4x32xf32>
    %238 = vector.extract_strided_slice %1 {offsets = [10, 0], sizes = [1, 32], strides = [1, 1]} : vector<13x32xf32> to vector<1x32xf32>
    %239 = vector.broadcast %238 : vector<1x32xf32> to vector<4x32xf32>
    %240 = arith.addf %237, %239 : vector<4x32xf32>
    %cst_90 = arith.constant 0.000000e+00 : f32
    %241 = vector.broadcast %cst_90 : f32 to vector<4x32xf32>
    %242 = arith.maximumf %240, %241 : vector<4x32xf32>
    %243 = vector.extract_strided_slice %1 {offsets = [11, 0], sizes = [1, 32], strides = [1, 1]} : vector<13x32xf32> to vector<1x32xf32>
    %244 = vector.broadcast %243 : vector<1x32xf32> to vector<4x32xf32>
    %245 = arith.mulf %242, %244 : vector<4x32xf32>
    %cst_91 = arith.constant dense<0.000000e+00> : vector<4xf32>
    %246 = vector.multi_reduction <add>, %245, %cst_91 [1] : vector<4x32xf32> to vector<4xf32>
    %247 = vector.shape_cast %246 : vector<4xf32> to vector<4x1xf32>
    %248 = vector.extract_strided_slice %1 {offsets = [12, 0], sizes = [1, 1], strides = [1, 1]} : vector<13x32xf32> to vector<1x1xf32>
    %249 = vector.broadcast %248 : vector<1x1xf32> to vector<4x1xf32>
    %250 = arith.addf %247, %249 : vector<4x1xf32>
    %251 = vector.extract_strided_slice %233 {offsets = [1, 0], sizes = [1, 64], strides = [1, 1]} : vector<4x64xf32> to vector<1x64xf32>
    %252 = vector.extract_strided_slice %250 {offsets = [0, 0], sizes = [1, 1], strides = [1, 1]} : vector<4x1xf32> to vector<1x1xf32>
    %253 = vector.shape_cast %252 : vector<1x1xf32> to vector<1x1xf32>
    %254 = vector.broadcast %253 : vector<1x1xf32> to vector<1x64xf32>
    %255 = tpu.concatenate %251, %254 in 1 : vector<1x64xf32>, vector<1x64xf32> -> vector<1x128xf32>
    %c0_92 = arith.constant 0 : index
    %c0_93 = arith.constant 0 : index
    %c0_94 = arith.constant 0 : index
    %256 = vector.load %arg18[%c0_92, %c0_93, %c0_94] : memref<1x1x128xf32, #tpu.memory_space<vmem>>, vector<1x1x128xf32>
    %257 = vector.shape_cast %256 : vector<1x1x128xf32> to vector<1x128xf32>
    %258 = vector.shape_cast %255 : vector<1x128xf32> to vector<1x1x128xf32>
    tpu.vector_store %arg18[%c0_92, %c0_93, %c0_94], %258 {strides = array<i32>} : memref<1x1x128xf32, #tpu.memory_space<vmem>>, vector<1x1x128xf32>,
    return
  }
  func.func @transform_0(%arg0: i32) -> (i32, i32, i32) {
    %c0_i32 = arith.constant 0 : i32
    %c0_i32_0 = arith.constant 0 : i32
    %c0_i32_1 = arith.constant 0 : i32
    return %arg0, %c0_i32, %c0_i32_0 : i32, i32, i32
  }
  func.func @transform_1(%arg0: i32) -> (i32, i32, i32) {
    %c0_i32 = arith.constant 0 : i32
    %c0_i32_0 = arith.constant 0 : i32
    %c0_i32_1 = arith.constant 0 : i32
    return %arg0, %c0_i32, %c0_i32_0 : i32, i32, i32
  }
  func.func @transform_2(%arg0: i32) -> (i32, i32) {
    %c0_i32 = arith.constant 0 : i32
    %c0_i32_0 = arith.constant 0 : i32
    %c0_i32_1 = arith.constant 0 : i32
    return %c0_i32, %c0_i32_0 : i32, i32
  }
  func.func @transform_3(%arg0: i32) -> (i32, i32) {
    %c0_i32 = arith.constant 0 : i32
    %c0_i32_0 = arith.constant 0 : i32
    %c0_i32_1 = arith.constant 0 : i32
    return %c0_i32, %c0_i32_0 : i32, i32
  }
  func.func @transform_4(%arg0: i32) -> (i32, i32) {
    %c0_i32 = arith.constant 0 : i32
    %c0_i32_0 = arith.constant 0 : i32
    %c0_i32_1 = arith.constant 0 : i32
    return %c0_i32, %c0_i32_0 : i32, i32
  }
  func.func @transform_5(%arg0: i32) -> (i32, i32) {
    %c0_i32 = arith.constant 0 : i32
    %c0_i32_0 = arith.constant 0 : i32
    %c0_i32_1 = arith.constant 0 : i32
    return %c0_i32, %c0_i32_0 : i32, i32
  }
  func.func @transform_6(%arg0: i32) -> (i32, i32) {
    %c0_i32 = arith.constant 0 : i32
    %c0_i32_0 = arith.constant 0 : i32
    %c0_i32_1 = arith.constant 0 : i32
    return %c0_i32, %c0_i32_0 : i32, i32
  }
  func.func @transform_7(%arg0: i32) -> (i32, i32) {
    %c0_i32 = arith.constant 0 : i32
    %c0_i32_0 = arith.constant 0 : i32
    %c0_i32_1 = arith.constant 0 : i32
    return %c0_i32, %c0_i32_0 : i32, i32
  }
  func.func @transform_8(%arg0: i32) -> (i32, i32) {
    %c0_i32 = arith.constant 0 : i32
    %c0_i32_0 = arith.constant 0 : i32
    %c0_i32_1 = arith.constant 0 : i32
    return %c0_i32, %c0_i32_0 : i32, i32
  }
  func.func @transform_9(%arg0: i32) -> (i32, i32) {
    %c0_i32 = arith.constant 0 : i32
    %c0_i32_0 = arith.constant 0 : i32
    %c0_i32_1 = arith.constant 0 : i32
    return %c0_i32, %c0_i32_0 : i32, i32
  }
  func.func @transform_10(%arg0: i32) -> (i32, i32) {
    %c0_i32 = arith.constant 0 : i32
    %c0_i32_0 = arith.constant 0 : i32
    %c0_i32_1 = arith.constant 0 : i32
    return %c0_i32, %c0_i32_0 : i32, i32
  }
  func.func @transform_11(%arg0: i32) -> (i32, i32) {
    %c0_i32 = arith.constant 0 : i32
    %c0_i32_0 = arith.constant 0 : i32
    %c0_i32_1 = arith.constant 0 : i32
    return %c0_i32, %c0_i32_0 : i32, i32
  }
  func.func @transform_12(%arg0: i32) -> (i32, i32) {
    %c0_i32 = arith.constant 0 : i32
    %c0_i32_0 = arith.constant 0 : i32
    %c0_i32_1 = arith.constant 0 : i32
    return %c0_i32, %c0_i32_0 : i32, i32
  }
  func.func @transform_13(%arg0: i32) -> (i32, i32) {
    %c0_i32 = arith.constant 0 : i32
    %c0_i32_0 = arith.constant 0 : i32
    %c0_i32_1 = arith.constant 0 : i32
    return %c0_i32, %c0_i32_0 : i32, i32
  }
  func.func @transform_14(%arg0: i32) -> (i32, i32, i32) {
    %c0_i32 = arith.constant 0 : i32
    %c0_i32_0 = arith.constant 0 : i32
    %c0_i32_1 = arith.constant 0 : i32
    %c0_i32_2 = arith.constant 0 : i32
    return %c0_i32, %c0_i32_0, %c0_i32_1 : i32, i32, i32
  }
  func.func @transform_15(%arg0: i32) -> (i32, i32) {
    %c0_i32 = arith.constant 0 : i32
    %c0_i32_0 = arith.constant 0 : i32
    %c0_i32_1 = arith.constant 0 : i32
    return %c0_i32, %c0_i32_0 : i32, i32
  }
  func.func @transform_16(%arg0: i32) -> (i32, i32, i32) {
    %c0_i32 = arith.constant 0 : i32
    %c0_i32_0 = arith.constant 0 : i32
    %c0_i32_1 = arith.constant 0 : i32
    return %arg0, %c0_i32, %c0_i32_0 : i32, i32, i32
  }
  func.func @transform_17(%arg0: i32) -> (i32, i32, i32) {
    %c0_i32 = arith.constant 0 : i32
    %c0_i32_0 = arith.constant 0 : i32
    %c0_i32_1 = arith.constant 0 : i32
    return %arg0, %c0_i32, %c0_i32_0 : i32, i32, i32
  }
}

</mosaic_0001>

<llo_original>
// kernel: _forward_batched.1
$region0: #{_forward_batched.1}
  #allocation0 [shape = 'u32[]', space=smem, size = 0x4, offset = 0x4, fixed_abs, tag = 'smem constant byte address 0x4 - core index']
  #allocation1 [shape = 'u32[72,128]{1,0:T(1,128)}', space=vmem, size = 0x9000, scoped, tag = 'internal scratch']
  %s0 = inlined_call_operand.vmem [shape: f32[2,64,192], index: 0, kind: input, shape index: {}]
  %s1 = inlined_call_operand.vmem [shape: f32[2,4,32], index: 1, kind: input, shape index: {}]
  %s2 = inlined_call_operand.vmem [shape: bf16[192,64], index: 2, kind: input, shape index: {}]
  %s3 = inlined_call_operand.vmem [shape: f32[64,64], index: 3, kind: input, shape index: {}]
  %s4 = inlined_call_operand.vmem [shape: bf16[64,192], index: 4, kind: input, shape index: {}]
  %s5 = inlined_call_operand.vmem [shape: f32[1,192], index: 5, kind: input, shape index: {}]
  %s6 = inlined_call_operand.vmem [shape: bf16[64,64], index: 6, kind: input, shape index: {}]
  %s7 = inlined_call_operand.vmem [shape: bf16[64,256], index: 7, kind: input, shape index: {}]
  %s8 = inlined_call_operand.vmem [shape: f32[1,256], index: 8, kind: input, shape index: {}]
  %s9 = inlined_call_operand.vmem [shape: bf16[256,64], index: 9, kind: input, shape index: {}]
  %s10 = inlined_call_operand.vmem [shape: bf16[64,32], index: 10, kind: input, shape index: {}]
  %s11 = inlined_call_operand.vmem [shape: f32[6,64], index: 11, kind: input, shape index: {}]
  %s12 = inlined_call_operand.vmem [shape: bf16[32,64], index: 12, kind: input, shape index: {}]
  %s13 = inlined_call_operand.vmem [shape: f32[64,64], index: 13, kind: input, shape index: {}]
  %s14 = inlined_call_operand.vmem [shape: bf16[5,32,32], index: 14, kind: input, shape index: {}]
  %s15 = inlined_call_operand.vmem [shape: f32[13,32], index: 15, kind: input, shape index: {}]
  %s16 = inlined_call_operand.hbm [shape: f32[2,64,32], index: 16, kind: output, shape index: {0}]
  %s17 = inlined_call_operand.vmem [shape: f32[2,1,128], index: 17, kind: output, shape index: {1}]
  %18 = xla_tuple %s16, %s17
  %s19 = sld [smem:[#allocation0]]
  $region105: #{_forward_batched.1} parent=0
    _
  %s21 = ssub.s32 1, %s19
  %s22 = scalar_select 0, %s21, %s19
  $region1: #{_forward_batched.1} parent=0
    #allocation2 [shape = 'u8[65536]{0}', space=vmem, size = 0x10000, scoped, tag = 'output window, operand 0']
    #allocation3 [shape = 's32[2]{0}', space=sflag, size = 0x8, scoped, tag = 'scoped memory for _forward_batched.1']
    %23 = vsyncpa [#allocation3], 0
    %s24 = scalar_lea.sflag [#allocation3], 1
    %25 = vsyncpa %s24, 0
    loop: start=0, step=1, limit=4
    $region2: #{_forward_batched.1} parent=1 // loop_pre_header
      _
    $region3: #{_forward_batched.1} parent=1 // loop_header
      %s27 = sphi 0, %s31
      %p28 = scmp.ge.s32.totalorder %s27, 4
      %s37 = sphi 0, %s39
      %s40 = sphi 0, %s37
      %s41 = sphi 0, %s40
      %s57 = sphi 0, %s41
      %s63 = sphi 0, %s65
      %s66 = sphi 0, %s63
      %s67 = sphi 0, %s66
      %s83 = sphi 0, %s67
      %s87 = sphi 0, %s87
      %s89 = sphi 0, %s87
      %s90 = sphi 0, %s89
      %s104 = sphi 0, %s90
      %s108 = sphi 0, %s108
      %s110 = sphi 0, %s108
      %s111 = sphi 0, %s110
      %s125 = sphi 0, %s111
      %s129 = sphi 0, %s129
      %s131 = sphi 0, %s129
      %s132 = sphi 0, %s131
      %s146 = sphi 0, %s132
      %s150 = sphi 0, %s150
      %s152 = sphi 0, %s150
      %s153 = sphi 0, %s152
      %s167 = sphi 0, %s153
      %s171 = sphi 0, %s171
      %s173 = sphi 0, %s171
      %s174 = sphi 0, %s173
      %s188 = sphi 0, %s174
      %s192 = sphi 0, %s192
      %s194 = sphi 0, %s192
      %s195 = sphi 0, %s194
      %s209 = sphi 0, %s195
      %s213 = sphi 0, %s213
      %s215 = sphi 0, %s213
      %s216 = sphi 0, %s215
      %s230 = sphi 0, %s216
      %s234 = sphi 0, %s234
      %s236 = sphi 0, %s234
      %s237 = sphi 0, %s236
      %s251 = sphi 0, %s237
      %s255 = sphi 0, %s255
      %s257 = sphi 0, %s255
      %s258 = sphi 0, %s257
      %s272 = sphi 0, %s258
      %s276 = sphi 0, %s276
      %s278 = sphi 0, %s276
      %s279 = sphi 0, %s278
      %s293 = sphi 0, %s279
      %s297 = sphi 0, %s297
      %s299 = sphi 0, %s297
      %s300 = sphi 0, %s299
      %s314 = sphi 0, %s300
      %s318 = sphi 0, %s318
      %s320 = sphi 0, %s318
      %s321 = sphi 0, %s320
      %s335 = sphi 0, %s321
      %s339 = sphi 0, %s339
      %s341 = sphi 0, %s339
      %s342 = sphi 0, %s341
      %s356 = sphi 0, %s342
      %s360 = sphi 0, %s360
      %s362 = sphi 0, %s360
      %s363 = sphi 0, %s362
      %s377 = sphi 0, %s363
      %s383 = sphi 0, %s385
      %s386 = sphi 0, %s383
      %s387 = sphi 0, %s386
      %s403 = sphi 0, %s387
      %s409 = sphi 0, %s411
      %s412 = sphi 0, %s409
      %s413 = sphi 0, %s412
      %s429 = sphi 0, %s413
    $region4: #{_forward_batched.1} parent=1 // loop_header_branch
      %30 = sbr.rel (%p28) target = $region8
    $region5: #{_forward_batched.1} parent=1 // loop_body
      %s32 = ssub.s32 %s27, 1
      %s33 = ssub.s32 %s27, 2
      %s34 = sadd.s32 %s27, 1
      %s35 = ssub.s32 %s27, %s34
      %p36 = scmp.eq.s32.totalorder %s35, 0
      %s38 = sadd.s32 %s37, 1
      %s39 = scalar_select %p36, %s37, %s38
      %p42 = pneg %p36
      %p43 = scmp.eq.s32.totalorder %s27, 1
      %p44 = por %p42, %p43
      %p45 = scmp.ne.s32.totalorder %s37, %s40
      %p46 = scmp.eq.s32.totalorder %s27, 0
      %p47 = por %p45, %p46
      %p48 = scmp.ne.s32.totalorder %s37, %s40
      %p49 = scmp.eq.s32.totalorder %s32, 1
      %p50 = por %p48, %p49
      %p51 = scmp.ne.s32.totalorder %s40, %s41
      %p52 = scmp.eq.s32.totalorder %s32, 0
      %p53 = por %p51, %p52
      %p54 = scmp.ne.s32.totalorder %s40, %s41
      %p55 = scmp.eq.s32.totalorder %s33, 1
      %p56 = por %p54, %p55
      %p58 = scmp.ne.s32.totalorder %s41, %s57
      %p59 = scmp.eq.s32.totalorder %s33, 0
      %p60 = por %p58, %p59
      %s61 = ssub.s32 %s27, %s34
      %p62 = scmp.eq.s32.totalorder %s61, 0
      %s64 = sadd.s32 %s63, 1
      %s65 = scalar_select %p62, %s63, %s64
      %p68 = pneg %p62
      %p69 = scmp.eq.s32.totalorder %s27, 1
      %p70 = por %p68, %p69
      %p71 = scmp.ne.s32.totalorder %s63, %s66
      %p72 = scmp.eq.s32.totalorder %s27, 0
      %p73 = por %p71, %p72
      %p74 = scmp.ne.s32.totalorder %s63, %s66
      %p75 = scmp.eq.s32.totalorder %s32, 1
      %p76 = por %p74, %p75
      %p77 = scmp.ne.s32.totalorder %s66, %s67
      %p78 = scmp.eq.s32.totalorder %s32, 0
      %p79 = por %p77, %p78
      %p80 = scmp.ne.s32.totalorder %s66, %s67
      %p81 = scmp.eq.s32.totalorder %s33, 1
      %p82 = por %p80, %p81
      %p84 = scmp.ne.s32.totalorder %s67, %s83
      %p85 = scmp.eq.s32.totalorder %s33, 0
      %p86 = por %p84, %p85
      %s88 = sadd.s32 %s87, 1
      %p91 = scmp.eq.s32.totalorder %s27, 1
      %p92 = scmp.ne.s32.totalorder %s87, %s89
      %p93 = scmp.eq.s32.totalorder %s27, 0
      %p94 = por %p92, %p93
      %p95 = scmp.ne.s32.totalorder %s87, %s89
      %p96 = scmp.eq.s32.totalorder %s32, 1
      %p97 = por %p95, %p96
      %p98 = scmp.ne.s32.totalorder %s89, %s90
      %p99 = scmp.eq.s32.totalorder %s32, 0
      %p100 = por %p98, %p99
      %p101 = scmp.ne.s32.totalorder %s89, %s90
      %p102 = scmp.eq.s32.totalorder %s33, 1
      %p103 = por %p101, %p102
      %p105 = scmp.ne.s32.totalorder %s90, %s104
      %p106 = scmp.eq.s32.totalorder %s33, 0
      %p107 = por %p105, %p106
      %s109 = sadd.s32 %s108, 1
      %p112 = scmp.eq.s32.totalorder %s27, 1
      %p113 = scmp.ne.s32.totalorder %s108, %s110
      %p114 = scmp.eq.s32.totalorder %s27, 0
      %p115 = por %p113, %p114
      %p116 = scmp.ne.s32.totalorder %s108, %s110
      %p117 = scmp.eq.s32.totalorder %s32, 1
      %p118 = por %p116, %p117
      %p119 = scmp.ne.s32.totalorder %s110, %s111
      %p120 = scmp.eq.s32.totalorder %s32, 0
      %p121 = por %p119, %p120
      %p122 = scmp.ne.s32.totalorder %s110, %s111
      %p123 = scmp.eq.s32.totalorder %s33, 1
      %p124 = por %p122, %p123
      %p126 = scmp.ne.s32.totalorder %s111, %s125
      %p127 = scmp.eq.s32.totalorder %s33, 0
      %p128 = por %p126, %p127
      %s130 = sadd.s32 %s129, 1
      %p133 = scmp.eq.s32.totalorder %s27, 1
      %p134 = scmp.ne.s32.totalorder %s129, %s131
      %p135 = scmp.eq.s32.totalorder %s27, 0
      %p136 = por %p134, %p135
      %p137 = scmp.ne.s32.totalorder %s129, %s131
      %p138 = scmp.eq.s32.totalorder %s32, 1
      %p139 = por %p137, %p138
      %p140 = scmp.ne.s32.totalorder %s131, %s132
      %p141 = scmp.eq.s32.totalorder %s32, 0
      %p142 = por %p140, %p141
      %p143 = scmp.ne.s32.totalorder %s131, %s132
      %p144 = scmp.eq.s32.totalorder %s33, 1
      %p145 = por %p143, %p144
      %p147 = scmp.ne.s32.totalorder %s132, %s146
      %p148 = scmp.eq.s32.totalorder %s33, 0
      %p149 = por %p147, %p148
      %s151 = sadd.s32 %s150, 1
      %p154 = scmp.eq.s32.totalorder %s27, 1
      %p155 = scmp.ne.s32.totalorder %s150, %s152
      %p156 = scmp.eq.s32.totalorder %s27, 0
      %p157 = por %p155, %p156
      %p158 = scmp.ne.s32.totalorder %s150, %s152
      %p159 = scmp.eq.s32.totalorder %s32, 1
      %p160 = por %p158, %p159
      %p161 = scmp.ne.s32.totalorder %s152, %s153
      %p162 = scmp.eq.s32.totalorder %s32, 0
      %p163 = por %p161, %p162
      %p164 = scmp.ne.s32.totalorder %s152, %s153
      %p165 = scmp.eq.s32.totalorder %s33, 1
      %p166 = por %p164, %p165
      %p168 = scmp.ne.s32.totalorder %s153, %s167
      %p169 = scmp.eq.s32.totalorder %s33, 0
      %p170 = por %p168, %p169
      %s172 = sadd.s32 %s171, 1
      %p175 = scmp.eq.s32.totalorder %s27, 1
      %p176 = scmp.ne.s32.totalorder %s171, %s173
      %p177 = scmp.eq.s32.totalorder %s27, 0
      %p178 = por %p176, %p177
      %p179 = scmp.ne.s32.totalorder %s171, %s173
      %p180 = scmp.eq.s32.totalorder %s32, 1
      %p181 = por %p179, %p180
      %p182 = scmp.ne.s32.totalorder %s173, %s174
      %p183 = scmp.eq.s32.totalorder %s32, 0
      %p184 = por %p182, %p183
      %p185 = scmp.ne.s32.totalorder %s173, %s174
      %p186 = scmp.eq.s32.totalorder %s33, 1
      %p187 = por %p185, %p186
      %p189 = scmp.ne.s32.totalorder %s174, %s188
      %p190 = scmp.eq.s32.totalorder %s33, 0
      %p191 = por %p189, %p190
      %s193 = sadd.s32 %s192, 1
      %p196 = scmp.eq.s32.totalorder %s27, 1
      %p197 = scmp.ne.s32.totalorder %s192, %s194
      %p198 = scmp.eq.s32.totalorder %s27, 0
      %p199 = por %p197, %p198
      %p200 = scmp.ne.s32.totalorder %s192, %s194
      %p201 = scmp.eq.s32.totalorder %s32, 1
      %p202 = por %p200, %p201
      %p203 = scmp.ne.s32.totalorder %s194, %s195
      %p204 = scmp.eq.s32.totalorder %s32, 0
      %p205 = por %p203, %p204
      %p206 = scmp.ne.s32.totalorder %s194, %s195
      %p207 = scmp.eq.s32.totalorder %s33, 1
      %p208 = por %p206, %p207
      %p210 = scmp.ne.s32.totalorder %s195, %s209
      %p211 = scmp.eq.s32.totalorder %s33, 0
      %p212 = por %p210, %p211
      %s214 = sadd.s32 %s213, 1
      %p217 = scmp.eq.s32.totalorder %s27, 1
      %p218 = scmp.ne.s32.totalorder %s213, %s215
      %p219 = scmp.eq.s32.totalorder %s27, 0
      %p220 = por %p218, %p219
      %p221 = scmp.ne.s32.totalorder %s213, %s215
      %p222 = scmp.eq.s32.totalorder %s32, 1
      %p223 = por %p221, %p222
      %p224 = scmp.ne.s32.totalorder %s215, %s216
      %p225 = scmp.eq.s32.totalorder %s32, 0
      %p226 = por %p224, %p225
      %p227 = scmp.ne.s32.totalorder %s215, %s216
      %p228 = scmp.eq.s32.totalorder %s33, 1
      %p229 = por %p227, %p228
      %p231 = scmp.ne.s32.totalorder %s216, %s230
      %p232 = scmp.eq.s32.totalorder %s33, 0
      %p233 = por %p231, %p232
      %s235 = sadd.s32 %s234, 1
      %p238 = scmp.eq.s32.totalorder %s27, 1
      %p239 = scmp.ne.s32.totalorder %s234, %s236
      %p240 = scmp.eq.s32.totalorder %s27, 0
      %p241 = por %p239, %p240
      %p242 = scmp.ne.s32.totalorder %s234, %s236
      %p243 = scmp.eq.s32.totalorder %s32, 1
      %p244 = por %p242, %p243
      %p245 = scmp.ne.s32.totalorder %s236, %s237
      %p246 = scmp.eq.s32.totalorder %s32, 0
      %p247 = por %p245, %p246
      %p248 = scmp.ne.s32.totalorder %s236, %s237
      %p249 = scmp.eq.s32.totalorder %s33, 1
      %p250 = por %p248, %p249
      %p252 = scmp.ne.s32.totalorder %s237, %s251
      %p253 = scmp.eq.s32.totalorder %s33, 0
      %p254 = por %p252, %p253
      %s256 = sadd.s32 %s255, 1
      %p259 = scmp.eq.s32.totalorder %s27, 1
      %p260 = scmp.ne.s32.totalorder %s255, %s257
      %p261 = scmp.eq.s32.totalorder %s27, 0
      %p262 = por %p260, %p261
      %p263 = scmp.ne.s32.totalorder %s255, %s257
      %p264 = scmp.eq.s32.totalorder %s32, 1
      %p265 = por %p263, %p264
      %p266 = scmp.ne.s32.totalorder %s257, %s258
      %p267 = scmp.eq.s32.totalorder %s32, 0
      %p268 = por %p266, %p267
      %p269 = scmp.ne.s32.totalorder %s257, %s258
      %p270 = scmp.eq.s32.totalorder %s33, 1
      %p271 = por %p269, %p270
      %p273 = scmp.ne.s32.totalorder %s258, %s272
      %p274 = scmp.eq.s32.totalorder %s33, 0
      %p275 = por %p273, %p274
      %s277 = sadd.s32 %s276, 1
      %p280 = scmp.eq.s32.totalorder %s27, 1
      %p281 = scmp.ne.s32.totalorder %s276, %s278
      %p282 = scmp.eq.s32.totalorder %s27, 0
      %p283 = por %p281, %p282
      %p284 = scmp.ne.s32.totalorder %s276, %s278
      %p285 = scmp.eq.s32.totalorder %s32, 1
      %p286 = por %p284, %p285
      %p287 = scmp.ne.s32.totalorder %s278, %s279
      %p288 = scmp.eq.s32.totalorder %s32, 0
      %p289 = por %p287, %p288
      %p290 = scmp.ne.s32.totalorder %s278, %s279
      %p291 = scmp.eq.s32.totalorder %s33, 1
      %p292 = por %p290, %p291
      %p294 = scmp.ne.s32.totalorder %s279, %s293
      %p295 = scmp.eq.s32.totalorder %s33, 0
      %p296 = por %p294, %p295
      %s298 = sadd.s32 %s297, 1
      %p301 = scmp.eq.s32.totalorder %s27, 1
      %p302 = scmp.ne.s32.totalorder %s297, %s299
      %p303 = scmp.eq.s32.totalorder %s27, 0
      %p304 = por %p302, %p303
      %p305 = scmp.ne.s32.totalorder %s297, %s299
      %p306 = scmp.eq.s32.totalorder %s32, 1
      %p307 = por %p305, %p306
      %p308 = scmp.ne.s32.totalorder %s299, %s300
      %p309 = scmp.eq.s32.totalorder %s32, 0
      %p310 = por %p308, %p309
      %p311 = scmp.ne.s32.totalorder %s299, %s300
      %p312 = scmp.eq.s32.totalorder %s33, 1
      %p313 = por %p311, %p312
      %p315 = scmp.ne.s32.totalorder %s300, %s314
      %p316 = scmp.eq.s32.totalorder %s33, 0
      %p317 = por %p315, %p316
      %s319 = sadd.s32 %s318, 1
      %p322 = scmp.eq.s32.totalorder %s27, 1
      %p323 = scmp.ne.s32.totalorder %s318, %s320
      %p324 = scmp.eq.s32.totalorder %s27, 0
      %p325 = por %p323, %p324
      %p326 = scmp.ne.s32.totalorder %s318, %s320
      %p327 = scmp.eq.s32.totalorder %s32, 1
      %p328 = por %p326, %p327
      %p329 = scmp.ne.s32.totalorder %s320, %s321
      %p330 = scmp.eq.s32.totalorder %s32, 0
      %p331 = por %p329, %p330
      %p332 = scmp.ne.s32.totalorder %s320, %s321
      %p333 = scmp.eq.s32.totalorder %s33, 1
      %p334 = por %p332, %p333
      %p336 = scmp.ne.s32.totalorder %s321, %s335
      %p337 = scmp.eq.s32.totalorder %s33, 0
      %p338 = por %p336, %p337
      %s340 = sadd.s32 %s339, 1
      %p343 = scmp.eq.s32.totalorder %s27, 1
      %p344 = scmp.ne.s32.totalorder %s339, %s341
      %p345 = scmp.eq.s32.totalorder %s27, 0
      %p346 = por %p344, %p345
      %p347 = scmp.ne.s32.totalorder %s339, %s341
      %p348 = scmp.eq.s32.totalorder %s32, 1
      %p349 = por %p347, %p348
      %p350 = scmp.ne.s32.totalorder %s341, %s342
      %p351 = scmp.eq.s32.totalorder %s32, 0
      %p352 = por %p350, %p351
      %p353 = scmp.ne.s32.totalorder %s341, %s342
      %p354 = scmp.eq.s32.totalorder %s33, 1
      %p355 = por %p353, %p354
      %p357 = scmp.ne.s32.totalorder %s342, %s356
      %p358 = scmp.eq.s32.totalorder %s33, 0
      %p359 = por %p357, %p358
      %s361 = sadd.s32 %s360, 1
      %p364 = scmp.eq.s32.totalorder %s27, 1
      %p365 = scmp.ne.s32.totalorder %s360, %s362
      %p366 = scmp.eq.s32.totalorder %s27, 0
      %p367 = por %p365, %p366
      %p368 = scmp.ne.s32.totalorder %s360, %s362
      %p369 = scmp.eq.s32.totalorder %s32, 1
      %p370 = por %p368, %p369
      %p371 = scmp.ne.s32.totalorder %s362, %s363
      %p372 = scmp.eq.s32.totalorder %s32, 0
      %p373 = por %p371, %p372
      %p374 = scmp.ne.s32.totalorder %s362, %s363
      %p375 = scmp.eq.s32.totalorder %s33, 1
      %p376 = por %p374, %p375
      %p378 = scmp.ne.s32.totalorder %s363, %s377
      %p379 = scmp.eq.s32.totalorder %s33, 0
      %p380 = por %p378, %p379
      %s381 = ssub.s32 %s27, %s34
      %p382 = scmp.eq.s32.totalorder %s381, 0
      %s384 = sadd.s32 %s383, 1
      %s385 = scalar_select %p382, %s383, %s384
      %p388 = pneg %p382
      %p389 = scmp.eq.s32.totalorder %s27, 1
      %p390 = por %p388, %p389
      %p391 = scmp.ne.s32.totalorder %s383, %s386
      %p392 = scmp.eq.s32.totalorder %s27, 0
      %p393 = por %p391, %p392
      %p394 = scmp.ne.s32.totalorder %s383, %s386
      %p395 = scmp.eq.s32.totalorder %s32, 1
      %p396 = por %p394, %p395
      %p397 = scmp.ne.s32.totalorder %s386, %s387
      %p398 = scmp.eq.s32.totalorder %s32, 0
      %p399 = por %p397, %p398
      %p400 = scmp.ne.s32.totalorder %s386, %s387
      %p401 = scmp.eq.s32.totalorder %s33, 1
      %p402 = por %p400, %p401
      %p404 = scmp.ne.s32.totalorder %s387, %s403
      %p405 = scmp.eq.s32.totalorder %s33, 0
      %p406 = por %p404, %p405
      %s407 = ssub.s32 %s27, %s34
      %p408 = scmp.eq.s32.totalorder %s407, 0
      %s410 = sadd.s32 %s409, 1
      %s411 = scalar_select %p408, %s409, %s410
      %p414 = pneg %p408
      %p415 = scmp.eq.s32.totalorder %s27, 1
      %p416 = por %p414, %p415
      %p417 = scmp.ne.s32.totalorder %s409, %s412
      %p418 = scmp.eq.s32.totalorder %s27, 0
      %p419 = por %p417, %p418
      %p420 = scmp.ne.s32.totalorder %s409, %s412
      %p421 = scmp.eq.s32.totalorder %s32, 1
      %p422 = por %p420, %p421
      %p423 = scmp.ne.s32.totalorder %s412, %s413
      %p424 = scmp.eq.s32.totalorder %s32, 0
      %p425 = por %p423, %p424
      %p426 = scmp.ne.s32.totalorder %s412, %s413
      %p427 = scmp.eq.s32.totalorder %s33, 1
      %p428 = por %p426, %p427
      %p430 = scmp.ne.s32.totalorder %s413, %s429
      %p431 = scmp.eq.s32.totalorder %s33, 0
      %p432 = por %p430, %p431
      %p433 = scmp.le.s32.totalorder 1, %s27
      %p434 = scmp.lt.s32.totalorder %s27, 3
      %p435 = pnand %p433, %p434
      %p436 = pneg %p435
      // Predicated region
      $region9: #{_forward_batched.1} parent=5 // pred_check
        _
      $region10: #{_forward_batched.1} parent=5 // pred_check_branch
        %438 = sbr.rel (%p435) target = $region12
      $region11: #{_forward_batched.1} parent=5 // pred_region
        %s439 = ssub.s32 %s27, 1
        // Predicated region
        $region13: #{_forward_batched.1} parent=11 // pred_check
          %p440 = pneg %p100
        $region14: #{_forward_batched.1} parent=11 // pred_check_branch
          %442 = sbr.rel (%p440) target = $region16
        $region15: #{_forward_batched.1} parent=11 // pred_region
          _
        $region16: #{_forward_batched.1} parent=11 // pred_fallthru
          _
        // Predicated region
        $region17: #{_forward_batched.1} parent=11 // pred_check
          %p443 = pneg %p121
        $region18: #{_forward_batched.1} parent=11 // pred_check_branch
          %445 = sbr.rel (%p443) target = $region20
        $region19: #{_forward_batched.1} parent=11 // pred_region
          _
        $region20: #{_forward_batched.1} parent=11 // pred_fallthru
          _
        // Predicated region
        $region21: #{_forward_batched.1} parent=11 // pred_check
          %p446 = pneg %p142
        $region22: #{_forward_batched.1} parent=11 // pred_check_branch
          %448 = sbr.rel (%p446) target = $region24
        $region23: #{_forward_batched.1} parent=11 // pred_region
          _
        $region24: #{_forward_batched.1} parent=11 // pred_fallthru
          _
        // Predicated region
        $region25: #{_forward_batched.1} parent=11 // pred_check
          %p449 = pneg %p163
        $region26: #{_forward_batched.1} parent=11 // pred_check_branch
          %451 = sbr.rel (%p449) target = $region28
        $region27: #{_forward_batched.1} parent=11 // pred_region
          _
        $region28: #{_forward_batched.1} parent=11 // pred_fallthru
          _
        // Predicated region
        $region29: #{_forward_batched.1} parent=11 // pred_check
          %p452 = pneg %p184
        $region30: #{_forward_batched.1} parent=11 // pred_check_branch
          %454 = sbr.rel (%p452) target = $region32
        $region31: #{_forward_batched.1} parent=11 // pred_region
          _
        $region32: #{_forward_batched.1} parent=11 // pred_fallthru
          _
        // Predicated region
        $region33: #{_forward_batched.1} parent=11 // pred_check
          %p455 = pneg %p205
        $region34: #{_forward_batched.1} parent=11 // pred_check_branch
          %457 = sbr.rel (%p455) target = $region36
        $region35: #{_forward_batched.1} parent=11 // pred_region
          _
        $region36: #{_forward_batched.1} parent=11 // pred_fallthru
          _
        // Predicated region
        $region37: #{_forward_batched.1} parent=11 // pred_check
          %p458 = pneg %p226
        $region38: #{_forward_batched.1} parent=11 // pred_check_branch
          %460 = sbr.rel (%p458) target = $region40
        $region39: #{_forward_batched.1} parent=11 // pred_region
          _
        $region40: #{_forward_batched.1} parent=11 // pred_fallthru
          _
        // Predicated region
        $region41: #{_forward_batched.1} parent=11 // pred_check
          %p461 = pneg %p247
        $region42: #{_forward_batched.1} parent=11 // pred_check_branch
          %463 = sbr.rel (%p461) target = $region44
        $region43: #{_forward_batched.1} parent=11 // pred_region
          _
        $region44: #{_forward_batched.1} parent=11 // pred_fallthru
          _
        // Predicated region
        $region45: #{_forward_batched.1} parent=11 // pred_check
          %p464 = pneg %p268
        $region46: #{_forward_batched.1} parent=11 // pred_check_branch
          %466 = sbr.rel (%p464) target = $region48
        $region47: #{_forward_batched.1} parent=11 // pred_region
          _
        $region48: #{_forward_batched.1} parent=11 // pred_fallthru
          _
        // Predicated region
        $region49: #{_forward_batched.1} parent=11 // pred_check
          %p467 = pneg %p289
        $region50: #{_forward_batched.1} parent=11 // pred_check_branch
          %469 = sbr.rel (%p467) target = $region52
        $region51: #{_forward_batched.1} parent=11 // pred_region
          _
        $region52: #{_forward_batched.1} parent=11 // pred_fallthru
          _
        // Predicated region
        $region53: #{_forward_batched.1} parent=11 // pred_check
          %p470 = pneg %p310
        $region54: #{_forward_batched.1} parent=11 // pred_check_branch
          %472 = sbr.rel (%p470) target = $region56
        $region55: #{_forward_batched.1} parent=11 // pred_region
          _
        $region56: #{_forward_batched.1} parent=11 // pred_fallthru
          _
        // Predicated region
        $region57: #{_forward_batched.1} parent=11 // pred_check
          %p473 = pneg %p331
        $region58: #{_forward_batched.1} parent=11 // pred_check_branch
          %475 = sbr.rel (%p473) target = $region60
        $region59: #{_forward_batched.1} parent=11 // pred_region
          _
        $region60: #{_forward_batched.1} parent=11 // pred_fallthru
          _
        // Predicated region
        $region61: #{_forward_batched.1} parent=11 // pred_check
          %p476 = pneg %p352
        $region62: #{_forward_batched.1} parent=11 // pred_check_branch
          %478 = sbr.rel (%p476) target = $region64
        $region63: #{_forward_batched.1} parent=11 // pred_region
          _
        $region64: #{_forward_batched.1} parent=11 // pred_fallthru
          _
        // Predicated region
        $region65: #{_forward_batched.1} parent=11 // pred_check
          %p479 = pneg %p373
        $region66: #{_forward_batched.1} parent=11 // pred_check_branch
          %481 = sbr.rel (%p479) target = $region68
        $region67: #{_forward_batched.1} parent=11 // pred_region
          _
        $region68: #{_forward_batched.1} parent=11 // pred_fallthru
          _
      $region12: #{_forward_batched.1} parent=5 // pred_fallthru
        _
      %p482 = scmp.lt.s32.totalorder %s27, 2
      // Predicated region
      $region69: #{_forward_batched.1} parent=5 // pred_check
        %p483 = pneg %p482
      $region70: #{_forward_batched.1} parent=5 // pred_check_branch
        %485 = sbr.rel (%p483) target = $region72
      $region71: #{_forward_batched.1} parent=5 // pred_region
        // Predicated region
        $region73: #{_forward_batched.1} parent=71 // pred_check
          %p486 = pneg %p47
        $region74: #{_forward_batched.1} parent=71 // pred_check_branch
          %488 = sbr.rel (%p486) target = $region76
        $region75: #{_forward_batched.1} parent=71 // pred_region
          %p489 = scmp.lt.s32.totalorder %s27, 1
          %s490 = scalar_select %p489, %s27, 1
          %s491 = smul.addr %s490, 16
          %s492 = smul.addr %s491, 8
          %s493 = scalar_lea.vmem %s0, %s492
        $region76: #{_forward_batched.1} parent=71 // pred_fallthru
          _
        // Predicated region
        $region77: #{_forward_batched.1} parent=71 // pred_check
          %p494 = pneg %p73
        $region78: #{_forward_batched.1} parent=71 // pred_check_branch
          %496 = sbr.rel (%p494) target = $region80
        $region79: #{_forward_batched.1} parent=71 // pred_region
          %p497 = scmp.lt.s32.totalorder %s27, 1
          %s498 = scalar_select %p497, %s27, 1
          %s499 = smul.addr %s498, 4
          %s500 = scalar_lea.vmem %s1, %s499
        $region80: #{_forward_batched.1} parent=71 // pred_fallthru
          _
      $region72: #{_forward_batched.1} parent=5 // pred_fallthru
        _
      %p501 = scmp.le.s32.totalorder 1, %s27
      %p502 = scmp.lt.s32.totalorder %s27, 3
      %p503 = pnand %p501, %p502
      %p504 = pneg %p503
      // Predicated region
      $region81: #{_forward_batched.1} parent=5 // pred_check
        _
      $region82: #{_forward_batched.1} parent=5 // pred_check_branch
        %506 = sbr.rel (%p503) target = $region84
      $region83: #{_forward_batched.1} parent=5 // pred_region
        %s507 = ssub.s32 %s27, 1
        %p508 = scmp.lt.s32.totalorder %s32, 1
        %s509 = scalar_select %p508, %s32, 1
        %s510 = smul.addr %s509, 16
        %s511 = smul.addr %s510, 8
        %s512 = scalar_lea.vmem %s0, %s511
        %p513 = pneg %p53
        %p514 = pneg %p50
        %p515 = scmp.lt.s32.totalorder %s32, 1
        %s516 = scalar_select %p515, %s32, 1
        %s517 = smul.addr %s516, 4
        %s518 = scalar_lea.vmem %s1, %s517
        %p519 = pneg %p79
        %p520 = pneg %p76
        %p521 = pneg %p100
        %p522 = pneg %p97
        %p523 = pneg %p121
        %p524 = pneg %p118
        %p525 = pneg %p142
        %p526 = pneg %p139
        %p527 = pneg %p163
        %p528 = pneg %p160
        %p529 = pneg %p184
        %p530 = pneg %p181
        %p531 = pneg %p205
        %p532 = pneg %p202
        %p533 = pneg %p226
        %p534 = pneg %p223
        %p535 = pneg %p247
        %p536 = pneg %p244
        %p537 = pneg %p268
        %p538 = pneg %p265
        %p539 = pneg %p289
        %p540 = pneg %p286
        %p541 = pneg %p310
        %p542 = pneg %p307
        %p543 = pneg %p331
        %p544 = pneg %p328
        %p545 = pneg %p352
        %p546 = pneg %p349
        %p547 = pneg %p373
        %p548 = pneg %p370
        %p549 = pneg %p399
        %p550 = pneg %p396
        %s551 = sand.u32 %s386, 1
        %s552 = scalar_lea.sflag [#allocation3], %s551
        %s553 = sand.u32 %s386, 1
        %s554 = smul.addr %s553, 64
        %s555 = scalar_lea.vmem [#allocation2], %s554
        %p556 = pneg %p425
        %p557 = pneg %p422
        %p558 = scmp.lt.s32.totalorder %s32, 1
        %s559 = scalar_select %p558, %s32, 1
        %s560 = scalar_lea.vmem %s17, %s559
        %p561 = scmp.lt.s32.totalorder %s32, 1
        %s562 = scalar_select %p561, %s32, 1
        %s563 = smul.addr %s562, 16
        %s564 = smul.addr %s563, 8
        %s565 = scalar_lea.vmem %s0, %s564
        %p566 = scmp.lt.s32.totalorder %s32, 1
        %s567 = scalar_select %p566, %s32, 1
        %s568 = smul.addr %s567, 4
        %s569 = scalar_lea.vmem %s1, %s568
        %p570 = scmp.lt.s32.totalorder %s32, 1
        %s571 = scalar_select %p570, %s32, 1
        %s572 = scalar_lea.vmem %s17, %s571
        %v574 = vld [vmem:[%s11] sm:$0x3f]
        %v575 = vld [vmem:[%s15] sm:$0xff]
        %v576 = vld [vmem:[%s15 + $0x8] sm:$0x1f]
        %v577 = vld [vmem:[%s565] sm:$0xff]
        %v578 = vld [vmem:[%s565 + $0x8] sm:$0xff]
        %v579 = vld [vmem:[%s565 + $0x10] sm:$0xff]
        %v580 = vld [vmem:[%s565 + $0x18] sm:$0xff]
        %v581 = vld [vmem:[%s565 + $0x20] sm:$0xff]
        %v582 = vld [vmem:[%s565 + $0x28] sm:$0xff]
        %v583 = vld [vmem:[%s565 + $0x30] sm:$0xff]
        %v584 = vld [vmem:[%s565 + $0x38] sm:$0xff]
        %v585 = vld [vmem:[%s565 + $0x40] sm:$0xff]
        %v586 = vld [vmem:[%s565 + $0x48] sm:$0xff]
        %v587 = vld [vmem:[%s565 + $0x50] sm:$0xff]
        %v588 = vld [vmem:[%s565 + $0x58] sm:$0xff]
        %v589 = vld [vmem:[%s565 + $0x60] sm:$0xff]
        %v590 = vld [vmem:[%s565 + $0x68] sm:$0xff]
        %v591 = vld [vmem:[%s565 + $0x70] sm:$0xff]
        %v592 = vld [vmem:[%s565 + $0x78] sm:$0xff]
        %v593 = vld [vmem:[%s2] sm:$0xf]
        %v594 = vld [vmem:[%s2 + $0x4] sm:$0xf]
        %v595 = vld [vmem:[%s2 + $0x8] sm:$0xf]
        %v596 = vld [vmem:[%s2 + $0xc] sm:$0xf]
        %v597 = vld [vmem:[%s2 + $0x10] sm:$0xf]
        %v598 = vld [vmem:[%s2 + $0x14] sm:$0xf]
        %v599 = vld [vmem:[%s2 + $0x18] sm:$0xf]
        %v600 = vld [vmem:[%s2 + $0x1c] sm:$0xf]
        %v601 = vld [vmem:[%s2 + $0x20] sm:$0xf]
        %v602 = vld [vmem:[%s2 + $0x24] sm:$0xf]
        %v603 = vld [vmem:[%s2 + $0x28] sm:$0xf]
        %v604 = vld [vmem:[%s2 + $0x2c] sm:$0xf]
        %v605 = vld [vmem:[%s2 + $0x30] sm:$0xf]
        %v606 = vld [vmem:[%s2 + $0x34] sm:$0xf]
        %v607 = vld [vmem:[%s2 + $0x38] sm:$0xf]
        %v608 = vld [vmem:[%s2 + $0x3c] sm:$0xf]
        %v609 = vld [vmem:[%s2 + $0x40] sm:$0xf]
        %v610 = vld [vmem:[%s2 + $0x44] sm:$0xf]
        %v611 = vld [vmem:[%s2 + $0x48] sm:$0xf]
        %v612 = vld [vmem:[%s2 + $0x4c] sm:$0xf]
        %v613 = vld [vmem:[%s2 + $0x50] sm:$0xf]
        %v614 = vld [vmem:[%s2 + $0x54] sm:$0xf]
        %v615 = vld [vmem:[%s2 + $0x58] sm:$0xf]
        %v616 = vld [vmem:[%s2 + $0x5c] sm:$0xf]
        %v617 = vpack.c.bf16 %v579, %v577
        %v618 = vpack.c.bf16 %v580, %v578
        %v619 = vpack.c.bf16 %v583, %v581
        %v620 = vpack.c.bf16 %v584, %v582
        %v621 = vpack.c.bf16 %v587, %v585
        %v622 = vpack.c.bf16 %v588, %v586
        %v623 = vpack.c.bf16 %v591, %v589
        %v624 = vpack.c.bf16 %v592, %v590
        %v625 = vld [vmem:[%s3] sm:$0xff]
        %v626 = vld [vmem:[%s3 + $0x8] sm:$0xff]
        %v627 = vld [vmem:[%s3 + $0x10] sm:$0xff]
        %v628 = vld [vmem:[%s3 + $0x18] sm:$0xff]
        %v629 = vld [vmem:[%s3 + $0x20] sm:$0xff]
        %v630 = vld [vmem:[%s3 + $0x28] sm:$0xff]
        %v631 = vld [vmem:[%s3 + $0x30] sm:$0xff]
        %v632 = vld [vmem:[%s3 + $0x38] sm:$0xff]
        %v657 = vunpack.c.l.b16 %v593
        %v658 = vunpack.c.l.b16 %v594
        %v659 = vunpack.c.l.b16 %v595
        %v660 = vunpack.c.l.b16 %v596
        %v661 = vunpack.c.l.b16 %v597
        %v662 = vunpack.c.l.b16 %v598
        %v663 = vunpack.c.l.b16 %v599
        %v664 = vunpack.c.l.b16 %v600
        %v665 = vunpack.c.l.b16 %v601
        %v666 = vunpack.c.l.b16 %v602
        %v667 = vunpack.c.l.b16 %v603
        %v668 = vunpack.c.l.b16 %v604
        %v669 = vunpack.c.l.b16 %v605
        %v670 = vunpack.c.l.b16 %v606
        %v671 = vunpack.c.l.b16 %v607
        %v672 = vunpack.c.l.b16 %v608
        %v673 = vunpack.c.l.b16 %v609
        %v674 = vunpack.c.l.b16 %v610
        %v675 = vunpack.c.l.b16 %v611
        %v676 = vunpack.c.l.b16 %v612
        %v677 = vunpack.c.l.b16 %v613
        %v678 = vunpack.c.l.b16 %v614
        %v679 = vunpack.c.l.b16 %v615
        %v680 = vunpack.c.l.b16 %v616
        %v681 = vpack.c.b16 %v658, %v657
        %v682 = vpack.c.b16 %v660, %v659
        %v683 = vpack.c.b16 %v662, %v661
        %v684 = vpack.c.b16 %v664, %v663
        %v685 = vpack.c.b16 %v666, %v665
        %v686 = vpack.c.b16 %v668, %v667
        %v687 = vpack.c.b16 %v670, %v669
        %v688 = vpack.c.b16 %v672, %v671
        %v689 = vpack.c.b16 %v674, %v673
        %v690 = vpack.c.b16 %v676, %v675
        %v691 = vpack.c.b16 %v678, %v677
        %v692 = vpack.c.b16 %v680, %v679
        %vm705 = vcmask 523264
        %v707 = vsel %vm705, %v618, 0
        %v710 = vsel %vm705, %v620, 0
        %v713 = vsel %vm705, %v622, 0
        %v716 = vsel %vm705, %v624, 0
        %718 = vmatpush.bf16.msra.mxu0 %v688
        %719 = vmatpush.bf16.msra.mxu0 %v687
        %720 = vmatpush.bf16.msra.mxu0 %v686
        %721 = vmatpush.bf16.msra.mxu0 %v685
        %722 = vmatpush.bf16.msra.mxu0 %v684
        %723 = vmatpush.bf16.msra.mxu0 %v683
        %724 = vmatpush.bf16.msra.mxu0 %v682
        %725 = vmatpush.bf16.msra.mxu0 %v681
        %726 = vmatmul.bf16.gmra.mxu0 %v617
        %v727 = vpop.f32.mrf.mxu0
        %v728 = vadd.f32 %v625, %v727
        %v729 = vpop.f32.mrf.mxu0
        %v730 = vadd.f32 %v626, %v729
        %731 = vmatmul.bf16.gmra.mxu0 %v619
        %v732 = vpop.f32.mrf.mxu0
        %v733 = vadd.f32 %v627, %v732
        %v734 = vpop.f32.mrf.mxu0
        %v735 = vadd.f32 %v628, %v734
        %736 = vmatmul.bf16.gmra.mxu0 %v621
        %v737 = vpop.f32.mrf.mxu0
        %v738 = vadd.f32 %v629, %v737
        %v739 = vpop.f32.mrf.mxu0
        %v740 = vadd.f32 %v630, %v739
        %741 = vmatmul.bf16.gmra.mxu0 %v623
        %v742 = vpop.f32.mrf.mxu0
        %v743 = vadd.f32 %v631, %v742
        %v744 = vpop.f32.mrf.mxu0
        %v745 = vadd.f32 %v632, %v744
        %746 = vdwg.mxu0
        %747 = vmatpush.bf16.msra.mxu0 0
        %748 = vmatpush.bf16.msra.mxu0 0
        %749 = vmatpush.bf16.msra.mxu0 0
        %750 = vmatpush.bf16.msra.mxu0 0
        %751 = vmatpush.bf16.msra.mxu0 %v692
        %752 = vmatpush.bf16.msra.mxu0 %v691
        %753 = vmatpush.bf16.msra.mxu0 %v690
        %754 = vmatpush.bf16.msra.mxu0 %v689
        %755 = vmatmul.bf16.gmra.mxu0 %v707
        %v756 = vpop.f32.mrf.mxu0
        %v757 = vadd.f32 %v728, %v756
        %v758 = vpop.f32.mrf.mxu0
        %v759 = vadd.f32 %v730, %v758
        %760 = vmatmul.bf16.gmra.mxu0 %v710
        %v761 = vpop.f32.mrf.mxu0
        %v762 = vadd.f32 %v733, %v761
        %v763 = vpop.f32.mrf.mxu0
        %v764 = vadd.f32 %v735, %v763
        %765 = vmatmul.bf16.gmra.mxu0 %v713
        %v766 = vpop.f32.mrf.mxu0
        %v767 = vadd.f32 %v738, %v766
        %v768 = vpop.f32.mrf.mxu0
        %v769 = vadd.f32 %v740, %v768
        %770 = vmatmul.bf16.gmra.mxu0 %v716
        %v771 = vpop.f32.mrf.mxu0
        %v772 = vadd.f32 %v743, %v771
        %v773 = vpop.f32.mrf.mxu0
        %v774 = vadd.f32 %v745, %v773
        %775 = vdwg.mxu0
        %v776 = vsel %vm705, %v757, 0.0
        %777 = vadd.xlane.f32.xlu0 %v776
        %v778 = vpop.xlane.xlu0 %777
        %v779 = vsel %vm705, %v759, 0.0
        %780 = vadd.xlane.f32.xlu0 %v779
        %v781 = vpop.xlane.xlu0 %780
        %v782 = vsel %vm705, %v762, 0.0
        %783 = vadd.xlane.f32.xlu0 %v782
        %v784 = vpop.xlane.xlu0 %783
        %v785 = vsel %vm705, %v764, 0.0
        %786 = vadd.xlane.f32.xlu0 %v785
        %v787 = vpop.xlane.xlu0 %786
        %v788 = vsel %vm705, %v767, 0.0
        %789 = vadd.xlane.f32.xlu0 %v788
        %v790 = vpop.xlane.xlu0 %789
        %v791 = vsel %vm705, %v769, 0.0
        %792 = vadd.xlane.f32.xlu0 %v791
        %v793 = vpop.xlane.xlu0 %792
        %v794 = vsel %vm705, %v772, 0.0
        %795 = vadd.xlane.f32.xlu0 %v794
        %v796 = vpop.xlane.xlu0 %795
        %v797 = vsel %vm705, %v774, 0.0
        %798 = vadd.xlane.f32.xlu0 %v797
        %v799 = vpop.xlane.xlu0 %798
        %v800 = vrcp.pop 64.0
        %v801 = vmul.f32 64.0, %v800
        %v802 = vsub.f32 1.0, %v801
        %v803 = vmul.f32 %v800, %v802
        %v804 = vadd.f32 %v800, %v803
        %vm805 = vweird.f32 %v800
        %v806 = vsel %vm805, %v800, %v804
        %v807 = vmul.f32 %v778, %v806
        %v808 = vmul.f32 %v781, %v806
        %v809 = vmul.f32 %v784, %v806
        %v810 = vmul.f32 %v787, %v806
        %v811 = vmul.f32 %v790, %v806
        %v812 = vmul.f32 %v793, %v806
        %v813 = vmul.f32 %v796, %v806
        %v814 = vmul.f32 %v799, %v806
        %v815 = vsub.f32 %v757, %v807
        %v816 = vsub.f32 %v759, %v808
        %v817 = vsub.f32 %v762, %v809
        %v818 = vsub.f32 %v764, %v810
        %v819 = vsub.f32 %v767, %v811
        %v820 = vsub.f32 %v769, %v812
        %v821 = vsub.f32 %v772, %v813
        %v822 = vsub.f32 %v774, %v814
        %v823 = vmul.f32 %v815, %v815
        %v824 = vmul.f32 %v816, %v816
        %v825 = vmul.f32 %v817, %v817
        %v826 = vmul.f32 %v818, %v818
        %v827 = vmul.f32 %v819, %v819
        %v828 = vmul.f32 %v820, %v820
        %v829 = vmul.f32 %v821, %v821
        %v830 = vmul.f32 %v822, %v822
        %v831 = vsel %vm705, %v823, 0.0
        %832 = vadd.xlane.f32.xlu0 %v831
        %v833 = vpop.xlane.xlu0 %832
        %v834 = vsel %vm705, %v824, 0.0
        %835 = vadd.xlane.f32.xlu0 %v834
        %v836 = vpop.xlane.xlu0 %835
        %v837 = vsel %vm705, %v825, 0.0
        %838 = vadd.xlane.f32.xlu0 %v837
        %v839 = vpop.xlane.xlu0 %838
        %v840 = vsel %vm705, %v826, 0.0
        %841 = vadd.xlane.f32.xlu0 %v840
        %v842 = vpop.xlane.xlu0 %841
        %v843 = vsel %vm705, %v827, 0.0
        %844 = vadd.xlane.f32.xlu0 %v843
        %v845 = vpop.xlane.xlu0 %844
        %v846 = vsel %vm705, %v828, 0.0
        %847 = vadd.xlane.f32.xlu0 %v846
        %v848 = vpop.xlane.xlu0 %847
        %v849 = vsel %vm705, %v829, 0.0
        %850 = vadd.xlane.f32.xlu0 %v849
        %v851 = vpop.xlane.xlu0 %850
        %v852 = vsel %vm705, %v830, 0.0
        %853 = vadd.xlane.f32.xlu0 %v852
        %v854 = vpop.xlane.xlu0 %853
        %v855 = vmul.f32 %v833, %v806
        %v856 = vmul.f32 %v836, %v806
        %v857 = vmul.f32 %v839, %v806
        %v858 = vmul.f32 %v842, %v806
        %v859 = vmul.f32 %v845, %v806
        %v860 = vmul.f32 %v848, %v806
        %v861 = vmul.f32 %v851, %v806
        %v862 = vmul.f32 %v854, %v806
        %v863 = vadd.f32 %v855, 1e-05
        %v864 = vadd.f32 %v856, 1e-05
        %v865 = vadd.f32 %v857, 1e-05
        %v866 = vadd.f32 %v858, 1e-05
        %v867 = vadd.f32 %v859, 1e-05
        %v868 = vadd.f32 %v860, 1e-05
        %v869 = vadd.f32 %v861, 1e-05
        %v870 = vadd.f32 %v862, 1e-05
        %v871 = vrsqrt.pop %v863
        %v872 = vmul.f32 %v871, %v863
        %v873 = vmul.f32 %v872, %v871
        %v874 = vmul.f32 0.5, %v873
        %v875 = vsub.f32 1.5, %v874
        %v876 = vmul.f32 %v871, %v875
        %vm877 = vweird.f32 %v863
        %vm878 = vweird.f32 %v871
        %vm879 = vmor %vm877, %vm878
        %v880 = vsel %vm879, %v871, %v876
        %v881 = vrsqrt.pop %v864
        %v882 = vmul.f32 %v881, %v864
        %v883 = vmul.f32 %v882, %v881
        %v884 = vmul.f32 0.5, %v883
        %v885 = vsub.f32 1.5, %v884
        %v886 = vmul.f32 %v881, %v885
        %vm887 = vweird.f32 %v864
        %vm888 = vweird.f32 %v881
        %vm889 = vmor %vm887, %vm888
        %v890 = vsel %vm889, %v881, %v886
        %v891 = vrsqrt.pop %v865
        %v892 = vmul.f32 %v891, %v865
        %v893 = vmul.f32 %v892, %v891
        %v894 = vmul.f32 0.5, %v893
        %v895 = vsub.f32 1.5, %v894
        %v896 = vmul.f32 %v891, %v895
        %vm897 = vweird.f32 %v865
        %vm898 = vweird.f32 %v891
        %vm899 = vmor %vm897, %vm898
        %v900 = vsel %vm899, %v891, %v896
        %v901 = vrsqrt.pop %v866
        %v902 = vmul.f32 %v901, %v866
        %v903 = vmul.f32 %v902, %v901
        %v904 = vmul.f32 0.5, %v903
        %v905 = vsub.f32 1.5, %v904
        %v906 = vmul.f32 %v901, %v905
        %vm907 = vweird.f32 %v866
        %vm908 = vweird.f32 %v901
        %vm909 = vmor %vm907, %vm908
        %v910 = vsel %vm909, %v901, %v906
        %v911 = vrsqrt.pop %v867
        %v912 = vmul.f32 %v911, %v867
        %v913 = vmul.f32 %v912, %v911
        %v914 = vmul.f32 0.5, %v913
        %v915 = vsub.f32 1.5, %v914
        %v916 = vmul.f32 %v911, %v915
        %vm917 = vweird.f32 %v867
        %vm918 = vweird.f32 %v911
        %vm919 = vmor %vm917, %vm918
        %v920 = vsel %vm919, %v911, %v916
        %v921 = vrsqrt.pop %v868
        %v922 = vmul.f32 %v921, %v868
        %v923 = vmul.f32 %v922, %v921
        %v924 = vmul.f32 0.5, %v923
        %v925 = vsub.f32 1.5, %v924
        %v926 = vmul.f32 %v921, %v925
        %vm927 = vweird.f32 %v868
        %vm928 = vweird.f32 %v921
        %vm929 = vmor %vm927, %vm928
        %v930 = vsel %vm929, %v921, %v926
        %v931 = vrsqrt.pop %v869
        %v932 = vmul.f32 %v931, %v869
        %v933 = vmul.f32 %v932, %v931
        %v934 = vmul.f32 0.5, %v933
        %v935 = vsub.f32 1.5, %v934
        %v936 = vmul.f32 %v931, %v935
        %vm937 = vweird.f32 %v869
        %vm938 = vweird.f32 %v931
        %vm939 = vmor %vm937, %vm938
        %v940 = vsel %vm939, %v931, %v936
        %v941 = vrsqrt.pop %v870
        %v942 = vmul.f32 %v941, %v870
        %v943 = vmul.f32 %v942, %v941
        %v944 = vmul.f32 0.5, %v943
        %v945 = vsub.f32 1.5, %v944
        %v946 = vmul.f32 %v941, %v945
        %vm947 = vweird.f32 %v870
        %vm948 = vweird.f32 %v941
        %vm949 = vmor %vm947, %vm948
        %v950 = vsel %vm949, %v941, %v946
        %v951 = vmul.f32 %v815, %v880
        %v952 = vmul.f32 %v816, %v890
        %v953 = vmul.f32 %v817, %v900
        %v954 = vmul.f32 %v818, %v910
        %v955 = vmul.f32 %v819, %v920
        %v956 = vmul.f32 %v820, %v930
        %v957 = vmul.f32 %v821, %v940
        %v958 = vmul.f32 %v822, %v950
        %v959 = vperm.slane %v574, 0
        %v960 = vmul.f32 %v951, %v959
        %v961 = vmul.f32 %v952, %v959
        %v962 = vmul.f32 %v953, %v959
        %v963 = vmul.f32 %v954, %v959
        %v964 = vmul.f32 %v955, %v959
        %v965 = vmul.f32 %v956, %v959
        %v966 = vmul.f32 %v957, %v959
        %v967 = vmul.f32 %v958, %v959
        %v968 = vperm.slane %v574, 1
        %v969 = vadd.f32 %v960, %v968
        %v970 = vadd.f32 %v961, %v968
        %v971 = vadd.f32 %v962, %v968
        %v972 = vadd.f32 %v963, %v968
        %v973 = vadd.f32 %v964, %v968
        %v974 = vadd.f32 %v965, %v968
        %v975 = vadd.f32 %v966, %v968
        %v976 = vadd.f32 %v967, %v968
        %v977 = vld [vmem:[%s4] sm:$0xff]
        %v978 = vld [vmem:[%s4 + $0x8] sm:$0xff]
        %v979 = vld [vmem:[%s4 + $0x10] sm:$0xff]
        %v980 = vld [vmem:[%s4 + $0x18] sm:$0xff]
        %v981 = vld [vmem:[%s4 + $0x20] sm:$0xff]
        %v982 = vld [vmem:[%s4 + $0x28] sm:$0xff]
        %v983 = vld [vmem:[%s4 + $0x30] sm:$0xff]
        %v984 = vld [vmem:[%s4 + $0x38] sm:$0xff]
        %v985 = vpack.c.bf16 %v970, %v969
        %v986 = vpack.c.bf16 %v972, %v971
        %v987 = vpack.c.bf16 %v974, %v973
        %v988 = vpack.c.bf16 %v976, %v975
        %v989 = vld [vmem:[%s5] sm:$0x3]
        %v991 = vperm.slane %v989, 0
        %v992 = vperm.slane %v989, 1
        %v1003 = vunpack.c.l.b16 %v977
        %v1004 = vunpack.c.h.b16 %v977
        %v1005 = vunpack.c.l.b16 %v978
        %v1006 = vunpack.c.h.b16 %v978
        %v1007 = vunpack.c.l.b16 %v979
        %v1008 = vunpack.c.h.b16 %v979
        %v1009 = vunpack.c.l.b16 %v980
        %v1010 = vunpack.c.h.b16 %v980
        %v1011 = vunpack.c.l.b16 %v981
        %v1012 = vunpack.c.h.b16 %v981
        %v1013 = vunpack.c.l.b16 %v982
        %v1014 = vunpack.c.h.b16 %v982
        %v1015 = vunpack.c.l.b16 %v983
        %v1016 = vunpack.c.h.b16 %v983
        %v1017 = vunpack.c.l.b16 %v984
        %v1018 = vunpack.c.h.b16 %v984
        %v1019 = vpack.c.b16 %v1005, %v1003
        %v1020 = vpack.c.b16 %v1006, %v1004
        %v1021 = vpack.c.b16 %v1009, %v1007
        %v1022 = vpack.c.b16 %v1010, %v1008
        %v1023 = vpack.c.b16 %v1013, %v1011
        %v1024 = vpack.c.b16 %v1014, %v1012
        %v1025 = vpack.c.b16 %v1017, %v1015
        %v1026 = vpack.c.b16 %v1018, %v1016
        %v1036 = vsel %vm705, %v985, 0
        %v1039 = vsel %vm705, %v986, 0
        %v1042 = vsel %vm705, %v987, 0
        %v1045 = vsel %vm705, %v988, 0
        %1047 = vmatpush.bf16.msra.mxu0 0
        %1048 = vmatpush.bf16.msra.mxu0 0
        %1049 = vmatpush.bf16.msra.mxu0 0
        %1050 = vmatpush.bf16.msra.mxu0 0
        %1051 = vmatpush.bf16.msra.mxu0 %v1025
        %1052 = vmatpush.bf16.msra.mxu0 %v1023
        %1053 = vmatpush.bf16.msra.mxu0 %v1021
        %1054 = vmatpush.bf16.msra.mxu0 %v1019
        %1055 = vmatmul.bf16.gmra.mxu0 %v1036
        %v1056 = vpop.f32.mrf.mxu0
        %v1057 = vadd.f32 %v991, %v1056
        %v1058 = vpop.f32.mrf.mxu0
        %v1059 = vadd.f32 %v991, %v1058
        %1060 = vmatmul.bf16.gmra.mxu0 %v1039
        %v1061 = vpop.f32.mrf.mxu0
        %v1062 = vadd.f32 %v991, %v1061
        %v1063 = vpop.f32.mrf.mxu0
        %v1064 = vadd.f32 %v991, %v1063
        %1065 = vmatmul.bf16.gmra.mxu0 %v1042
        %v1066 = vpop.f32.mrf.mxu0
        %v1067 = vadd.f32 %v991, %v1066
        %v1068 = vpop.f32.mrf.mxu0
        %v1069 = vadd.f32 %v991, %v1068
        %1070 = vmatmul.bf16.gmra.mxu0 %v1045
        %v1071 = vpop.f32.mrf.mxu0
        %v1072 = vadd.f32 %v991, %v1071
        %v1073 = vpop.f32.mrf.mxu0
        %v1074 = vadd.f32 %v991, %v1073
        %1075 = vdwg.mxu0
        %1076 = vmatpush.bf16.msra.mxu0 0
        %1077 = vmatpush.bf16.msra.mxu0 0
        %1078 = vmatpush.bf16.msra.mxu0 0
        %1079 = vmatpush.bf16.msra.mxu0 0
        %1080 = vmatpush.bf16.msra.mxu0 %v1026
        %1081 = vmatpush.bf16.msra.mxu0 %v1024
        %1082 = vmatpush.bf16.msra.mxu0 %v1022
        %1083 = vmatpush.bf16.msra.mxu0 %v1020
        %1084 = vmatmul.bf16.gmra.mxu0 %v1036
        %v1085 = vpop.f32.mrf.mxu0
        %v1086 = vadd.f32 %v992, %v1085
        %v1087 = vpop.f32.mrf.mxu0
        %v1088 = vadd.f32 %v992, %v1087
        %1089 = vmatmul.bf16.gmra.mxu0 %v1039
        %v1090 = vpop.f32.mrf.mxu0
        %v1091 = vadd.f32 %v992, %v1090
        %v1092 = vpop.f32.mrf.mxu0
        %v1093 = vadd.f32 %v992, %v1092
        %1094 = vmatmul.bf16.gmra.mxu0 %v1042
        %v1095 = vpop.f32.mrf.mxu0
        %v1096 = vadd.f32 %v992, %v1095
        %v1097 = vpop.f32.mrf.mxu0
        %v1098 = vadd.f32 %v992, %v1097
        %1099 = vmatmul.bf16.gmra.mxu0 %v1045
        %v1100 = vpop.f32.mrf.mxu0
        %v1101 = vadd.f32 %v992, %v1100
        %v1102 = vpop.f32.mrf.mxu0
        %v1103 = vadd.f32 %v992, %v1102
        %1104 = vdwg.mxu0
        %v1105 = vpack.c.bf16 %v1059, %v1057
        %v1106 = vpack.c.bf16 %v1064, %v1062
        %v1107 = vpack.c.bf16 %v1069, %v1067
        %v1108 = vpack.c.bf16 %v1074, %v1072
        %1113 = vrot.lane.b32.xlu0 %v1105, 64
        %v1114 = vpop.permute.xlu0 %1113
        %1115 = vrot.lane.b32.xlu0 %v1106, 64
        %v1116 = vpop.permute.xlu0 %1115
        %1117 = vrot.lane.b32.xlu0 %v1107, 64
        %v1118 = vpop.permute.xlu0 %1117
        %1119 = vrot.lane.b32.xlu0 %v1108, 64
        %v1120 = vpop.permute.xlu0 %1119
        %v1122 = vsel %vm705, %v1105, 0
        %v1125 = vsel %vm705, %v1106, 0
        %v1128 = vsel %vm705, %v1107, 0
        %v1131 = vsel %vm705, %v1108, 0
        %v1134 = vsel %vm705, %v1114, 0
        %v1137 = vsel %vm705, %v1116, 0
        %v1140 = vsel %vm705, %v1118, 0
        %v1143 = vsel %vm705, %v1120, 0
        %1145 = vmatpush.bf16.xpose.msra.mxu0 0
        %1146 = vmatpush.bf16.xpose.msra.mxu0 0
        %1147 = vmatpush.bf16.xpose.msra.mxu0 0
        %1148 = vmatpush.bf16.xpose.msra.mxu0 0
        %1149 = vmatpush.bf16.xpose.msra.mxu0 %v1143
        %1150 = vmatpush.bf16.xpose.msra.mxu0 %v1140
        %1151 = vmatpush.bf16.xpose.msra.mxu0 %v1137
        %1152 = vmatpush.bf16.xpose.msra.mxu0 %v1134
        %1153 = vmatmul.bf16.gmra.mxu0 %v1122
        %v1154 = vpop.f32.mrf.mxu0
        %v1155 = vadd.f32 0.0, %v1154
        %v1156 = vpop.f32.mrf.mxu0
        %v1157 = vadd.f32 0.0, %v1156
        %1158 = vmatmul.bf16.gmra.mxu0 %v1125
        %v1159 = vpop.f32.mrf.mxu0
        %v1160 = vadd.f32 0.0, %v1159
        %v1161 = vpop.f32.mrf.mxu0
        %v1162 = vadd.f32 0.0, %v1161
        %1163 = vmatmul.bf16.gmra.mxu0 %v1128
        %v1164 = vpop.f32.mrf.mxu0
        %v1165 = vadd.f32 0.0, %v1164
        %v1166 = vpop.f32.mrf.mxu0
        %v1167 = vadd.f32 0.0, %v1166
        %1168 = vmatmul.bf16.gmra.mxu0 %v1131
        %v1169 = vpop.f32.mrf.mxu0
        %v1170 = vadd.f32 0.0, %v1169
        %v1171 = vpop.f32.mrf.mxu0
        %v1172 = vadd.f32 0.0, %v1171
        %1173 = vdwg.mxu0
        %v1174 = vsel %vm705, %v1155, -inf
        %1175 = vmax.xlane.f32.xlu0 %v1174
        %v1176 = vpop.xlane.xlu0 %1175
        %v1177 = vsel %vm705, %v1157, -inf
        %1178 = vmax.xlane.f32.xlu0 %v1177
        %v1179 = vpop.xlane.xlu0 %1178
        %v1180 = vsel %vm705, %v1160, -inf
        %1181 = vmax.xlane.f32.xlu0 %v1180
        %v1182 = vpop.xlane.xlu0 %1181
        %v1183 = vsel %vm705, %v1162, -inf
        %1184 = vmax.xlane.f32.xlu0 %v1183
        %v1185 = vpop.xlane.xlu0 %1184
        %v1186 = vsel %vm705, %v1165, -inf
        %1187 = vmax.xlane.f32.xlu0 %v1186
        %v1188 = vpop.xlane.xlu0 %1187
        %v1189 = vsel %vm705, %v1167, -inf
        %1190 = vmax.xlane.f32.xlu0 %v1189
        %v1191 = vpop.xlane.xlu0 %1190
        %v1192 = vsel %vm705, %v1170, -inf
        %1193 = vmax.xlane.f32.xlu0 %v1192
        %v1194 = vpop.xlane.xlu0 %1193
        %v1195 = vsel %vm705, %v1172, -inf
        %1196 = vmax.xlane.f32.xlu0 %v1195
        %v1197 = vpop.xlane.xlu0 %1196
        %v1198 = vsub.f32 %v1155, %v1176
        %v1199 = vsub.f32 %v1157, %v1179
        %v1200 = vsub.f32 %v1160, %v1182
        %v1201 = vsub.f32 %v1162, %v1185
        %v1202 = vsub.f32 %v1165, %v1188
        %v1203 = vsub.f32 %v1167, %v1191
        %v1204 = vsub.f32 %v1170, %v1194
        %v1205 = vsub.f32 %v1172, %v1197
        %v1206 = vmul.f32 %v1198, 1.442695
        %v1207 = vpow.pop %v1206
        %v1208 = vmul.f32 %v1199, 1.442695
        %v1209 = vpow.pop %v1208
        %v1210 = vmul.f32 %v1200, 1.442695
        %v1211 = vpow.pop %v1210
        %v1212 = vmul.f32 %v1201, 1.442695
        %v1213 = vpow.pop %v1212
        %v1214 = vmul.f32 %v1202, 1.442695
        %v1215 = vpow.pop %v1214
        %v1216 = vmul.f32 %v1203, 1.442695
        %v1217 = vpow.pop %v1216
        %v1218 = vmul.f32 %v1204, 1.442695
        %v1219 = vpow.pop %v1218
        %v1220 = vmul.f32 %v1205, 1.442695
        %v1221 = vpow.pop %v1220
        %v1222 = vsel %vm705, %v1207, 0.0
        %1223 = vadd.xlane.f32.xlu0 %v1222
        %v1224 = vpop.xlane.xlu0 %1223
        %v1225 = vsel %vm705, %v1209, 0.0
        %1226 = vadd.xlane.f32.xlu0 %v1225
        %v1227 = vpop.xlane.xlu0 %1226
        %v1228 = vsel %vm705, %v1211, 0.0
        %1229 = vadd.xlane.f32.xlu0 %v1228
        %v1230 = vpop.xlane.xlu0 %1229
        %v1231 = vsel %vm705, %v1213, 0.0
        %1232 = vadd.xlane.f32.xlu0 %v1231
        %v1233 = vpop.xlane.xlu0 %1232
        %v1234 = vsel %vm705, %v1215, 0.0
        %1235 = vadd.xlane.f32.xlu0 %v1234
        %v1236 = vpop.xlane.xlu0 %1235
        %v1237 = vsel %vm705, %v1217, 0.0
        %1238 = vadd.xlane.f32.xlu0 %v1237
        %v1239 = vpop.xlane.xlu0 %1238
        %v1240 = vsel %vm705, %v1219, 0.0
        %1241 = vadd.xlane.f32.xlu0 %v1240
        %v1242 = vpop.xlane.xlu0 %1241
        %v1243 = vsel %vm705, %v1221, 0.0
        %1244 = vadd.xlane.f32.xlu0 %v1243
        %v1245 = vpop.xlane.xlu0 %1244
        %v1246 = vrcp.pop %v1224
        %v1247 = vrcp.pop %v1227
        %v1248 = vrcp.pop %v1230
        %v1249 = vrcp.pop %v1233
        %v1250 = vrcp.pop %v1236
        %v1251 = vrcp.pop %v1239
        %v1252 = vrcp.pop %v1242
        %v1253 = vrcp.pop %v1245
        %v1254 = vmul.f32 %v1207, %v1246
        %v1255 = vmul.f32 %v1209, %v1247
        %v1256 = vmul.f32 %v1211, %v1248
        %v1257 = vmul.f32 %v1213, %v1249
        %v1258 = vmul.f32 %v1215, %v1250
        %v1259 = vmul.f32 %v1217, %v1251
        %v1260 = vmul.f32 %v1219, %v1252
        %v1261 = vmul.f32 %v1221, %v1253
        %v1262 = vpack.c.bf16 %v1255, %v1254
        %v1263 = vpack.c.bf16 %v1257, %v1256
        %v1264 = vpack.c.bf16 %v1259, %v1258
        %v1265 = vpack.c.bf16 %v1261, %v1260
        %v1266 = vpack.c.bf16 %v1088, %v1086
        %v1267 = vpack.c.bf16 %v1093, %v1091
        %v1268 = vpack.c.bf16 %v1098, %v1096
        %v1269 = vpack.c.bf16 %v1103, %v1101
        %v1271 = vsel %vm705, %v1262, 0
        %v1274 = vsel %vm705, %v1263, 0
        %v1277 = vsel %vm705, %v1264, 0
        %v1280 = vsel %vm705, %v1265, 0
        %1282 = vmatpush.bf16.msra.mxu0 0
        %1283 = vmatpush.bf16.msra.mxu0 0
        %1284 = vmatpush.bf16.msra.mxu0 0
        %1285 = vmatpush.bf16.msra.mxu0 0
        %1286 = vmatpush.bf16.msra.mxu0 %v1269
        %1287 = vmatpush.bf16.msra.mxu0 %v1268
        %1288 = vmatpush.bf16.msra.mxu0 %v1267
        %1289 = vmatpush.bf16.msra.mxu0 %v1266
        %1290 = vmatmul.bf16.gmra.mxu0 %v1271
        %v1291 = vpop.f32.mrf.mxu0
        %v1292 = vadd.f32 0.0, %v1291
        %v1293 = vpop.f32.mrf.mxu0
        %v1294 = vadd.f32 0.0, %v1293
        %1295 = vmatmul.bf16.gmra.mxu0 %v1274
        %v1296 = vpop.f32.mrf.mxu0
        %v1297 = vadd.f32 0.0, %v1296
        %v1298 = vpop.f32.mrf.mxu0
        %v1299 = vadd.f32 0.0, %v1298
        %1300 = vmatmul.bf16.gmra.mxu0 %v1277
        %v1301 = vpop.f32.mrf.mxu0
        %v1302 = vadd.f32 0.0, %v1301
        %v1303 = vpop.f32.mrf.mxu0
        %v1304 = vadd.f32 0.0, %v1303
        %1305 = vmatmul.bf16.gmra.mxu0 %v1280
        %v1306 = vpop.f32.mrf.mxu0
        %v1307 = vadd.f32 0.0, %v1306
        %v1308 = vpop.f32.mrf.mxu0
        %v1309 = vadd.f32 0.0, %v1308
        %1310 = vdwg.mxu0
        %v1311 = vld [vmem:[%s6] sm:$0xf]
        %v1312 = vld [vmem:[%s6 + $0x4] sm:$0xf]
        %v1313 = vld [vmem:[%s6 + $0x8] sm:$0xf]
        %v1314 = vld [vmem:[%s6 + $0xc] sm:$0xf]
        %v1315 = vld [vmem:[%s6 + $0x10] sm:$0xf]
        %v1316 = vld [vmem:[%s6 + $0x14] sm:$0xf]
        %v1317 = vld [vmem:[%s6 + $0x18] sm:$0xf]
        %v1318 = vld [vmem:[%s6 + $0x1c] sm:$0xf]
        %v1319 = vpack.c.bf16 %v1294, %v1292
        %v1320 = vpack.c.bf16 %v1299, %v1297
        %v1321 = vpack.c.bf16 %v1304, %v1302
        %v1322 = vpack.c.bf16 %v1309, %v1307
        %v1331 = vunpack.c.l.b16 %v1311
        %v1332 = vunpack.c.l.b16 %v1312
        %v1333 = vunpack.c.l.b16 %v1313
        %v1334 = vunpack.c.l.b16 %v1314
        %v1335 = vunpack.c.l.b16 %v1315
        %v1336 = vunpack.c.l.b16 %v1316
        %v1337 = vunpack.c.l.b16 %v1317
        %v1338 = vunpack.c.l.b16 %v1318
        %v1339 = vpack.c.b16 %v1332, %v1331
        %v1340 = vpack.c.b16 %v1334, %v1333
        %v1341 = vpack.c.b16 %v1336, %v1335
        %v1342 = vpack.c.b16 %v1338, %v1337
        %v1348 = vsel %vm705, %v1319, 0
        %v1351 = vsel %vm705, %v1320, 0
        %v1354 = vsel %vm705, %v1321, 0
        %v1357 = vsel %vm705, %v1322, 0
        %1359 = vmatpush.bf16.msra.mxu0 0
        %1360 = vmatpush.bf16.msra.mxu0 0
        %1361 = vmatpush.bf16.msra.mxu0 0
        %1362 = vmatpush.bf16.msra.mxu0 0
        %1363 = vmatpush.bf16.msra.mxu0 %v1342
        %1364 = vmatpush.bf16.msra.mxu0 %v1341
        %1365 = vmatpush.bf16.msra.mxu0 %v1340
        %1366 = vmatpush.bf16.msra.mxu0 %v1339
        %1367 = vmatmul.bf16.gmra.mxu0 %v1348
        %v1368 = vpop.f32.mrf.mxu0
        %v1369 = vadd.f32 0.0, %v1368
        %v1370 = vpop.f32.mrf.mxu0
        %v1371 = vadd.f32 0.0, %v1370
        %1372 = vmatmul.bf16.gmra.mxu0 %v1351
        %v1373 = vpop.f32.mrf.mxu0
        %v1374 = vadd.f32 0.0, %v1373
        %v1375 = vpop.f32.mrf.mxu0
        %v1376 = vadd.f32 0.0, %v1375
        %1377 = vmatmul.bf16.gmra.mxu0 %v1354
        %v1378 = vpop.f32.mrf.mxu0
        %v1379 = vadd.f32 0.0, %v1378
        %v1380 = vpop.f32.mrf.mxu0
        %v1381 = vadd.f32 0.0, %v1380
        %1382 = vmatmul.bf16.gmra.mxu0 %v1357
        %v1383 = vpop.f32.mrf.mxu0
        %v1384 = vadd.f32 0.0, %v1383
        %v1385 = vpop.f32.mrf.mxu0
        %v1386 = vadd.f32 0.0, %v1385
        %1387 = vdwg.mxu0
        %v1388 = vadd.f32 %v757, %v1369
        %v1389 = vadd.f32 %v759, %v1371
        %v1390 = vadd.f32 %v762, %v1374
        %v1391 = vadd.f32 %v764, %v1376
        %v1392 = vadd.f32 %v767, %v1379
        %v1393 = vadd.f32 %v769, %v1381
        %v1394 = vadd.f32 %v772, %v1384
        %v1395 = vadd.f32 %v774, %v1386
        %v1396 = vperm.slane %v574, 4
        %v1397 = vadd.f32 %v1388, %v1396
        %v1398 = vadd.f32 %v1389, %v1396
        %v1399 = vadd.f32 %v1390, %v1396
        %v1400 = vadd.f32 %v1391, %v1396
        %v1401 = vadd.f32 %v1392, %v1396
        %v1402 = vadd.f32 %v1393, %v1396
        %v1403 = vadd.f32 %v1394, %v1396
        %v1404 = vadd.f32 %v1395, %v1396
        %v1405 = vsel %vm705, %v1397, 0.0
        %1406 = vadd.xlane.f32.xlu0 %v1405
        %v1407 = vpop.xlane.xlu0 %1406
        %v1408 = vsel %vm705, %v1398, 0.0
        %1409 = vadd.xlane.f32.xlu0 %v1408
        %v1410 = vpop.xlane.xlu0 %1409
        %v1411 = vsel %vm705, %v1399, 0.0
        %1412 = vadd.xlane.f32.xlu0 %v1411
        %v1413 = vpop.xlane.xlu0 %1412
        %v1414 = vsel %vm705, %v1400, 0.0
        %1415 = vadd.xlane.f32.xlu0 %v1414
        %v1416 = vpop.xlane.xlu0 %1415
        %v1417 = vsel %vm705, %v1401, 0.0
        %1418 = vadd.xlane.f32.xlu0 %v1417
        %v1419 = vpop.xlane.xlu0 %1418
        %v1420 = vsel %vm705, %v1402, 0.0
        %1421 = vadd.xlane.f32.xlu0 %v1420
        %v1422 = vpop.xlane.xlu0 %1421
        %v1423 = vsel %vm705, %v1403, 0.0
        %1424 = vadd.xlane.f32.xlu0 %v1423
        %v1425 = vpop.xlane.xlu0 %1424
        %v1426 = vsel %vm705, %v1404, 0.0
        %1427 = vadd.xlane.f32.xlu0 %v1426
        %v1428 = vpop.xlane.xlu0 %1427
        %v1429 = vmul.f32 %v1407, %v806
        %v1430 = vmul.f32 %v1410, %v806
        %v1431 = vmul.f32 %v1413, %v806
        %v1432 = vmul.f32 %v1416, %v806
        %v1433 = vmul.f32 %v1419, %v806
        %v1434 = vmul.f32 %v1422, %v806
        %v1435 = vmul.f32 %v1425, %v806
        %v1436 = vmul.f32 %v1428, %v806
        %v1437 = vsub.f32 %v1397, %v1429
        %v1438 = vsub.f32 %v1398, %v1430
        %v1439 = vsub.f32 %v1399, %v1431
        %v1440 = vsub.f32 %v1400, %v1432
        %v1441 = vsub.f32 %v1401, %v1433
        %v1442 = vsub.f32 %v1402, %v1434
        %v1443 = vsub.f32 %v1403, %v1435
        %v1444 = vsub.f32 %v1404, %v1436
        %v1445 = vmul.f32 %v1437, %v1437
        %v1446 = vmul.f32 %v1438, %v1438
        %v1447 = vmul.f32 %v1439, %v1439
        %v1448 = vmul.f32 %v1440, %v1440
        %v1449 = vmul.f32 %v1441, %v1441
        %v1450 = vmul.f32 %v1442, %v1442
        %v1451 = vmul.f32 %v1443, %v1443
        %v1452 = vmul.f32 %v1444, %v1444
        %v1453 = vsel %vm705, %v1445, 0.0
        %1454 = vadd.xlane.f32.xlu0 %v1453
        %v1455 = vpop.xlane.xlu0 %1454
        %v1456 = vsel %vm705, %v1446, 0.0
        %1457 = vadd.xlane.f32.xlu0 %v1456
        %v1458 = vpop.xlane.xlu0 %1457
        %v1459 = vsel %vm705, %v1447, 0.0
        %1460 = vadd.xlane.f32.xlu0 %v1459
        %v1461 = vpop.xlane.xlu0 %1460
        %v1462 = vsel %vm705, %v1448, 0.0
        %1463 = vadd.xlane.f32.xlu0 %v1462
        %v1464 = vpop.xlane.xlu0 %1463
        %v1465 = vsel %vm705, %v1449, 0.0
        %1466 = vadd.xlane.f32.xlu0 %v1465
        %v1467 = vpop.xlane.xlu0 %1466
        %v1468 = vsel %vm705, %v1450, 0.0
        %1469 = vadd.xlane.f32.xlu0 %v1468
        %v1470 = vpop.xlane.xlu0 %1469
        %v1471 = vsel %vm705, %v1451, 0.0
        %1472 = vadd.xlane.f32.xlu0 %v1471
        %v1473 = vpop.xlane.xlu0 %1472
        %v1474 = vsel %vm705, %v1452, 0.0
        %1475 = vadd.xlane.f32.xlu0 %v1474
        %v1476 = vpop.xlane.xlu0 %1475
        %v1477 = vmul.f32 %v1455, %v806
        %v1478 = vmul.f32 %v1458, %v806
        %v1479 = vmul.f32 %v1461, %v806
        %v1480 = vmul.f32 %v1464, %v806
        %v1481 = vmul.f32 %v1467, %v806
        %v1482 = vmul.f32 %v1470, %v806
        %v1483 = vmul.f32 %v1473, %v806
        %v1484 = vmul.f32 %v1476, %v806
        %v1485 = vadd.f32 %v1477, 1e-05
        %v1486 = vadd.f32 %v1478, 1e-05
        %v1487 = vadd.f32 %v1479, 1e-05
        %v1488 = vadd.f32 %v1480, 1e-05
        %v1489 = vadd.f32 %v1481, 1e-05
        %v1490 = vadd.f32 %v1482, 1e-05
        %v1491 = vadd.f32 %v1483, 1e-05
        %v1492 = vadd.f32 %v1484, 1e-05
        %v1493 = vrsqrt.pop %v1485
        %v1494 = vmul.f32 %v1493, %v1485
        %v1495 = vmul.f32 %v1494, %v1493
        %v1496 = vmul.f32 0.5, %v1495
        %v1497 = vsub.f32 1.5, %v1496
        %v1498 = vmul.f32 %v1493, %v1497
        %vm1499 = vweird.f32 %v1485
        %vm1500 = vweird.f32 %v1493
        %vm1501 = vmor %vm1499, %vm1500
        %v1502 = vsel %vm1501, %v1493, %v1498
        %v1503 = vrsqrt.pop %v1486
        %v1504 = vmul.f32 %v1503, %v1486
        %v1505 = vmul.f32 %v1504, %v1503
        %v1506 = vmul.f32 0.5, %v1505
        %v1507 = vsub.f32 1.5, %v1506
        %v1508 = vmul.f32 %v1503, %v1507
        %vm1509 = vweird.f32 %v1486
        %vm1510 = vweird.f32 %v1503
        %vm1511 = vmor %vm1509, %vm1510
        %v1512 = vsel %vm1511, %v1503, %v1508
        %v1513 = vrsqrt.pop %v1487
        %v1514 = vmul.f32 %v1513, %v1487
        %v1515 = vmul.f32 %v1514, %v1513
        %v1516 = vmul.f32 0.5, %v1515
        %v1517 = vsub.f32 1.5, %v1516
        %v1518 = vmul.f32 %v1513, %v1517
        %vm1519 = vweird.f32 %v1487
        %vm1520 = vweird.f32 %v1513
        %vm1521 = vmor %vm1519, %vm1520
        %v1522 = vsel %vm1521, %v1513, %v1518
        %v1523 = vrsqrt.pop %v1488
        %v1524 = vmul.f32 %v1523, %v1488
        %v1525 = vmul.f32 %v1524, %v1523
        %v1526 = vmul.f32 0.5, %v1525
        %v1527 = vsub.f32 1.5, %v1526
        %v1528 = vmul.f32 %v1523, %v1527
        %vm1529 = vweird.f32 %v1488
        %vm1530 = vweird.f32 %v1523
        %vm1531 = vmor %vm1529, %vm1530
        %v1532 = vsel %vm1531, %v1523, %v1528
        %v1533 = vrsqrt.pop %v1489
        %v1534 = vmul.f32 %v1533, %v1489
        %v1535 = vmul.f32 %v1534, %v1533
        %v1536 = vmul.f32 0.5, %v1535
        %v1537 = vsub.f32 1.5, %v1536
        %v1538 = vmul.f32 %v1533, %v1537
        %vm1539 = vweird.f32 %v1489
        %vm1540 = vweird.f32 %v1533
        %vm1541 = vmor %vm1539, %vm1540
        %v1542 = vsel %vm1541, %v1533, %v1538
        %v1543 = vrsqrt.pop %v1490
        %v1544 = vmul.f32 %v1543, %v1490
        %v1545 = vmul.f32 %v1544, %v1543
        %v1546 = vmul.f32 0.5, %v1545
        %v1547 = vsub.f32 1.5, %v1546
        %v1548 = vmul.f32 %v1543, %v1547
        %vm1549 = vweird.f32 %v1490
        %vm1550 = vweird.f32 %v1543
        %vm1551 = vmor %vm1549, %vm1550
        %v1552 = vsel %vm1551, %v1543, %v1548
        %v1553 = vrsqrt.pop %v1491
        %v1554 = vmul.f32 %v1553, %v1491
        %v1555 = vmul.f32 %v1554, %v1553
        %v1556 = vmul.f32 0.5, %v1555
        %v1557 = vsub.f32 1.5, %v1556
        %v1558 = vmul.f32 %v1553, %v1557
        %vm1559 = vweird.f32 %v1491
        %vm1560 = vweird.f32 %v1553
        %vm1561 = vmor %vm1559, %vm1560
        %v1562 = vsel %vm1561, %v1553, %v1558
        %v1563 = vrsqrt.pop %v1492
        %v1564 = vmul.f32 %v1563, %v1492
        %v1565 = vmul.f32 %v1564, %v1563
        %v1566 = vmul.f32 0.5, %v1565
        %v1567 = vsub.f32 1.5, %v1566
        %v1568 = vmul.f32 %v1563, %v1567
        %vm1569 = vweird.f32 %v1492
        %vm1570 = vweird.f32 %v1563
        %vm1571 = vmor %vm1569, %vm1570
        %v1572 = vsel %vm1571, %v1563, %v1568
        %v1573 = vmul.f32 %v1437, %v1502
        %v1574 = vmul.f32 %v1438, %v1512
        %v1575 = vmul.f32 %v1439, %v1522
        %v1576 = vmul.f32 %v1440, %v1532
        %v1577 = vmul.f32 %v1441, %v1542
        %v1578 = vmul.f32 %v1442, %v1552
        %v1579 = vmul.f32 %v1443, %v1562
        %v1580 = vmul.f32 %v1444, %v1572
        %v1581 = vperm.slane %v574, 2
        %v1582 = vmul.f32 %v1573, %v1581
        %v1583 = vmul.f32 %v1574, %v1581
        %v1584 = vmul.f32 %v1575, %v1581
        %v1585 = vmul.f32 %v1576, %v1581
        %v1586 = vmul.f32 %v1577, %v1581
        %v1587 = vmul.f32 %v1578, %v1581
        %v1588 = vmul.f32 %v1579, %v1581
        %v1589 = vmul.f32 %v1580, %v1581
        %v1590 = vperm.slane %v574, 3
        %v1591 = vadd.f32 %v1582, %v1590
        %v1592 = vadd.f32 %v1583, %v1590
        %v1593 = vadd.f32 %v1584, %v1590
        %v1594 = vadd.f32 %v1585, %v1590
        %v1595 = vadd.f32 %v1586, %v1590
        %v1596 = vadd.f32 %v1587, %v1590
        %v1597 = vadd.f32 %v1588, %v1590
        %v1598 = vadd.f32 %v1589, %v1590
        %v1599 = vld [vmem:[%s7] sm:$0xff]
        %v1600 = vld [vmem:[%s7 + $0x8] sm:$0xff]
        %v1601 = vld [vmem:[%s7 + $0x10] sm:$0xff]
        %v1602 = vld [vmem:[%s7 + $0x18] sm:$0xff]
        %v1603 = vld [vmem:[%s7 + $0x20] sm:$0xff]
        %v1604 = vld [vmem:[%s7 + $0x28] sm:$0xff]
        %v1605 = vld [vmem:[%s7 + $0x30] sm:$0xff]
        %v1606 = vld [vmem:[%s7 + $0x38] sm:$0xff]
        %v1607 = vpack.c.bf16 %v1592, %v1591
        %v1608 = vpack.c.bf16 %v1594, %v1593
        %v1609 = vpack.c.bf16 %v1596, %v1595
        %v1610 = vpack.c.bf16 %v1598, %v1597
        %v1611 = vld [vmem:[%s8] sm:$0x3]
        %v1613 = vperm.slane %v1611, 0
        %v1614 = vperm.slane %v1611, 1
        %v1625 = vunpack.c.l.b16 %v1599
        %v1626 = vunpack.c.h.b16 %v1599
        %v1627 = vunpack.c.l.b16 %v1600
        %v1628 = vunpack.c.h.b16 %v1600
        %v1629 = vunpack.c.l.b16 %v1601
        %v1630 = vunpack.c.h.b16 %v1601
        %v1631 = vunpack.c.l.b16 %v1602
        %v1632 = vunpack.c.h.b16 %v1602
        %v1633 = vunpack.c.l.b16 %v1603
        %v1634 = vunpack.c.h.b16 %v1603
        %v1635 = vunpack.c.l.b16 %v1604
        %v1636 = vunpack.c.h.b16 %v1604
        %v1637 = vunpack.c.l.b16 %v1605
        %v1638 = vunpack.c.h.b16 %v1605
        %v1639 = vunpack.c.l.b16 %v1606
        %v1640 = vunpack.c.h.b16 %v1606
        %v1641 = vpack.c.b16 %v1627, %v1625
        %v1642 = vpack.c.b16 %v1628, %v1626
        %v1643 = vpack.c.b16 %v1631, %v1629
        %v1644 = vpack.c.b16 %v1632, %v1630
        %v1645 = vpack.c.b16 %v1635, %v1633
        %v1646 = vpack.c.b16 %v1636, %v1634
        %v1647 = vpack.c.b16 %v1639, %v1637
        %v1648 = vpack.c.b16 %v1640, %v1638
        %v1658 = vsel %vm705, %v1607, 0
        %v1661 = vsel %vm705, %v1608, 0
        %v1664 = vsel %vm705, %v1609, 0
        %v1667 = vsel %vm705, %v1610, 0
        %1669 = vmatpush.bf16.msra.mxu0 0
        %1670 = vmatpush.bf16.msra.mxu0 0
        %1671 = vmatpush.bf16.msra.mxu0 0
        %1672 = vmatpush.bf16.msra.mxu0 0
        %1673 = vmatpush.bf16.msra.mxu0 %v1647
        %1674 = vmatpush.bf16.msra.mxu0 %v1645
        %1675 = vmatpush.bf16.msra.mxu0 %v1643
        %1676 = vmatpush.bf16.msra.mxu0 %v1641
        %1677 = vmatmul.bf16.gmra.mxu0 %v1658
        %v1678 = vpop.f32.mrf.mxu0
        %v1679 = vadd.f32 %v1613, %v1678
        %v1680 = vpop.f32.mrf.mxu0
        %v1681 = vadd.f32 %v1613, %v1680
        %1682 = vmatmul.bf16.gmra.mxu0 %v1661
        %v1683 = vpop.f32.mrf.mxu0
        %v1684 = vadd.f32 %v1613, %v1683
        %v1685 = vpop.f32.mrf.mxu0
        %v1686 = vadd.f32 %v1613, %v1685
        %1687 = vmatmul.bf16.gmra.mxu0 %v1664
        %v1688 = vpop.f32.mrf.mxu0
        %v1689 = vadd.f32 %v1613, %v1688
        %v1690 = vpop.f32.mrf.mxu0
        %v1691 = vadd.f32 %v1613, %v1690
        %1692 = vmatmul.bf16.gmra.mxu0 %v1667
        %v1693 = vpop.f32.mrf.mxu0
        %v1694 = vadd.f32 %v1613, %v1693
        %v1695 = vpop.f32.mrf.mxu0
        %v1696 = vadd.f32 %v1613, %v1695
        %1697 = vdwg.mxu0
        %1698 = vmatpush.bf16.msra.mxu0 0
        %1699 = vmatpush.bf16.msra.mxu0 0
        %1700 = vmatpush.bf16.msra.mxu0 0
        %1701 = vmatpush.bf16.msra.mxu0 0
        %1702 = vmatpush.bf16.msra.mxu0 %v1648
        %1703 = vmatpush.bf16.msra.mxu0 %v1646
        %1704 = vmatpush.bf16.msra.mxu0 %v1644
        %1705 = vmatpush.bf16.msra.mxu0 %v1642
        %1706 = vmatmul.bf16.gmra.mxu0 %v1658
        %v1707 = vpop.f32.mrf.mxu0
        %v1708 = vadd.f32 %v1614, %v1707
        %v1709 = vpop.f32.mrf.mxu0
        %v1710 = vadd.f32 %v1614, %v1709
        %1711 = vmatmul.bf16.gmra.mxu0 %v1661
        %v1712 = vpop.f32.mrf.mxu0
        %v1713 = vadd.f32 %v1614, %v1712
        %v1714 = vpop.f32.mrf.mxu0
        %v1715 = vadd.f32 %v1614, %v1714
        %1716 = vmatmul.bf16.gmra.mxu0 %v1664
        %v1717 = vpop.f32.mrf.mxu0
        %v1718 = vadd.f32 %v1614, %v1717
        %v1719 = vpop.f32.mrf.mxu0
        %v1720 = vadd.f32 %v1614, %v1719
        %1721 = vmatmul.bf16.gmra.mxu0 %v1667
        %v1722 = vpop.f32.mrf.mxu0
        %v1723 = vadd.f32 %v1614, %v1722
        %v1724 = vpop.f32.mrf.mxu0
        %v1725 = vadd.f32 %v1614, %v1724
        %1726 = vdwg.mxu0
        %v1727 = vmul.f32 %v1679, %v1679
        %v1728 = vmul.f32 %v1708, %v1708
        %v1729 = vmul.f32 %v1681, %v1681
        %v1730 = vmul.f32 %v1710, %v1710
        %v1731 = vmul.f32 %v1684, %v1684
        %v1732 = vmul.f32 %v1713, %v1713
        %v1733 = vmul.f32 %v1686, %v1686
        %v1734 = vmul.f32 %v1715, %v1715
        %v1735 = vmul.f32 %v1689, %v1689
        %v1736 = vmul.f32 %v1718, %v1718
        %v1737 = vmul.f32 %v1691, %v1691
        %v1738 = vmul.f32 %v1720, %v1720
        %v1739 = vmul.f32 %v1694, %v1694
        %v1740 = vmul.f32 %v1723, %v1723
        %v1741 = vmul.f32 %v1696, %v1696
        %v1742 = vmul.f32 %v1725, %v1725
        %v1743 = vmul.f32 %v1679, %v1727
        %v1744 = vmul.f32 %v1708, %v1728
        %v1745 = vmul.f32 %v1681, %v1729
        %v1746 = vmul.f32 %v1710, %v1730
        %v1747 = vmul.f32 %v1684, %v1731
        %v1748 = vmul.f32 %v1713, %v1732
        %v1749 = vmul.f32 %v1686, %v1733
        %v1750 = vmul.f32 %v1715, %v1734
        %v1751 = vmul.f32 %v1689, %v1735
        %v1752 = vmul.f32 %v1718, %v1736
        %v1753 = vmul.f32 %v1691, %v1737
        %v1754 = vmul.f32 %v1720, %v1738
        %v1755 = vmul.f32 %v1694, %v1739
        %v1756 = vmul.f32 %v1723, %v1740
        %v1757 = vmul.f32 %v1696, %v1741
        %v1758 = vmul.f32 %v1725, %v1742
        %v1759 = vmul.f32 %v1743, 0.044715
        %v1760 = vmul.f32 %v1744, 0.044715
        %v1761 = vmul.f32 %v1745, 0.044715
        %v1762 = vmul.f32 %v1746, 0.044715
        %v1763 = vmul.f32 %v1747, 0.044715
        %v1764 = vmul.f32 %v1748, 0.044715
        %v1765 = vmul.f32 %v1749, 0.044715
        %v1766 = vmul.f32 %v1750, 0.044715
        %v1767 = vmul.f32 %v1751, 0.044715
        %v1768 = vmul.f32 %v1752, 0.044715
        %v1769 = vmul.f32 %v1753, 0.044715
        %v1770 = vmul.f32 %v1754, 0.044715
        %v1771 = vmul.f32 %v1755, 0.044715
        %v1772 = vmul.f32 %v1756, 0.044715
        %v1773 = vmul.f32 %v1757, 0.044715
        %v1774 = vmul.f32 %v1758, 0.044715
        %v1775 = vadd.f32 %v1679, %v1759
        %v1776 = vadd.f32 %v1708, %v1760
        %v1777 = vadd.f32 %v1681, %v1761
        %v1778 = vadd.f32 %v1710, %v1762
        %v1779 = vadd.f32 %v1684, %v1763
        %v1780 = vadd.f32 %v1713, %v1764
        %v1781 = vadd.f32 %v1686, %v1765
        %v1782 = vadd.f32 %v1715, %v1766
        %v1783 = vadd.f32 %v1689, %v1767
        %v1784 = vadd.f32 %v1718, %v1768
        %v1785 = vadd.f32 %v1691, %v1769
        %v1786 = vadd.f32 %v1720, %v1770
        %v1787 = vadd.f32 %v1694, %v1771
        %v1788 = vadd.f32 %v1723, %v1772
        %v1789 = vadd.f32 %v1696, %v1773
        %v1790 = vadd.f32 %v1725, %v1774
        %v1791 = vmul.f32 %v1775, 0.7978846
        %v1792 = vmul.f32 %v1776, 0.7978846
        %v1793 = vmul.f32 %v1777, 0.7978846
        %v1794 = vmul.f32 %v1778, 0.7978846
        %v1795 = vmul.f32 %v1779, 0.7978846
        %v1796 = vmul.f32 %v1780, 0.7978846
        %v1797 = vmul.f32 %v1781, 0.7978846
        %v1798 = vmul.f32 %v1782, 0.7978846
        %v1799 = vmul.f32 %v1783, 0.7978846
        %v1800 = vmul.f32 %v1784, 0.7978846
        %v1801 = vmul.f32 %v1785, 0.7978846
        %v1802 = vmul.f32 %v1786, 0.7978846
        %v1803 = vmul.f32 %v1787, 0.7978846
        %v1804 = vmul.f32 %v1788, 0.7978846
        %v1805 = vmul.f32 %v1789, 0.7978846
        %v1806 = vmul.f32 %v1790, 0.7978846
        %v1807 = vtanh.pop %v1791
        %v1808 = vtanh.pop %v1792
        %v1809 = vtanh.pop %v1793
        %v1810 = vtanh.pop %v1794
        %v1811 = vtanh.pop %v1795
        %v1812 = vtanh.pop %v1796
        %v1813 = vtanh.pop %v1797
        %v1814 = vtanh.pop %v1798
        %v1815 = vtanh.pop %v1799
        %v1816 = vtanh.pop %v1800
        %v1817 = vtanh.pop %v1801
        %v1818 = vtanh.pop %v1802
        %v1819 = vtanh.pop %v1803
        %v1820 = vtanh.pop %v1804
        %v1821 = vtanh.pop %v1805
        %v1822 = vtanh.pop %v1806
        %v1823 = vadd.f32 %v1807, 1.0
        %v1824 = vadd.f32 %v1808, 1.0
        %v1825 = vadd.f32 %v1809, 1.0
        %v1826 = vadd.f32 %v1810, 1.0
        %v1827 = vadd.f32 %v1811, 1.0
        %v1828 = vadd.f32 %v1812, 1.0
        %v1829 = vadd.f32 %v1813, 1.0
        %v1830 = vadd.f32 %v1814, 1.0
        %v1831 = vadd.f32 %v1815, 1.0
        %v1832 = vadd.f32 %v1816, 1.0
        %v1833 = vadd.f32 %v1817, 1.0
        %v1834 = vadd.f32 %v1818, 1.0
        %v1835 = vadd.f32 %v1819, 1.0
        %v1836 = vadd.f32 %v1820, 1.0
        %v1837 = vadd.f32 %v1821, 1.0
        %v1838 = vadd.f32 %v1822, 1.0
        %v1839 = vmul.f32 %v1823, 0.5
        %v1840 = vmul.f32 %v1824, 0.5
        %v1841 = vmul.f32 %v1825, 0.5
        %v1842 = vmul.f32 %v1826, 0.5
        %v1843 = vmul.f32 %v1827, 0.5
        %v1844 = vmul.f32 %v1828, 0.5
        %v1845 = vmul.f32 %v1829, 0.5
        %v1846 = vmul.f32 %v1830, 0.5
        %v1847 = vmul.f32 %v1831, 0.5
        %v1848 = vmul.f32 %v1832, 0.5
        %v1849 = vmul.f32 %v1833, 0.5
        %v1850 = vmul.f32 %v1834, 0.5
        %v1851 = vmul.f32 %v1835, 0.5
        %v1852 = vmul.f32 %v1836, 0.5
        %v1853 = vmul.f32 %v1837, 0.5
        %v1854 = vmul.f32 %v1838, 0.5
        %v1855 = vmul.f32 %v1679, %v1839
        %v1856 = vmul.f32 %v1708, %v1840
        %v1857 = vmul.f32 %v1681, %v1841
        %v1858 = vmul.f32 %v1710, %v1842
        %v1859 = vmul.f32 %v1684, %v1843
        %v1860 = vmul.f32 %v1713, %v1844
        %v1861 = vmul.f32 %v1686, %v1845
        %v1862 = vmul.f32 %v1715, %v1846
        %v1863 = vmul.f32 %v1689, %v1847
        %v1864 = vmul.f32 %v1718, %v1848
        %v1865 = vmul.f32 %v1691, %v1849
        %v1866 = vmul.f32 %v1720, %v1850
        %v1867 = vmul.f32 %v1694, %v1851
        %v1868 = vmul.f32 %v1723, %v1852
        %v1869 = vmul.f32 %v1696, %v1853
        %v1870 = vmul.f32 %v1725, %v1854
        %v1871 = vld [vmem:[%s9] sm:$0xf]
        %v1872 = vld [vmem:[%s9 + $0x4] sm:$0xf]
        %v1873 = vld [vmem:[%s9 + $0x8] sm:$0xf]
        %v1874 = vld [vmem:[%s9 + $0xc] sm:$0xf]
        %v1875 = vld [vmem:[%s9 + $0x10] sm:$0xf]
        %v1876 = vld [vmem:[%s9 + $0x14] sm:$0xf]
        %v1877 = vld [vmem:[%s9 + $0x18] sm:$0xf]
        %v1878 = vld [vmem:[%s9 + $0x1c] sm:$0xf]
        %v1879 = vld [vmem:[%s9 + $0x20] sm:$0xf]
        %v1880 = vld [vmem:[%s9 + $0x24] sm:$0xf]
        %v1881 = vld [vmem:[%s9 + $0x28] sm:$0xf]
        %v1882 = vld [vmem:[%s9 + $0x2c] sm:$0xf]
        %v1883 = vld [vmem:[%s9 + $0x30] sm:$0xf]
        %v1884 = vld [vmem:[%s9 + $0x34] sm:$0xf]
        %v1885 = vld [vmem:[%s9 + $0x38] sm:$0xf]
        %v1886 = vld [vmem:[%s9 + $0x3c] sm:$0xf]
        %v1887 = vld [vmem:[%s9 + $0x40] sm:$0xf]
        %v1888 = vld [vmem:[%s9 + $0x44] sm:$0xf]
        %v1889 = vld [vmem:[%s9 + $0x48] sm:$0xf]
        %v1890 = vld [vmem:[%s9 + $0x4c] sm:$0xf]
        %v1891 = vld [vmem:[%s9 + $0x50] sm:$0xf]
        %v1892 = vld [vmem:[%s9 + $0x54] sm:$0xf]
        %v1893 = vld [vmem:[%s9 + $0x58] sm:$0xf]
        %v1894 = vld [vmem:[%s9 + $0x5c] sm:$0xf]
        %v1895 = vld [vmem:[%s9 + $0x60] sm:$0xf]
        %v1896 = vld [vmem:[%s9 + $0x64] sm:$0xf]
        %v1897 = vld [vmem:[%s9 + $0x68] sm:$0xf]
        %v1898 = vld [vmem:[%s9 + $0x6c] sm:$0xf]
        %v1899 = vld [vmem:[%s9 + $0x70] sm:$0xf]
        %v1900 = vld [vmem:[%s9 + $0x74] sm:$0xf]
        %v1901 = vld [vmem:[%s9 + $0x78] sm:$0xf]
        %v1902 = vld [vmem:[%s9 + $0x7c] sm:$0xf]
        %v1903 = vpack.c.bf16 %v1857, %v1855
        %v1904 = vpack.c.bf16 %v1858, %v1856
        %v1905 = vpack.c.bf16 %v1861, %v1859
        %v1906 = vpack.c.bf16 %v1862, %v1860
        %v1907 = vpack.c.bf16 %v1865, %v1863
        %v1908 = vpack.c.bf16 %v1866, %v1864
        %v1909 = vpack.c.bf16 %v1869, %v1867
        %v1910 = vpack.c.bf16 %v1870, %v1868
        %v1943 = vunpack.c.l.b16 %v1871
        %v1944 = vunpack.c.l.b16 %v1872
        %v1945 = vunpack.c.l.b16 %v1873
        %v1946 = vunpack.c.l.b16 %v1874
        %v1947 = vunpack.c.l.b16 %v1875
        %v1948 = vunpack.c.l.b16 %v1876
        %v1949 = vunpack.c.l.b16 %v1877
        %v1950 = vunpack.c.l.b16 %v1878
        %v1951 = vunpack.c.l.b16 %v1879
        %v1952 = vunpack.c.l.b16 %v1880
        %v1953 = vunpack.c.l.b16 %v1881
        %v1954 = vunpack.c.l.b16 %v1882
        %v1955 = vunpack.c.l.b16 %v1883
        %v1956 = vunpack.c.l.b16 %v1884
        %v1957 = vunpack.c.l.b16 %v1885
        %v1958 = vunpack.c.l.b16 %v1886
        %v1959 = vunpack.c.l.b16 %v1887
        %v1960 = vunpack.c.l.b16 %v1888
        %v1961 = vunpack.c.l.b16 %v1889
        %v1962 = vunpack.c.l.b16 %v1890
        %v1963 = vunpack.c.l.b16 %v1891
        %v1964 = vunpack.c.l.b16 %v1892
        %v1965 = vunpack.c.l.b16 %v1893
        %v1966 = vunpack.c.l.b16 %v1894
        %v1967 = vunpack.c.l.b16 %v1895
        %v1968 = vunpack.c.l.b16 %v1896
        %v1969 = vunpack.c.l.b16 %v1897
        %v1970 = vunpack.c.l.b16 %v1898
        %v1971 = vunpack.c.l.b16 %v1899
        %v1972 = vunpack.c.l.b16 %v1900
        %v1973 = vunpack.c.l.b16 %v1901
        %v1974 = vunpack.c.l.b16 %v1902
        %v1975 = vpack.c.b16 %v1944, %v1943
        %v1976 = vpack.c.b16 %v1946, %v1945
        %v1977 = vpack.c.b16 %v1948, %v1947
        %v1978 = vpack.c.b16 %v1950, %v1949
        %v1979 = vpack.c.b16 %v1952, %v1951
        %v1980 = vpack.c.b16 %v1954, %v1953
        %v1981 = vpack.c.b16 %v1956, %v1955
        %v1982 = vpack.c.b16 %v1958, %v1957
        %v1983 = vpack.c.b16 %v1960, %v1959
        %v1984 = vpack.c.b16 %v1962, %v1961
        %v1985 = vpack.c.b16 %v1964, %v1963
        %v1986 = vpack.c.b16 %v1966, %v1965
        %v1987 = vpack.c.b16 %v1968, %v1967
        %v1988 = vpack.c.b16 %v1970, %v1969
        %v1989 = vpack.c.b16 %v1972, %v1971
        %v1990 = vpack.c.b16 %v1974, %v1973
        %2007 = vmatpush.bf16.msra.mxu0 %v1982
        %2008 = vmatpush.bf16.msra.mxu0 %v1981
        %2009 = vmatpush.bf16.msra.mxu0 %v1980
        %2010 = vmatpush.bf16.msra.mxu0 %v1979
        %2011 = vmatpush.bf16.msra.mxu0 %v1978
        %2012 = vmatpush.bf16.msra.mxu0 %v1977
        %2013 = vmatpush.bf16.msra.mxu0 %v1976
        %2014 = vmatpush.bf16.msra.mxu0 %v1975
        %2015 = vmatmul.bf16.gmra.mxu0 %v1903
        %v2016 = vpop.f32.mrf.mxu0
        %v2017 = vadd.f32 0.0, %v2016
        %v2018 = vpop.f32.mrf.mxu0
        %v2019 = vadd.f32 0.0, %v2018
        %2020 = vmatmul.bf16.gmra.mxu0 %v1905
        %v2021 = vpop.f32.mrf.mxu0
        %v2022 = vadd.f32 0.0, %v2021
        %v2023 = vpop.f32.mrf.mxu0
        %v2024 = vadd.f32 0.0, %v2023
        %2025 = vmatmul.bf16.gmra.mxu0 %v1907
        %v2026 = vpop.f32.mrf.mxu0
        %v2027 = vadd.f32 0.0, %v2026
        %v2028 = vpop.f32.mrf.mxu0
        %v2029 = vadd.f32 0.0, %v2028
        %2030 = vmatmul.bf16.gmra.mxu0 %v1909
        %v2031 = vpop.f32.mrf.mxu0
        %v2032 = vadd.f32 0.0, %v2031
        %v2033 = vpop.f32.mrf.mxu0
        %v2034 = vadd.f32 0.0, %v2033
        %2035 = vdwg.mxu0
        %2036 = vmatpush.bf16.msra.mxu0 %v1990
        %2037 = vmatpush.bf16.msra.mxu0 %v1989
        %2038 = vmatpush.bf16.msra.mxu0 %v1988
        %2039 = vmatpush.bf16.msra.mxu0 %v1987
        %2040 = vmatpush.bf16.msra.mxu0 %v1986
        %2041 = vmatpush.bf16.msra.mxu0 %v1985
        %2042 = vmatpush.bf16.msra.mxu0 %v1984
        %2043 = vmatpush.bf16.msra.mxu0 %v1983
        %2044 = vmatmul.bf16.gmra.mxu0 %v1904
        %v2045 = vpop.f32.mrf.mxu0
        %v2046 = vadd.f32 %v2017, %v2045
        %v2047 = vpop.f32.mrf.mxu0
        %v2048 = vadd.f32 %v2019, %v2047
        %2049 = vmatmul.bf16.gmra.mxu0 %v1906
        %v2050 = vpop.f32.mrf.mxu0
        %v2051 = vadd.f32 %v2022, %v2050
        %v2052 = vpop.f32.mrf.mxu0
        %v2053 = vadd.f32 %v2024, %v2052
        %2054 = vmatmul.bf16.gmra.mxu0 %v1908
        %v2055 = vpop.f32.mrf.mxu0
        %v2056 = vadd.f32 %v2027, %v2055
        %v2057 = vpop.f32.mrf.mxu0
        %v2058 = vadd.f32 %v2029, %v2057
        %2059 = vmatmul.bf16.gmra.mxu0 %v1910
        %v2060 = vpop.f32.mrf.mxu0
        %v2061 = vadd.f32 %v2032, %v2060
        %v2062 = vpop.f32.mrf.mxu0
        %v2063 = vadd.f32 %v2034, %v2062
        %2064 = vdwg.mxu0
        %v2065 = vadd.f32 %v1397, %v2046
        %v2066 = vadd.f32 %v1398, %v2048
        %v2067 = vadd.f32 %v1399, %v2051
        %v2068 = vadd.f32 %v1400, %v2053
        %v2069 = vadd.f32 %v1401, %v2056
        %v2070 = vadd.f32 %v1402, %v2058
        %v2071 = vadd.f32 %v1403, %v2061
        %v2072 = vadd.f32 %v1404, %v2063
        %v2073 = vperm.slane %v574, 5
        %v2074 = vadd.f32 %v2065, %v2073
        %v2075 = vadd.f32 %v2066, %v2073
        %v2076 = vadd.f32 %v2067, %v2073
        %v2077 = vadd.f32 %v2068, %v2073
        %v2078 = vadd.f32 %v2069, %v2073
        %v2079 = vadd.f32 %v2070, %v2073
        %v2080 = vadd.f32 %v2071, %v2073
        %v2081 = vadd.f32 %v2072, %v2073
        %v2082 = vld [vmem:[%s10] sm:$0xf]
        %v2083 = vld [vmem:[%s10 + $0x4] sm:$0xf]
        %v2084 = vld [vmem:[%s10 + $0x8] sm:$0xf]
        %v2085 = vld [vmem:[%s10 + $0xc] sm:$0xf]
        %v2086 = vld [vmem:[%s10 + $0x10] sm:$0xf]
        %v2087 = vld [vmem:[%s10 + $0x14] sm:$0xf]
        %v2088 = vld [vmem:[%s10 + $0x18] sm:$0xf]
        %v2089 = vld [vmem:[%s10 + $0x1c] sm:$0xf]
        %v2090 = vpack.c.bf16 %v2075, %v2074
        %v2091 = vpack.c.bf16 %v2077, %v2076
        %v2092 = vpack.c.bf16 %v2079, %v2078
        %v2093 = vpack.c.bf16 %v2081, %v2080
        %v2094 = vperm.slane %v575, 0
        %v2103 = vunpack.c.l.b16 %v2082
        %v2104 = vunpack.c.l.b16 %v2083
        %v2105 = vunpack.c.l.b16 %v2084
        %v2106 = vunpack.c.l.b16 %v2085
        %v2107 = vunpack.c.l.b16 %v2086
        %v2108 = vunpack.c.l.b16 %v2087
        %v2109 = vunpack.c.l.b16 %v2088
        %v2110 = vunpack.c.l.b16 %v2089
        %v2111 = vpack.c.b16 %v2104, %v2103
        %v2112 = vpack.c.b16 %v2106, %v2105
        %v2113 = vpack.c.b16 %v2108, %v2107
        %v2114 = vpack.c.b16 %v2110, %v2109
        %v2120 = vsel %vm705, %v2090, 0
        %v2123 = vsel %vm705, %v2091, 0
        %v2126 = vsel %vm705, %v2092, 0
        %v2129 = vsel %vm705, %v2093, 0
        %2131 = vmatpush.bf16.msra.mxu0 0
        %2132 = vmatpush.bf16.msra.mxu0 0
        %2133 = vmatpush.bf16.msra.mxu0 0
        %2134 = vmatpush.bf16.msra.mxu0 0
        %2135 = vmatpush.bf16.msra.mxu0 %v2114
        %2136 = vmatpush.bf16.msra.mxu0 %v2113
        %2137 = vmatpush.bf16.msra.mxu0 %v2112
        %2138 = vmatpush.bf16.msra.mxu0 %v2111
        %2139 = vmatmul.bf16.gmra.mxu0 %v2120
        %v2140 = vpop.f32.mrf.mxu0
        %v2141 = vadd.f32 %v2094, %v2140
        %v2142 = vpop.f32.mrf.mxu0
        %v2143 = vadd.f32 %v2094, %v2142
        %2144 = vmatmul.bf16.gmra.mxu0 %v2123
        %v2145 = vpop.f32.mrf.mxu0
        %v2146 = vadd.f32 %v2094, %v2145
        %v2147 = vpop.f32.mrf.mxu0
        %v2148 = vadd.f32 %v2094, %v2147
        %2149 = vmatmul.bf16.gmra.mxu0 %v2126
        %v2150 = vpop.f32.mrf.mxu0
        %v2151 = vadd.f32 %v2094, %v2150
        %v2152 = vpop.f32.mrf.mxu0
        %v2153 = vadd.f32 %v2094, %v2152
        %2154 = vmatmul.bf16.gmra.mxu0 %v2129
        %v2155 = vpop.f32.mrf.mxu0
        %v2156 = vadd.f32 %v2094, %v2155
        %v2157 = vpop.f32.mrf.mxu0
        %v2158 = vadd.f32 %v2094, %v2157
        %2159 = vdwg.mxu0
        %vm2160 = vcmask 261120
        %v2161 = vsel %vm2160, %v2141, 0.0
        %2162 = vadd.xlane.f32.xlu0 %v2161
        %v2163 = vpop.xlane.xlu0 %2162
        %v2164 = vsel %vm2160, %v2143, 0.0
        %2165 = vadd.xlane.f32.xlu0 %v2164
        %v2166 = vpop.xlane.xlu0 %2165
        %v2167 = vsel %vm2160, %v2146, 0.0
        %2168 = vadd.xlane.f32.xlu0 %v2167
        %v2169 = vpop.xlane.xlu0 %2168
        %v2170 = vsel %vm2160, %v2148, 0.0
        %2171 = vadd.xlane.f32.xlu0 %v2170
        %v2172 = vpop.xlane.xlu0 %2171
        %v2173 = vsel %vm2160, %v2151, 0.0
        %2174 = vadd.xlane.f32.xlu0 %v2173
        %v2175 = vpop.xlane.xlu0 %2174
        %v2176 = vsel %vm2160, %v2153, 0.0
        %2177 = vadd.xlane.f32.xlu0 %v2176
        %v2178 = vpop.xlane.xlu0 %2177
        %v2179 = vsel %vm2160, %v2156, 0.0
        %2180 = vadd.xlane.f32.xlu0 %v2179
        %v2181 = vpop.xlane.xlu0 %2180
        %v2182 = vsel %vm2160, %v2158, 0.0
        %2183 = vadd.xlane.f32.xlu0 %v2182
        %v2184 = vpop.xlane.xlu0 %2183
        %v2185 = vrcp.pop 32.0
        %v2186 = vmul.f32 32.0, %v2185
        %v2187 = vsub.f32 1.0, %v2186
        %v2188 = vmul.f32 %v2185, %v2187
        %v2189 = vadd.f32 %v2185, %v2188
        %vm2190 = vweird.f32 %v2185
        %v2191 = vsel %vm2190, %v2185, %v2189
        %v2192 = vmul.f32 %v2163, %v2191
        %v2193 = vmul.f32 %v2166, %v2191
        %v2194 = vmul.f32 %v2169, %v2191
        %v2195 = vmul.f32 %v2172, %v2191
        %v2196 = vmul.f32 %v2175, %v2191
        %v2197 = vmul.f32 %v2178, %v2191
        %v2198 = vmul.f32 %v2181, %v2191
        %v2199 = vmul.f32 %v2184, %v2191
        %v2200 = vsub.f32 %v2141, %v2192
        %v2201 = vsub.f32 %v2143, %v2193
        %v2202 = vsub.f32 %v2146, %v2194
        %v2203 = vsub.f32 %v2148, %v2195
        %v2204 = vsub.f32 %v2151, %v2196
        %v2205 = vsub.f32 %v2153, %v2197
        %v2206 = vsub.f32 %v2156, %v2198
        %v2207 = vsub.f32 %v2158, %v2199
        %v2208 = vmul.f32 %v2200, %v2200
        %v2209 = vmul.f32 %v2201, %v2201
        %v2210 = vmul.f32 %v2202, %v2202
        %v2211 = vmul.f32 %v2203, %v2203
        %v2212 = vmul.f32 %v2204, %v2204
        %v2213 = vmul.f32 %v2205, %v2205
        %v2214 = vmul.f32 %v2206, %v2206
        %v2215 = vmul.f32 %v2207, %v2207
        %v2216 = vsel %vm2160, %v2208, 0.0
        %2217 = vadd.xlane.f32.xlu0 %v2216
        %v2218 = vpop.xlane.xlu0 %2217
        %v2219 = vsel %vm2160, %v2209, 0.0
        %2220 = vadd.xlane.f32.xlu0 %v2219
        %v2221 = vpop.xlane.xlu0 %2220
        %v2222 = vsel %vm2160, %v2210, 0.0
        %2223 = vadd.xlane.f32.xlu0 %v2222
        %v2224 = vpop.xlane.xlu0 %2223
        %v2225 = vsel %vm2160, %v2211, 0.0
        %2226 = vadd.xlane.f32.xlu0 %v2225
        %v2227 = vpop.xlane.xlu0 %2226
        %v2228 = vsel %vm2160, %v2212, 0.0
        %2229 = vadd.xlane.f32.xlu0 %v2228
        %v2230 = vpop.xlane.xlu0 %2229
        %v2231 = vsel %vm2160, %v2213, 0.0
        %2232 = vadd.xlane.f32.xlu0 %v2231
        %v2233 = vpop.xlane.xlu0 %2232
        %v2234 = vsel %vm2160, %v2214, 0.0
        %2235 = vadd.xlane.f32.xlu0 %v2234
        %v2236 = vpop.xlane.xlu0 %2235
        %v2237 = vsel %vm2160, %v2215, 0.0
        %2238 = vadd.xlane.f32.xlu0 %v2237
        %v2239 = vpop.xlane.xlu0 %2238
        %v2240 = vmul.f32 %v2218, %v2191
        %v2241 = vmul.f32 %v2221, %v2191
        %v2242 = vmul.f32 %v2224, %v2191
        %v2243 = vmul.f32 %v2227, %v2191
        %v2244 = vmul.f32 %v2230, %v2191
        %v2245 = vmul.f32 %v2233, %v2191
        %v2246 = vmul.f32 %v2236, %v2191
        %v2247 = vmul.f32 %v2239, %v2191
        %v2248 = vadd.f32 %v2240, 1e-06
        %v2249 = vadd.f32 %v2241, 1e-06
        %v2250 = vadd.f32 %v2242, 1e-06
        %v2251 = vadd.f32 %v2243, 1e-06
        %v2252 = vadd.f32 %v2244, 1e-06
        %v2253 = vadd.f32 %v2245, 1e-06
        %v2254 = vadd.f32 %v2246, 1e-06
        %v2255 = vadd.f32 %v2247, 1e-06
        %v2256 = vrsqrt.pop %v2248
        %v2257 = vmul.f32 %v2256, %v2248
        %v2258 = vmul.f32 %v2257, %v2256
        %v2259 = vmul.f32 0.5, %v2258
        %v2260 = vsub.f32 1.5, %v2259
        %v2261 = vmul.f32 %v2256, %v2260
        %vm2262 = vweird.f32 %v2248
        %vm2263 = vweird.f32 %v2256
        %vm2264 = vmor %vm2262, %vm2263
        %v2265 = vsel %vm2264, %v2256, %v2261
        %v2266 = vrsqrt.pop %v2249
        %v2267 = vmul.f32 %v2266, %v2249
        %v2268 = vmul.f32 %v2267, %v2266
        %v2269 = vmul.f32 0.5, %v2268
        %v2270 = vsub.f32 1.5, %v2269
        %v2271 = vmul.f32 %v2266, %v2270
        %vm2272 = vweird.f32 %v2249
        %vm2273 = vweird.f32 %v2266
        %vm2274 = vmor %vm2272, %vm2273
        %v2275 = vsel %vm2274, %v2266, %v2271
        %v2276 = vrsqrt.pop %v2250
        %v2277 = vmul.f32 %v2276, %v2250
        %v2278 = vmul.f32 %v2277, %v2276
        %v2279 = vmul.f32 0.5, %v2278
        %v2280 = vsub.f32 1.5, %v2279
        %v2281 = vmul.f32 %v2276, %v2280
        %vm2282 = vweird.f32 %v2250
        %vm2283 = vweird.f32 %v2276
        %vm2284 = vmor %vm2282, %vm2283
        %v2285 = vsel %vm2284, %v2276, %v2281
        %v2286 = vrsqrt.pop %v2251
        %v2287 = vmul.f32 %v2286, %v2251
        %v2288 = vmul.f32 %v2287, %v2286
        %v2289 = vmul.f32 0.5, %v2288
        %v2290 = vsub.f32 1.5, %v2289
        %v2291 = vmul.f32 %v2286, %v2290
        %vm2292 = vweird.f32 %v2251
        %vm2293 = vweird.f32 %v2286
        %vm2294 = vmor %vm2292, %vm2293
        %v2295 = vsel %vm2294, %v2286, %v2291
        %v2296 = vrsqrt.pop %v2252
        %v2297 = vmul.f32 %v2296, %v2252
        %v2298 = vmul.f32 %v2297, %v2296
        %v2299 = vmul.f32 0.5, %v2298
        %v2300 = vsub.f32 1.5, %v2299
        %v2301 = vmul.f32 %v2296, %v2300
        %vm2302 = vweird.f32 %v2252
        %vm2303 = vweird.f32 %v2296
        %vm2304 = vmor %vm2302, %vm2303
        %v2305 = vsel %vm2304, %v2296, %v2301
        %v2306 = vrsqrt.pop %v2253
        %v2307 = vmul.f32 %v2306, %v2253
        %v2308 = vmul.f32 %v2307, %v2306
        %v2309 = vmul.f32 0.5, %v2308
        %v2310 = vsub.f32 1.5, %v2309
        %v2311 = vmul.f32 %v2306, %v2310
        %vm2312 = vweird.f32 %v2253
        %vm2313 = vweird.f32 %v2306
        %vm2314 = vmor %vm2312, %vm2313
        %v2315 = vsel %vm2314, %v2306, %v2311
        %v2316 = vrsqrt.pop %v2254
        %v2317 = vmul.f32 %v2316, %v2254
        %v2318 = vmul.f32 %v2317, %v2316
        %v2319 = vmul.f32 0.5, %v2318
        %v2320 = vsub.f32 1.5, %v2319
        %v2321 = vmul.f32 %v2316, %v2320
        %vm2322 = vweird.f32 %v2254
        %vm2323 = vweird.f32 %v2316
        %vm2324 = vmor %vm2322, %vm2323
        %v2325 = vsel %vm2324, %v2316, %v2321
        %v2326 = vrsqrt.pop %v2255
        %v2327 = vmul.f32 %v2326, %v2255
        %v2328 = vmul.f32 %v2327, %v2326
        %v2329 = vmul.f32 0.5, %v2328
        %v2330 = vsub.f32 1.5, %v2329
        %v2331 = vmul.f32 %v2326, %v2330
        %vm2332 = vweird.f32 %v2255
        %vm2333 = vweird.f32 %v2326
        %vm2334 = vmor %vm2332, %vm2333
        %v2335 = vsel %vm2334, %v2326, %v2331
        %v2336 = vmul.f32 %v2200, %v2265
        %v2337 = vmul.f32 %v2201, %v2275
        %v2338 = vmul.f32 %v2202, %v2285
        %v2339 = vmul.f32 %v2203, %v2295
        %v2340 = vmul.f32 %v2204, %v2305
        %v2341 = vmul.f32 %v2205, %v2315
        %v2342 = vmul.f32 %v2206, %v2325
        %v2343 = vmul.f32 %v2207, %v2335
        %v2344 = vperm.slane %v575, 1
        %v2345 = vmul.f32 %v2336, %v2344
        %v2346 = vmul.f32 %v2337, %v2344
        %v2347 = vmul.f32 %v2338, %v2344
        %v2348 = vmul.f32 %v2339, %v2344
        %v2349 = vmul.f32 %v2340, %v2344
        %v2350 = vmul.f32 %v2341, %v2344
        %v2351 = vmul.f32 %v2342, %v2344
        %v2352 = vmul.f32 %v2343, %v2344
        %v2353 = vperm.slane %v575, 2
        %v2354 = vadd.f32 %v2345, %v2353
        %v2355 = vadd.f32 %v2346, %v2353
        %v2356 = vadd.f32 %v2347, %v2353
        %v2357 = vadd.f32 %v2348, %v2353
        %v2358 = vadd.f32 %v2349, %v2353
        %v2359 = vadd.f32 %v2350, %v2353
        %v2360 = vadd.f32 %v2351, %v2353
        %v2361 = vadd.f32 %v2352, %v2353
        %2362 = vst.msk [vmem:[%s555] sm:$0xff] %vm2160, %v2354
        %2363 = vst.msk [vmem:[%s555 + $0x8] sm:$0xff] %vm2160, %v2355
        %2364 = vst.msk [vmem:[%s555 + $0x10] sm:$0xff] %vm2160, %v2356
        %2365 = vst.msk [vmem:[%s555 + $0x18] sm:$0xff] %vm2160, %v2357
        %2366 = vst.msk [vmem:[%s555 + $0x20] sm:$0xff] %vm2160, %v2358
        %2367 = vst.msk [vmem:[%s555 + $0x28] sm:$0xff] %vm2160, %v2359
        %2368 = vst.msk [vmem:[%s555 + $0x30] sm:$0xff] %vm2160, %v2360
        %2369 = vst.msk [vmem:[%s555 + $0x38] sm:$0xff] %vm2160, %v2361
        %v2370 = vld [vmem:[%s569] sm:$0xf]
        %v2371 = vperm.slane %v575, 3
        %v2372 = vadd.f32 %v2354, %v2371
        %v2373 = vadd.f32 %v2355, %v2371
        %v2374 = vadd.f32 %v2356, %v2371
        %v2375 = vadd.f32 %v2357, %v2371
        %v2376 = vadd.f32 %v2358, %v2371
        %v2377 = vadd.f32 %v2359, %v2371
        %v2378 = vadd.f32 %v2360, %v2371
        %v2379 = vadd.f32 %v2361, %v2371
        %v2380 = vld [vmem:[%s14] sm:$0xf]
        %v2381 = vld [vmem:[%s14 + $0x4] sm:$0xf]
        %v2382 = vld [vmem:[%s14 + $0x8] sm:$0xf]
        %v2383 = vld [vmem:[%s14 + $0xc] sm:$0xf]
        %v2384 = vpack.c.bf16 %v2370, %v2370
        %v2385 = vperm.slane %v575, 4
        %v2390 = vunpack.c.l.b16 %v2380
        %v2391 = vunpack.c.l.b16 %v2381
        %v2392 = vunpack.c.l.b16 %v2382
        %v2393 = vunpack.c.l.b16 %v2383
        %v2394 = vpack.c.b16 %v2391, %v2390
        %v2395 = vpack.c.b16 %v2393, %v2392
        %v2399 = vsel %vm2160, %v2384, 0
        %2401 = vmatpush.bf16.msra.mxu0 0
        %2402 = vmatpush.bf16.msra.mxu0 0
        %2403 = vmatpush.bf16.msra.mxu0 0
        %2404 = vmatpush.bf16.msra.mxu0 0
        %2405 = vmatpush.bf16.msra.mxu0 0
        %2406 = vmatpush.bf16.msra.mxu0 0
        %2407 = vmatpush.bf16.msra.mxu0 %v2395
        %2408 = vmatpush.bf16.msra.mxu0 %v2394
        %2409 = vmatmul.bf16.gmra.mxu0 %v2399
        %v2410 = vpop.f32.mrf.mxu0
        %v2411 = vadd.f32 %v2385, %v2410
        %v2412 = vpop.f32.mrf.mxu0
        %2413 = vdwg.mxu0
        %v2414 = vld [vmem:[%s12] sm:$0xf]
        %v2415 = vld [vmem:[%s12 + $0x4] sm:$0xf]
        %v2416 = vld [vmem:[%s12 + $0x8] sm:$0xf]
        %v2417 = vld [vmem:[%s12 + $0xc] sm:$0xf]
        %v2418 = vpack.c.bf16 %v2373, %v2372
        %v2419 = vpack.c.bf16 %v2375, %v2374
        %v2420 = vpack.c.bf16 %v2377, %v2376
        %v2421 = vpack.c.bf16 %v2379, %v2378
        %v2422 = vld [vmem:[%s13] sm:$0xff]
        %v2423 = vld [vmem:[%s13 + $0x8] sm:$0xff]
        %v2424 = vld [vmem:[%s13 + $0x10] sm:$0xff]
        %v2425 = vld [vmem:[%s13 + $0x18] sm:$0xff]
        %v2426 = vld [vmem:[%s13 + $0x20] sm:$0xff]
        %v2427 = vld [vmem:[%s13 + $0x28] sm:$0xff]
        %v2428 = vld [vmem:[%s13 + $0x30] sm:$0xff]
        %v2429 = vld [vmem:[%s13 + $0x38] sm:$0xff]
        %v2434 = vunpack.c.l.b16 %v2414
        %v2435 = vunpack.c.l.b16 %v2415
        %v2436 = vunpack.c.l.b16 %v2416
        %v2437 = vunpack.c.l.b16 %v2417
        %v2438 = vpack.c.b16 %v2435, %v2434
        %v2439 = vpack.c.b16 %v2437, %v2436
        %v2443 = vsel %vm2160, %v2418, 0
        %v2446 = vsel %vm2160, %v2419, 0
        %v2449 = vsel %vm2160, %v2420, 0
        %v2452 = vsel %vm2160, %v2421, 0
        %2454 = vmatpush.bf16.msra.mxu0 0
        %2455 = vmatpush.bf16.msra.mxu0 0
        %2456 = vmatpush.bf16.msra.mxu0 0
        %2457 = vmatpush.bf16.msra.mxu0 0
        %2458 = vmatpush.bf16.msra.mxu0 0
        %2459 = vmatpush.bf16.msra.mxu0 0
        %2460 = vmatpush.bf16.msra.mxu0 %v2439
        %2461 = vmatpush.bf16.msra.mxu0 %v2438
        %2462 = vmatmul.bf16.gmra.mxu0 %v2443
        %v2463 = vpop.f32.mrf.mxu0
        %v2464 = vadd.f32 %v2422, %v2463
        %v2465 = vpop.f32.mrf.mxu0
        %v2466 = vadd.f32 %v2423, %v2465
        %2467 = vmatmul.bf16.gmra.mxu0 %v2446
        %v2468 = vpop.f32.mrf.mxu0
        %v2469 = vadd.f32 %v2424, %v2468
        %v2470 = vpop.f32.mrf.mxu0
        %v2471 = vadd.f32 %v2425, %v2470
        %2472 = vmatmul.bf16.gmra.mxu0 %v2449
        %v2473 = vpop.f32.mrf.mxu0
        %v2474 = vadd.f32 %v2426, %v2473
        %v2475 = vpop.f32.mrf.mxu0
        %v2476 = vadd.f32 %v2427, %v2475
        %2477 = vmatmul.bf16.gmra.mxu0 %v2452
        %v2478 = vpop.f32.mrf.mxu0
        %v2479 = vadd.f32 %v2428, %v2478
        %v2480 = vpop.f32.mrf.mxu0
        %v2481 = vadd.f32 %v2429, %v2480
        %2482 = vdwg.mxu0
        %v2483 = vpack.c.bf16 %v2411, %v2411
        %v2484 = vpack.c.bf16 %v2466, %v2464
        %v2485 = vpack.c.bf16 %v2471, %v2469
        %v2486 = vpack.c.bf16 %v2476, %v2474
        %v2487 = vpack.c.bf16 %v2481, %v2479
        %v2489 = vsel %vm2160, %v2483, 0
        %v2492 = vsel %vm2160, %v2484, 0
        %v2495 = vsel %vm2160, %v2485, 0
        %v2498 = vsel %vm2160, %v2486, 0
        %v2501 = vsel %vm2160, %v2487, 0
        %2503 = vmatpush.bf16.xpose.msra.mxu0 0
        %2504 = vmatpush.bf16.xpose.msra.mxu0 0
        %2505 = vmatpush.bf16.xpose.msra.mxu0 0
        %2506 = vmatpush.bf16.xpose.msra.mxu0 0
        %2507 = vmatpush.bf16.xpose.msra.mxu0 %v2501
        %2508 = vmatpush.bf16.xpose.msra.mxu0 %v2498
        %2509 = vmatpush.bf16.xpose.msra.mxu0 %v2495
        %2510 = vmatpush.bf16.xpose.msra.mxu0 %v2492
        %2511 = vmatmul.bf16.gmra.mxu0 %v2489
        %v2512 = vpop.f32.mrf.mxu0
        %v2513 = vadd.f32 0.0, %v2512
        %v2514 = vpop.f32.mrf.mxu0
        %2515 = vdwg.mxu0
        %vm2516 = vcmask 519168
        %v2517 = vsel %vm2516, %v2513, -inf
        %2518 = vmax.xlane.f32.xlu0 %v2517
        %v2519 = vpop.xlane.xlu0 %2518
        %v2520 = vsub.f32 %v2513, %v2519
        %v2521 = vmul.f32 %v2520, 1.442695
        %v2522 = vpow.pop %v2521
        %v2523 = vsel %vm2516, %v2522, 0.0
        %2524 = vadd.xlane.f32.xlu0 %v2523
        %v2525 = vpop.xlane.xlu0 %2524
        %v2526 = vrcp.pop %v2525
        %v2527 = vmul.f32 %v2522, %v2526
        %v2528 = vpack.c.bf16 %v2527, %v2527
        %2533 = vrot.lane.b32.xlu0 %v2484, 96
        %v2534 = vpop.permute.xlu0 %2533
        %2535 = vrot.lane.b32.xlu0 %v2485, 96
        %v2536 = vpop.permute.xlu0 %2535
        %2537 = vrot.lane.b32.xlu0 %v2486, 96
        %v2538 = vpop.permute.xlu0 %2537
        %2539 = vrot.lane.b32.xlu0 %v2487, 96
        %v2540 = vpop.permute.xlu0 %2539
        %v2546 = vsel %vm705, %v2528, 0
        %2548 = vmatpush.bf16.msra.mxu0 0
        %2549 = vmatpush.bf16.msra.mxu0 0
        %2550 = vmatpush.bf16.msra.mxu0 0
        %2551 = vmatpush.bf16.msra.mxu0 0
        %2552 = vmatpush.bf16.msra.mxu0 %v2540
        %2553 = vmatpush.bf16.msra.mxu0 %v2538
        %2554 = vmatpush.bf16.msra.mxu0 %v2536
        %2555 = vmatpush.bf16.msra.mxu0 %v2534
        %2556 = vmatmul.bf16.gmra.mxu0 %v2546
        %v2557 = vpop.f32.mrf.mxu0
        %v2558 = vadd.f32 0.0, %v2557
        %v2559 = vpop.f32.mrf.mxu0
        %2560 = vdwg.mxu0
        %s2561 = scalar_lea.vmem %s14, 16
        %v2562 = vld [vmem:[%s2561] sm:$0xf]
        %v2563 = vld [vmem:[%s2561 + $0x4] sm:$0xf]
        %v2564 = vld [vmem:[%s2561 + $0x8] sm:$0xf]
        %v2565 = vld [vmem:[%s2561 + $0xc] sm:$0xf]
        %v2566 = vpack.c.bf16 %v2558, %v2558
        %v2571 = vunpack.c.l.b16 %v2562
        %v2572 = vunpack.c.l.b16 %v2563
        %v2573 = vunpack.c.l.b16 %v2564
        %v2574 = vunpack.c.l.b16 %v2565
        %v2575 = vpack.c.b16 %v2572, %v2571
        %v2576 = vpack.c.b16 %v2574, %v2573
        %v2580 = vsel %vm2160, %v2566, 0
        %2582 = vmatpush.bf16.msra.mxu0 0
        %2583 = vmatpush.bf16.msra.mxu0 0
        %2584 = vmatpush.bf16.msra.mxu0 0
        %2585 = vmatpush.bf16.msra.mxu0 0
        %2586 = vmatpush.bf16.msra.mxu0 0
        %2587 = vmatpush.bf16.msra.mxu0 0
        %2588 = vmatpush.bf16.msra.mxu0 %v2576
        %2589 = vmatpush.bf16.msra.mxu0 %v2575
        %2590 = vmatmul.bf16.gmra.mxu0 %v2580
        %v2591 = vpop.f32.mrf.mxu0
        %v2592 = vadd.f32 0.0, %v2591
        %v2593 = vpop.f32.mrf.mxu0
        %2594 = vdwg.mxu0
        %v2595 = vadd.f32 %v2370, %v2592
        %v2596 = vperm.slane %v575, 5
        %v2597 = vadd.f32 %v2595, %v2596
        %vm2598 = vcmask 257024
        %v2599 = vsel %vm2598, %v2597, 0.0
        %2600 = vadd.xlane.f32.xlu0 %v2599
        %v2601 = vpop.xlane.xlu0 %2600
        %v2602 = vmul.f32 %v2601, %v2191
        %v2603 = vsub.f32 %v2597, %v2602
        %v2604 = vmul.f32 %v2603, %v2603
        %v2605 = vsel %vm2598, %v2604, 0.0
        %2606 = vadd.xlane.f32.xlu0 %v2605
        %v2607 = vpop.xlane.xlu0 %2606
        %v2608 = vmul.f32 %v2607, %v2191
        %v2609 = vadd.f32 %v2608, 1e-05
        %v2610 = vrsqrt.pop %v2609
        %v2611 = vmul.f32 %v2610, %v2609
        %v2612 = vmul.f32 %v2611, %v2610
        %v2613 = vmul.f32 0.5, %v2612
        %v2614 = vsub.f32 1.5, %v2613
        %v2615 = vmul.f32 %v2610, %v2614
        %vm2616 = vweird.f32 %v2609
        %vm2617 = vweird.f32 %v2610
        %vm2618 = vmor %vm2616, %vm2617
        %v2619 = vsel %vm2618, %v2610, %v2615
        %v2620 = vmul.f32 %v2603, %v2619
        %v2621 = vperm.slane %v575, 6
        %v2622 = vmul.f32 %v2620, %v2621
        %v2623 = vperm.slane %v575, 7
        %v2624 = vadd.f32 %v2622, %v2623
        %s2625 = scalar_lea.vmem %s14, 32
        %v2626 = vld [vmem:[%s2625] sm:$0xf]
        %v2627 = vld [vmem:[%s2625 + $0x4] sm:$0xf]
        %v2628 = vld [vmem:[%s2625 + $0x8] sm:$0xf]
        %v2629 = vld [vmem:[%s2625 + $0xc] sm:$0xf]
        %v2630 = vpack.c.bf16 %v2624, %v2624
        %v2631 = vperm.slane %v576, 0
        %v2636 = vunpack.c.l.b16 %v2626
        %v2637 = vunpack.c.l.b16 %v2627
        %v2638 = vunpack.c.l.b16 %v2628
        %v2639 = vunpack.c.l.b16 %v2629
        %v2640 = vpack.c.b16 %v2637, %v2636
        %v2641 = vpack.c.b16 %v2639, %v2638
        %v2645 = vsel %vm2160, %v2630, 0
        %2647 = vmatpush.bf16.msra.mxu0 0
        %2648 = vmatpush.bf16.msra.mxu0 0
        %2649 = vmatpush.bf16.msra.mxu0 0
        %2650 = vmatpush.bf16.msra.mxu0 0
        %2651 = vmatpush.bf16.msra.mxu0 0
        %2652 = vmatpush.bf16.msra.mxu0 0
        %2653 = vmatpush.bf16.msra.mxu0 %v2641
        %2654 = vmatpush.bf16.msra.mxu0 %v2640
        %2655 = vmatmul.bf16.gmra.mxu0 %v2645
        %v2656 = vpop.f32.mrf.mxu0
        %v2657 = vadd.f32 %v2631, %v2656
        %v2658 = vpop.f32.mrf.mxu0
        %2659 = vdwg.mxu0
        %v2660 = vmax.f32 %v2657, 0.0
        %s2661 = scalar_lea.vmem %s14, 48
        %v2662 = vld [vmem:[%s2661] sm:$0xf]
        %v2663 = vld [vmem:[%s2661 + $0x4] sm:$0xf]
        %v2664 = vld [vmem:[%s2661 + $0x8] sm:$0xf]
        %v2665 = vld [vmem:[%s2661 + $0xc] sm:$0xf]
        %v2666 = vpack.c.bf16 %v2660, %v2660
        %v2667 = vperm.slane %v576, 1
        %v2672 = vunpack.c.l.b16 %v2662
        %v2673 = vunpack.c.l.b16 %v2663
        %v2674 = vunpack.c.l.b16 %v2664
        %v2675 = vunpack.c.l.b16 %v2665
        %v2676 = vpack.c.b16 %v2673, %v2672
        %v2677 = vpack.c.b16 %v2675, %v2674
        %v2681 = vsel %vm2160, %v2666, 0
        %2683 = vmatpush.bf16.msra.mxu0 0
        %2684 = vmatpush.bf16.msra.mxu0 0
        %2685 = vmatpush.bf16.msra.mxu0 0
        %2686 = vmatpush.bf16.msra.mxu0 0
        %2687 = vmatpush.bf16.msra.mxu0 0
        %2688 = vmatpush.bf16.msra.mxu0 0
        %2689 = vmatpush.bf16.msra.mxu0 %v2677
        %2690 = vmatpush.bf16.msra.mxu0 %v2676
        %2691 = vmatmul.bf16.gmra.mxu0 %v2681
        %v2692 = vpop.f32.mrf.mxu0
        %v2693 = vadd.f32 %v2667, %v2692
        %v2694 = vpop.f32.mrf.mxu0
        %2695 = vdwg.mxu0
        %v2696 = vpack.c.bf16 %v2693, %v2693
        %v2698 = vsel %vm2160, %v2696, 0
        %2700 = vmatpush.bf16.xpose.msra.mxu0 0
        %2701 = vmatpush.bf16.xpose.msra.mxu0 0
        %2702 = vmatpush.bf16.xpose.msra.mxu0 0
        %2703 = vmatpush.bf16.xpose.msra.mxu0 0
        %2704 = vmatpush.bf16.xpose.msra.mxu0 %v2452
        %2705 = vmatpush.bf16.xpose.msra.mxu0 %v2449
        %2706 = vmatpush.bf16.xpose.msra.mxu0 %v2446
        %2707 = vmatpush.bf16.xpose.msra.mxu0 %v2443
        %2708 = vmatmul.bf16.gmra.mxu0 %v2698
        %v2709 = vpop.f32.mrf.mxu0
        %v2710 = vadd.f32 0.0, %v2709
        %v2711 = vpop.f32.mrf.mxu0
        %2712 = vdwg.mxu0
        %s2713 = scalar_lea.vmem %s14, 64
        %v2714 = vld [vmem:[%s2713] sm:$0xf]
        %v2715 = vld [vmem:[%s2713 + $0x4] sm:$0xf]
        %v2716 = vld [vmem:[%s2713 + $0x8] sm:$0xf]
        %v2717 = vld [vmem:[%s2713 + $0xc] sm:$0xf]
        %v2718 = vperm.slane %v576, 2
        %v2723 = vunpack.c.l.b16 %v2714
        %v2724 = vunpack.c.l.b16 %v2715
        %v2725 = vunpack.c.l.b16 %v2716
        %v2726 = vunpack.c.l.b16 %v2717
        %v2727 = vpack.c.b16 %v2724, %v2723
        %v2728 = vpack.c.b16 %v2726, %v2725
        %2731 = vmatpush.bf16.msra.mxu0 0
        %2732 = vmatpush.bf16.msra.mxu0 0
        %2733 = vmatpush.bf16.msra.mxu0 0
        %2734 = vmatpush.bf16.msra.mxu0 0
        %2735 = vmatpush.bf16.msra.mxu0 0
        %2736 = vmatpush.bf16.msra.mxu0 0
        %2737 = vmatpush.bf16.msra.mxu0 %v2728
        %2738 = vmatpush.bf16.msra.mxu0 %v2727
        %2739 = vmatmul.bf16.gmra.mxu0 %v2645
        %v2740 = vpop.f32.mrf.mxu0
        %v2741 = vadd.f32 %v2718, %v2740
        %v2742 = vpop.f32.mrf.mxu0
        %2743 = vdwg.mxu0
        %v2744 = vmax.f32 %v2741, 0.0
        %v2745 = vperm.slane %v576, 3
        %v2746 = vmul.f32 %v2744, %v2745
        %v2747 = vsel %vm2598, %v2746, 0.0
        %2748 = vadd.xlane.f32.xlu0 %v2747
        %v2749 = vpop.xlane.xlu0 %2748
        %v2750 = vperm.slane %v576, 4
        %v2751 = vadd.f32 %v2749, %v2750
        %2753 = vset.pattern.permute.xlu0 0
        %2754 = vperm.xlu0 %2753, %v2751
        %v2755 = vpop.permute.xlu0 %2754
        %v2756 = vrot.slane %v2755, 7
        %v2758 = vsel %vm705, %v2710, %v2756
        %2759 = vst [vmem:[%s572 - $0x1] sm:$0x2] %v2758
        %s2760 = sand.u32 %s386, 1
        %s2761 = scalar_lea.sflag [#allocation3], %s2760
        %s2762 = sand.u32 %s386, 1
        %s2763 = smul.addr %s2762, 64
        %s2764 = scalar_lea.vmem [#allocation2], %s2763
        %p2765 = scmp.lt.s32.totalorder %s32, 1
        %s2766 = scalar_select %p2765, %s32, 1
        %s2767 = scalar_lea.vmem %s17, %s2766
        // Predicated region
        $region85: #{_forward_batched.1} parent=83 // pred_check
          %p2768 = pneg %p396
        $region86: #{_forward_batched.1} parent=83 // pred_check_branch
          %2770 = sbr.rel (%p2768) target = $region88
        $region87: #{_forward_batched.1} parent=83 // pred_region
          %2772 = vsyncadd %s2761, 0
          %s2773 = smul.addr %s32, 8
          %s2774 = smul.addr %s2773, 8
          %s2775 = scalar_lea.hbm %s16, %s2774
          %s2776 = sshll.u32 %s2764, 4
          %s2777 = int_to_ptr.vmem [resolvable:$true] %s2776
          %s2778 = sshll.u32 %s2775, 4
          %s2779 = int_to_ptr.hbm [resolvable:$true] %s2778
          %2784 = dma.vmem_to_hbm [thread:$0]  %s2777, 1024, %s2779, %s2761, 128, 128, 8
        $region88: #{_forward_batched.1} parent=83 // pred_fallthru
          _
        // Predicated region
        $region89: #{_forward_batched.1} parent=83 // pred_check
          %p2785 = pneg %p422
        $region90: #{_forward_batched.1} parent=83 // pred_check_branch
          %2787 = sbr.rel (%p2785) target = $region92
        $region91: #{_forward_batched.1} parent=83 // pred_region
          _
        $region92: #{_forward_batched.1} parent=83 // pred_fallthru
          _
      $region84: #{_forward_batched.1} parent=5 // pred_fallthru
        _
      %p2788 = scmp.le.s32.totalorder 2, %s27
      // Predicated region
      $region93: #{_forward_batched.1} parent=5 // pred_check
        %p2789 = pneg %p2788
      $region94: #{_forward_batched.1} parent=5 // pred_check_branch
        %2791 = sbr.rel (%p2789) target = $region96
      $region95: #{_forward_batched.1} parent=5 // pred_region
        %s2792 = ssub.s32 %s27, 2
        // Predicated region
        $region97: #{_forward_batched.1} parent=95 // pred_check
          %p2793 = pneg %p402
        $region98: #{_forward_batched.1} parent=95 // pred_check_branch
          %2795 = sbr.rel (%p2793) target = $region100
        $region99: #{_forward_batched.1} parent=95 // pred_region
          %s2796 = sand.u32 %s387, 1
          %s2797 = scalar_lea.sflag [#allocation3], %s2796
          %s2798 = sand.u32 %s387, 1
          %s2799 = smul.addr %s2798, 64
          %s2800 = scalar_lea.vmem [#allocation2], %s2799
          %2802 = dma.done %s2797, 1024
        $region100: #{_forward_batched.1} parent=95 // pred_fallthru
          _
        // Predicated region
        $region101: #{_forward_batched.1} parent=95 // pred_check
          %p2803 = pneg %p428
        $region102: #{_forward_batched.1} parent=95 // pred_check_branch
          %2805 = sbr.rel (%p2803) target = $region104
        $region103: #{_forward_batched.1} parent=95 // pred_region
          %p2806 = scmp.lt.s32.totalorder %s33, 1
          %s2807 = scalar_select %p2806, %s33, 1
          %s2808 = scalar_lea.vmem %s17, %s2807
        $region104: #{_forward_batched.1} parent=95 // pred_fallthru
          _
      $region96: #{_forward_batched.1} parent=5 // pred_fallthru
        _
    $region6: #{_forward_batched.1} parent=1 // loop_footer
      %s31 = sadd.s32 1, %s27
    $region7: #{_forward_batched.1} parent=1 // loop_footer_branch
      %26 = sbr.rel target = $region3
    $region8: #{_forward_batched.1} parent=1 // loop_exit
      _
    %2809 = vsyncpa [#allocation3], 1
    %s2810 = scalar_lea.sflag [#allocation3], 1
    %2811 = vsyncpa %s2810, 1

</llo_original>
